<compile_context>
chip_gen: v7x
topology: tpu7x:2x2x1
jax: 0.10.0
libtpu: 0.0.40
codegen_flags: <defaults>
</compile_context>

<pallas_src>
import functools

import jax
import jax.numpy as jnp
from jax import lax
from jax.experimental import pallas as pl
from jax.experimental.pallas import tpu as pltpu


def _conv_bn_kernel(x_ref, w_ref, bias_ref, o_ref, *,
                    kh_kw, stride, dilation, toh, ow):
    """Grid = (batch, output-row tile).

    x_ref:    (Hp, Wp, Cin)            bf16 padded image (batch dim squeezed)
    w_ref:    (KH, KW, Cin, Cout_pad)  bf16 weights with BN scale folded in
    bias_ref: (1, Cout_pad)            f32 folded BN bias
    o_ref:    (TOH, OW, Cout_pad)      f32 output row tile (batch dim squeezed)
    """
    kh_n, kw_n = kh_kw
    sh, sw = stride
    dh, dw = dilation
    cout_pad = o_ref.shape[-1]

    t = pl.program_id(1)
    row0 = pl.multiple_of(t * (toh * sh), toh * sh)

    acc = None
    for kh in range(kh_n):
        # Input rows row0 + kh*dh + {0, sh, ..., (toh-1)*sh} for this row tile.
        if sh == 1:
            rows = x_ref[pl.ds(row0 + kh * dh, toh), :, :]
        else:
            rows = x_ref[pl.ds(row0 + kh * dh, toh, stride=sh), :, :]
        for kw in range(kw_n):
            xs = rows[:, kw * dw: kw * dw + (ow - 1) * sw + 1: sw, :]  # (TOH, OW, Cin)
            tap = lax.dot_general(
                xs, w_ref[kh, kw],
                dimension_numbers=(((2,), (0,)), ((), ())),
                preferred_element_type=jnp.float32)
            acc = tap if acc is None else acc + tap

    # Folded-BN bias in f32 (scale already folded into the weights).
    o_ref[...] = (acc + bias_ref[0]).astype(o_ref.dtype)


def _round_up(x, m):
    return (x + m - 1) // m * m


def _pick_row_tile(oh, ow, cout_pad, *, vmem_budget=8 << 20, m_target=512):
    """Largest divisor of `oh` whose double-buffered f32 output tile fits the
    budget; stop growing once M = toh*ow reaches the MXU-friendly target."""
    best = 1
    for t in range(1, oh + 1):
        if oh % t:
            continue
        if t * ow * cout_pad * 4 * 2 > vmem_budget:
            break
        best = t
        if t * ow >= m_target:
            break
    return best


def basic_conv2d(x_nchw, weight, gamma, beta, running_mean, running_var,
                 *, stride=1, padding=0, dilation=1, eps=1e-5):
    """Forward of BasicConv2d: BN(conv(x)), no ReLU (matches the PyTorch forward)."""
    if isinstance(stride, int):
        stride = (stride, stride)
    if isinstance(padding, int):
        padding = (padding, padding)
    if isinstance(dilation, int):
        dilation = (dilation, dilation)

    n, cin, h, w = x_nchw.shape
    cout, cin_w, kh, kw = weight.shape
    assert cin == cin_w

    oh = (h + 2 * padding[0] - dilation[0] * (kh - 1) - 1) // stride[0] + 1
    ow = (w + 2 * padding[1] - dilation[1] * (kw - 1) - 1) // stride[1] + 1

    cout_pad = _round_up(cout, 128)                    # lane-dense output stores
    toh = _pick_row_tile(oh, ow, cout_pad)             # output row tile

    # ---- wrapper-side prep (XLA) ----
    x_nhwc = jnp.transpose(x_nchw, (0, 2, 3, 1))
    x_pad = jnp.pad(x_nhwc, ((0, 0), (padding[0], padding[0]),
                             (padding[1], padding[1]), (0, 0))).astype(jnp.bfloat16)
    hp, wp = x_pad.shape[1], x_pad.shape[2]

    # Fold eval-mode BN into conv:  bn(conv(x,w)) = conv(x, w*s) + (beta - mean*s)
    scale = (gamma / jnp.sqrt(running_var + eps)).astype(jnp.float32)
    bias = (beta - running_mean * scale).astype(jnp.float32)

    w_hwio = jnp.transpose(weight, (2, 3, 1, 0)).astype(jnp.float32)   # (KH,KW,Cin,Cout)
    w_folded = w_hwio * scale[None, None, None, :]
    w_folded = jnp.pad(w_folded, ((0, 0), (0, 0), (0, 0), (0, cout_pad - cout)))
    w_bf16 = w_folded.astype(jnp.bfloat16)
    bias_pad = jnp.pad(bias, (0, cout_pad - cout)).reshape(1, cout_pad)

    kernel = functools.partial(
        _conv_bn_kernel, kh_kw=(kh, kw), stride=stride, dilation=dilation,
        toh=toh, ow=ow)

    flops = 2 * n * oh * ow * cout * kh * kw * cin
    bytes_accessed = (x_pad.size * 2 + w_bf16.size * 2 + bias_pad.size * 4
                      + n * oh * ow * cout_pad * 4)

    out_nhwc = pl.pallas_call(
        kernel,
        out_shape=jax.ShapeDtypeStruct((n, oh, ow, cout_pad), jnp.float32),
        grid_spec=pltpu.PrefetchScalarGridSpec(
            num_scalar_prefetch=0,
            grid=(n, oh // toh),
            in_specs=[
                # Full padded image per batch; block index depends only on the
                # batch axis, so it stays resident across the inner row-tile axis.
                pl.BlockSpec((None, hp, wp, cin), lambda b, t: (b, 0, 0, 0)),
                pl.BlockSpec((kh, kw, cin, cout_pad), lambda b, t: (0, 0, 0, 0)),
                pl.BlockSpec((1, cout_pad), lambda b, t: (0, 0)),
            ],
            out_specs=pl.BlockSpec((None, toh, ow, cout_pad),
                                   lambda b, t: (b, t, 0, 0)),
        ),
        compiler_params=pltpu.CompilerParams(
            dimension_semantics=("parallel", "parallel"),
            vmem_limit_bytes=48 * 1024 * 1024),
        cost_estimate=pl.CostEstimate(
            flops=flops, transcendentals=0, bytes_accessed=bytes_accessed),
    )(x_pad, w_bf16, bias_pad)

    out_nhwc = out_nhwc[..., :cout]                       # drop lane padding
    return jnp.transpose(out_nhwc, (0, 3, 1, 2))          # back to NCHW


if __name__ == "__main__":
    # BasicConv2d(in_planes=4, out_planes=8, kernel_size=3, stride=1, padding=1)
    N, CIN, H, W = 2, 4, 16, 16
    COUT, K = 8, 3
    STRIDE, PAD, DIL = 1, 1, 1

    key = jax.random.PRNGKey(0)
    kx, kw_, kg, kb, km, kv = jax.random.split(key, 6)

    x = jax.random.normal(kx, (N, CIN, H, W), dtype=jnp.float32)
    weight = 0.1 * jax.random.normal(kw_, (COUT, CIN, K, K), dtype=jnp.float32)
    gamma = 1.0 + 0.1 * jax.random.normal(kg, (COUT,), dtype=jnp.float32)
    beta = 0.1 * jax.random.normal(kb, (COUT,), dtype=jnp.float32)
    running_mean = 0.1 * jax.random.normal(km, (COUT,), dtype=jnp.float32)
    running_var = jnp.abs(1.0 + 0.1 * jax.random.normal(kv, (COUT,), dtype=jnp.float32))

    out = basic_conv2d(x, weight, gamma, beta, running_mean, running_var,
                       stride=STRIDE, padding=PAD, dilation=DIL)
    out = jax.block_until_ready(out)

    # Reference: f32 conv + eval-mode folded BN.  Kernel uses bf16 activations /
    # weights with f32 accumulation, so tolerance is loosened accordingly.
    ref_conv = lax.conv_general_dilated(
        x, weight, window_strides=(STRIDE, STRIDE),
        padding=[(PAD, PAD), (PAD, PAD)],
        rhs_dilation=(DIL, DIL),
        dimension_numbers=("NCHW", "OIHW", "NCHW"))
    scale = gamma / jnp.sqrt(running_var + 1e-5)
    ref = ref_conv * scale[None, :, None, None] \
        + (beta - running_mean * scale)[None, :, None, None]

    assert out.shape == (N, COUT, H, W)
    max_err = jnp.max(jnp.abs(out - ref))
    assert jnp.allclose(out, ref, atol=3e-2, rtol=3e-2), f"max abs err {max_err}"

    print("KERNEL_OK")
</pallas_src>

<mosaic_0001>
module attributes {stable_mosaic.version = 11 : i64} {
  func.func @_conv_bn_kernel(%arg0: i32, %arg1: i32, %arg2: memref<1x18x18x4xbf16, #tpu.memory_space<vmem>>, %arg3: memref<3x3x4x128xbf16, #tpu.memory_space<vmem>>, %arg4: memref<1x128xf32, #tpu.memory_space<vmem>>, %arg5: memref<1x16x16x128xf32, #tpu.memory_space<vmem>>) attributes {dimension_semantics = [#tpu.dimension_semantics<parallel>, #tpu.dimension_semantics<parallel>], iteration_bounds = array<i64: 2, 1>, scalar_prefetch = 0 : i64, scratch_operands = 0 : i64, tpu.core_type = #tpu.core_type<tc>, window_params = [{transform_indices = @transform_0, window_bounds = array<i64: 1, 18, 18, 4>}, {pipeline_mode = #tpu.pipeline_mode<synchronous>, transform_indices = @transform_1, window_bounds = array<i64: 3, 3, 4, 128>}, {pipeline_mode = #tpu.pipeline_mode<synchronous>, transform_indices = @transform_2, window_bounds = array<i64: 1, 128>}, {transform_indices = @transform_3, window_bounds = array<i64: 1, 16, 16, 128>}]} {
    %c16_i32 = arith.constant 16 : i32
    %0 = arith.muli %arg1, %c16_i32 : i32
    %1 = tpu.assume_multiple %0, 16 : i32
    %c0_i32 = arith.constant 0 : i32
    %2 = arith.addi %1, %c0_i32 : i32
    %c0 = arith.constant 0 : index
    %3 = arith.index_cast %2 : i32 to index
    %c0_0 = arith.constant 0 : index
    %c0_1 = arith.constant 0 : index
    %4 = vector.load %arg2[%c0, %3, %c0_0, %c0_1] : memref<1x18x18x4xbf16, #tpu.memory_space<vmem>>, vector<1x16x18x4xbf16>
    %5 = vector.shape_cast %4 : vector<1x16x18x4xbf16> to vector<16x18x4xbf16>
    %6 = vector.extract_strided_slice %5 {offsets = [0, 0, 0], sizes = [16, 16, 4], strides = [1, 1, 1]} : vector<16x18x4xbf16> to vector<16x16x4xbf16>
    %c0_2 = arith.constant 0 : index
    %c0_3 = arith.constant 0 : index
    %c0_4 = arith.constant 0 : index
    %c0_5 = arith.constant 0 : index
    %7 = vector.load %arg3[%c0_2, %c0_3, %c0_4, %c0_5] : memref<3x3x4x128xbf16, #tpu.memory_space<vmem>>, vector<1x1x4x128xbf16>
    %8 = vector.shape_cast %7 : vector<1x1x4x128xbf16> to vector<4x128xbf16>
    %cst = arith.constant dense<0.000000e+00> : vector<16x16x128xf32>
    %9 = tpu.matmul %6, %8, %cst {dimension_numbers = #tpu.dot_dimension_numbers<[2], [0], [0, 1], [1], [0, 0, 0, 1, 1, 1], [], []>} : vector<16x16x4xbf16>, vector<4x128xbf16>, vector<16x16x128xf32> -> vector<16x16x128xf32>
    %10 = vector.extract_strided_slice %5 {offsets = [0, 1, 0], sizes = [16, 16, 4], strides = [1, 1, 1]} : vector<16x18x4xbf16> to vector<16x16x4xbf16>
    %c0_6 = arith.constant 0 : index
    %c1 = arith.constant 1 : index
    %c0_7 = arith.constant 0 : index
    %c0_8 = arith.constant 0 : index
    %11 = vector.load %arg3[%c0_6, %c1, %c0_7, %c0_8] : memref<3x3x4x128xbf16, #tpu.memory_space<vmem>>, vector<1x1x4x128xbf16>
    %12 = vector.shape_cast %11 : vector<1x1x4x128xbf16> to vector<4x128xbf16>
    %cst_9 = arith.constant dense<0.000000e+00> : vector<16x16x128xf32>
    %13 = tpu.matmul %10, %12, %cst_9 {dimension_numbers = #tpu.dot_dimension_numbers<[2], [0], [0, 1], [1], [0, 0, 0, 1, 1, 1], [], []>} : vector<16x16x4xbf16>, vector<4x128xbf16>, vector<16x16x128xf32> -> vector<16x16x128xf32>
    %14 = arith.addf %9, %13 : vector<16x16x128xf32>
    %15 = vector.extract_strided_slice %5 {offsets = [0, 2, 0], sizes = [16, 16, 4], strides = [1, 1, 1]} : vector<16x18x4xbf16> to vector<16x16x4xbf16>
    %c0_10 = arith.constant 0 : index
    %c2 = arith.constant 2 : index
    %c0_11 = arith.constant 0 : index
    %c0_12 = arith.constant 0 : index
    %16 = vector.load %arg3[%c0_10, %c2, %c0_11, %c0_12] : memref<3x3x4x128xbf16, #tpu.memory_space<vmem>>, vector<1x1x4x128xbf16>
    %17 = vector.shape_cast %16 : vector<1x1x4x128xbf16> to vector<4x128xbf16>
    %cst_13 = arith.constant dense<0.000000e+00> : vector<16x16x128xf32>
    %18 = tpu.matmul %15, %17, %cst_13 {dimension_numbers = #tpu.dot_dimension_numbers<[2], [0], [0, 1], [1], [0, 0, 0, 1, 1, 1], [], []>} : vector<16x16x4xbf16>, vector<4x128xbf16>, vector<16x16x128xf32> -> vector<16x16x128xf32>
    %19 = arith.addf %14, %18 : vector<16x16x128xf32>
    %c1_i32 = arith.constant 1 : i32
    %20 = arith.addi %1, %c1_i32 : i32
    %c0_14 = arith.constant 0 : index
    %21 = arith.index_cast %20 : i32 to index
    %c0_15 = arith.constant 0 : index
    %c0_16 = arith.constant 0 : index
    %22 = vector.load %arg2[%c0_14, %21, %c0_15, %c0_16] : memref<1x18x18x4xbf16, #tpu.memory_space<vmem>>, vector<1x16x18x4xbf16>
    %23 = vector.shape_cast %22 : vector<1x16x18x4xbf16> to vector<16x18x4xbf16>
    %24 = vector.extract_strided_slice %23 {offsets = [0, 0, 0], sizes = [16, 16, 4], strides = [1, 1, 1]} : vector<16x18x4xbf16> to vector<16x16x4xbf16>
    %c1_17 = arith.constant 1 : index
    %c0_18 = arith.constant 0 : index
    %c0_19 = arith.constant 0 : index
    %c0_20 = arith.constant 0 : index
    %25 = vector.load %arg3[%c1_17, %c0_18, %c0_19, %c0_20] : memref<3x3x4x128xbf16, #tpu.memory_space<vmem>>, vector<1x1x4x128xbf16>
    %26 = vector.shape_cast %25 : vector<1x1x4x128xbf16> to vector<4x128xbf16>
    %cst_21 = arith.constant dense<0.000000e+00> : vector<16x16x128xf32>
    %27 = tpu.matmul %24, %26, %cst_21 {dimension_numbers = #tpu.dot_dimension_numbers<[2], [0], [0, 1], [1], [0, 0, 0, 1, 1, 1], [], []>} : vector<16x16x4xbf16>, vector<4x128xbf16>, vector<16x16x128xf32> -> vector<16x16x128xf32>
    %28 = arith.addf %19, %27 : vector<16x16x128xf32>
    %29 = vector.extract_strided_slice %23 {offsets = [0, 1, 0], sizes = [16, 16, 4], strides = [1, 1, 1]} : vector<16x18x4xbf16> to vector<16x16x4xbf16>
    %c1_22 = arith.constant 1 : index
    %c1_23 = arith.constant 1 : index
    %c0_24 = arith.constant 0 : index
    %c0_25 = arith.constant 0 : index
    %30 = vector.load %arg3[%c1_22, %c1_23, %c0_24, %c0_25] : memref<3x3x4x128xbf16, #tpu.memory_space<vmem>>, vector<1x1x4x128xbf16>
    %31 = vector.shape_cast %30 : vector<1x1x4x128xbf16> to vector<4x128xbf16>
    %cst_26 = arith.constant dense<0.000000e+00> : vector<16x16x128xf32>
    %32 = tpu.matmul %29, %31, %cst_26 {dimension_numbers = #tpu.dot_dimension_numbers<[2], [0], [0, 1], [1], [0, 0, 0, 1, 1, 1], [], []>} : vector<16x16x4xbf16>, vector<4x128xbf16>, vector<16x16x128xf32> -> vector<16x16x128xf32>
    %33 = arith.addf %28, %32 : vector<16x16x128xf32>
    %34 = vector.extract_strided_slice %23 {offsets = [0, 2, 0], sizes = [16, 16, 4], strides = [1, 1, 1]} : vector<16x18x4xbf16> to vector<16x16x4xbf16>
    %c1_27 = arith.constant 1 : index
    %c2_28 = arith.constant 2 : index
    %c0_29 = arith.constant 0 : index
    %c0_30 = arith.constant 0 : index
    %35 = vector.load %arg3[%c1_27, %c2_28, %c0_29, %c0_30] : memref<3x3x4x128xbf16, #tpu.memory_space<vmem>>, vector<1x1x4x128xbf16>
    %36 = vector.shape_cast %35 : vector<1x1x4x128xbf16> to vector<4x128xbf16>
    %cst_31 = arith.constant dense<0.000000e+00> : vector<16x16x128xf32>
    %37 = tpu.matmul %34, %36, %cst_31 {dimension_numbers = #tpu.dot_dimension_numbers<[2], [0], [0, 1], [1], [0, 0, 0, 1, 1, 1], [], []>} : vector<16x16x4xbf16>, vector<4x128xbf16>, vector<16x16x128xf32> -> vector<16x16x128xf32>
    %38 = arith.addf %33, %37 : vector<16x16x128xf32>
    %c2_i32 = arith.constant 2 : i32
    %39 = arith.addi %1, %c2_i32 : i32
    %c0_32 = arith.constant 0 : index
    %40 = arith.index_cast %39 : i32 to index
    %c0_33 = arith.constant 0 : index
    %c0_34 = arith.constant 0 : index
    %41 = vector.load %arg2[%c0_32, %40, %c0_33, %c0_34] : memref<1x18x18x4xbf16, #tpu.memory_space<vmem>>, vector<1x16x18x4xbf16>
    %42 = vector.shape_cast %41 : vector<1x16x18x4xbf16> to vector<16x18x4xbf16>
    %43 = vector.extract_strided_slice %42 {offsets = [0, 0, 0], sizes = [16, 16, 4], strides = [1, 1, 1]} : vector<16x18x4xbf16> to vector<16x16x4xbf16>
    %c2_35 = arith.constant 2 : index
    %c0_36 = arith.constant 0 : index
    %c0_37 = arith.constant 0 : index
    %c0_38 = arith.constant 0 : index
    %44 = vector.load %arg3[%c2_35, %c0_36, %c0_37, %c0_38] : memref<3x3x4x128xbf16, #tpu.memory_space<vmem>>, vector<1x1x4x128xbf16>
    %45 = vector.shape_cast %44 : vector<1x1x4x128xbf16> to vector<4x128xbf16>
    %cst_39 = arith.constant dense<0.000000e+00> : vector<16x16x128xf32>
    %46 = tpu.matmul %43, %45, %cst_39 {dimension_numbers = #tpu.dot_dimension_numbers<[2], [0], [0, 1], [1], [0, 0, 0, 1, 1, 1], [], []>} : vector<16x16x4xbf16>, vector<4x128xbf16>, vector<16x16x128xf32> -> vector<16x16x128xf32>
    %47 = arith.addf %38, %46 : vector<16x16x128xf32>
    %48 = vector.extract_strided_slice %42 {offsets = [0, 1, 0], sizes = [16, 16, 4], strides = [1, 1, 1]} : vector<16x18x4xbf16> to vector<16x16x4xbf16>
    %c2_40 = arith.constant 2 : index
    %c1_41 = arith.constant 1 : index
    %c0_42 = arith.constant 0 : index
    %c0_43 = arith.constant 0 : index
    %49 = vector.load %arg3[%c2_40, %c1_41, %c0_42, %c0_43] : memref<3x3x4x128xbf16, #tpu.memory_space<vmem>>, vector<1x1x4x128xbf16>
    %50 = vector.shape_cast %49 : vector<1x1x4x128xbf16> to vector<4x128xbf16>
    %cst_44 = arith.constant dense<0.000000e+00> : vector<16x16x128xf32>
    %51 = tpu.matmul %48, %50, %cst_44 {dimension_numbers = #tpu.dot_dimension_numbers<[2], [0], [0, 1], [1], [0, 0, 0, 1, 1, 1], [], []>} : vector<16x16x4xbf16>, vector<4x128xbf16>, vector<16x16x128xf32> -> vector<16x16x128xf32>
    %52 = arith.addf %47, %51 : vector<16x16x128xf32>
    %53 = vector.extract_strided_slice %42 {offsets = [0, 2, 0], sizes = [16, 16, 4], strides = [1, 1, 1]} : vector<16x18x4xbf16> to vector<16x16x4xbf16>
    %c2_45 = arith.constant 2 : index
    %c2_46 = arith.constant 2 : index
    %c0_47 = arith.constant 0 : index
    %c0_48 = arith.constant 0 : index
    %54 = vector.load %arg3[%c2_45, %c2_46, %c0_47, %c0_48] : memref<3x3x4x128xbf16, #tpu.memory_space<vmem>>, vector<1x1x4x128xbf16>
    %55 = vector.shape_cast %54 : vector<1x1x4x128xbf16> to vector<4x128xbf16>
    %cst_49 = arith.constant dense<0.000000e+00> : vector<16x16x128xf32>
    %56 = tpu.matmul %53, %55, %cst_49 {dimension_numbers = #tpu.dot_dimension_numbers<[2], [0], [0, 1], [1], [0, 0, 0, 1, 1, 1], [], []>} : vector<16x16x4xbf16>, vector<4x128xbf16>, vector<16x16x128xf32> -> vector<16x16x128xf32>
    %57 = arith.addf %52, %56 : vector<16x16x128xf32>
    %c0_50 = arith.constant 0 : index
    %c0_51 = arith.constant 0 : index
    %58 = vector.load %arg4[%c0_50, %c0_51] : memref<1x128xf32, #tpu.memory_space<vmem>>, vector<1x128xf32>
    %59 = vector.shape_cast %58 : vector<1x128xf32> to vector<128xf32>
    %60 = vector.shape_cast %59 : vector<128xf32> to vector<1x1x128xf32>
    %61 = vector.broadcast %60 : vector<1x1x128xf32> to vector<16x16x128xf32>
    %62 = arith.addf %57, %61 : vector<16x16x128xf32>
    %c0_52 = arith.constant 0 : index
    %c0_53 = arith.constant 0 : index
    %c0_54 = arith.constant 0 : index
    %c0_55 = arith.constant 0 : index
    %63 = vector.load %arg5[%c0_52, %c0_53, %c0_54, %c0_55] : memref<1x16x16x128xf32, #tpu.memory_space<vmem>>, vector<1x16x16x128xf32>
    %64 = vector.shape_cast %63 : vector<1x16x16x128xf32> to vector<16x16x128xf32>
    %65 = vector.shape_cast %62 : vector<16x16x128xf32> to vector<1x16x16x128xf32>
    tpu.vector_store %arg5[%c0_52, %c0_53, %c0_54, %c0_55], %65 {strides = array<i32>} : memref<1x16x16x128xf32, #tpu.memory_space<vmem>>, vector<1x16x16x128xf32>,
    return
  }
  func.func @transform_0(%arg0: i32, %arg1: i32) -> (i32, i32, i32, i32) {
    %c0_i32 = arith.constant 0 : i32
    %c0_i32_0 = arith.constant 0 : i32
    %c0_i32_1 = arith.constant 0 : i32
    %c0_i32_2 = arith.constant 0 : i32
    return %arg0, %c0_i32, %c0_i32_0, %c0_i32_1 : i32, i32, i32, i32
  }
  func.func @transform_1(%arg0: i32, %arg1: i32) -> (i32, i32, i32, i32) {
    %c0_i32 = arith.constant 0 : i32
    %c0_i32_0 = arith.constant 0 : i32
    %c0_i32_1 = arith.constant 0 : i32
    %c0_i32_2 = arith.constant 0 : i32
    %c0_i32_3 = arith.constant 0 : i32
    return %c0_i32, %c0_i32_0, %c0_i32_1, %c0_i32_2 : i32, i32, i32, i32
  }
  func.func @transform_2(%arg0: i32, %arg1: i32) -> (i32, i32) {
    %c0_i32 = arith.constant 0 : i32
    %c0_i32_0 = arith.constant 0 : i32
    %c0_i32_1 = arith.constant 0 : i32
    return %c0_i32, %c0_i32_0 : i32, i32
  }
  func.func @transform_3(%arg0: i32, %arg1: i32) -> (i32, i32, i32, i32) {
    %c0_i32 = arith.constant 0 : i32
    %c0_i32_0 = arith.constant 0 : i32
    %c0_i32_1 = arith.constant 0 : i32
    return %arg0, %arg1, %c0_i32, %c0_i32_0 : i32, i32, i32, i32
  }
}

</mosaic_0001>

<llo_original>
// kernel: tpu_custom_call.1
$region0: #{tpu_custom_call.1}
  #allocation0 [shape = 'u32[]', space=smem, size = 0x4, offset = 0x4, fixed_abs, tag = 'smem constant byte address 0x4 - core index']
  #allocation1 [shape = 'u32[144,128]{1,0:T(1,128)}', space=vmem, size = 0x12000, scoped, tag = 'internal scratch']
  %s0 = inlined_call_operand.vmem [shape: bf16[2,18,18,4], index: 0, kind: input, shape index: {}]
  %s1 = inlined_call_operand.vmem [shape: bf16[3,3,4,128], index: 1, kind: input, shape index: {}]
  %s2 = inlined_call_operand.vmem [shape: f32[1,128], index: 2, kind: input, shape index: {}]
  %s3 = inlined_call_operand.hbm [shape: f32[2,16,16,128], index: 3, kind: output, shape index: {}]
  %s4 = sld [smem:[#allocation0]]
  $region45: #{tpu_custom_call.1} parent=0
    _
  %s6 = ssub.s32 1, %s4
  %s7 = scalar_select 0, %s6, %s4
  $region1: #{tpu_custom_call.1} parent=0
    #allocation2 [shape = 'u8[262144]{0}', space=vmem, size = 0x40000, scoped, tag = 'output window, operand 0']
    #allocation3 [shape = 's32[2]{0}', space=sflag, size = 0x8, scoped, tag = 'scoped memory for tpu_custom_call.1']
    %8 = vsyncpa [#allocation3], 0
    %s9 = scalar_lea.sflag [#allocation3], 1
    %10 = vsyncpa %s9, 0
    loop: start=0, step=1, limit=4
    $region2: #{tpu_custom_call.1} parent=1 // loop_pre_header
      _
    $region3: #{tpu_custom_call.1} parent=1 // loop_header
      %s12 = sphi 0, %s16
      %p13 = scmp.ge.s32.totalorder %s12, 4
      %s19 = sphi 0, %s31
      %s20 = sphi 0, %s27
      %s21 = sphi 0, %s19
      %s22 = sphi 0, %s20
      %s23 = sphi 0, %s21
      %s24 = sphi 0, %s22
      %s34 = sphi 0, %s36
      %s37 = sphi 0, %s34
      %s38 = sphi 0, %s37
      %s54 = sphi 0, %s38
      %s58 = sphi 0, %s58
      %s60 = sphi 0, %s58
      %s61 = sphi 0, %s60
      %s75 = sphi 0, %s61
      %s79 = sphi 0, %s79
      %s81 = sphi 0, %s79
      %s82 = sphi 0, %s81
      %s96 = sphi 0, %s82
      %s104 = sphi 0, %s106
      %s107 = sphi 0, %s104
      %s108 = sphi 0, %s107
      %s124 = sphi 0, %s108
    $region4: #{tpu_custom_call.1} parent=1 // loop_header_branch
      %15 = sbr.rel (%p13) target = $region8
    $region5: #{tpu_custom_call.1} parent=1 // loop_body
      %s17 = ssub.s32 %s12, 1
      %s18 = ssub.s32 %s12, 2
      %s25 = sadd.s32 1, %s20
      %p26 = scmp.ge.s32.totalorder %s25, 1
      %s27 = scalar_select %p26, 0, %s25
      %s28 = sadd.s32 1, %s19
      %s29 = scalar_select %p26, %s28, %s19
      %p30 = scmp.ge.s32.totalorder %s29, 2
      %s31 = scalar_select %p30, 0, %s29
      %s32 = ssub.s32 %s19, %s31
      %p33 = scmp.eq.s32.totalorder %s32, 0
      %s35 = sadd.s32 %s34, 1
      %s36 = scalar_select %p33, %s34, %s35
      %p39 = pneg %p33
      %p40 = scmp.eq.s32.totalorder %s12, 1
      %p41 = por %p39, %p40
      %p42 = scmp.ne.s32.totalorder %s34, %s37
      %p43 = scmp.eq.s32.totalorder %s12, 0
      %p44 = por %p42, %p43
      %p45 = scmp.ne.s32.totalorder %s34, %s37
      %p46 = scmp.eq.s32.totalorder %s17, 1
      %p47 = por %p45, %p46
      %p48 = scmp.ne.s32.totalorder %s37, %s38
      %p49 = scmp.eq.s32.totalorder %s17, 0
      %p50 = por %p48, %p49
      %p51 = scmp.ne.s32.totalorder %s37, %s38
      %p52 = scmp.eq.s32.totalorder %s18, 1
      %p53 = por %p51, %p52
      %p55 = scmp.ne.s32.totalorder %s38, %s54
      %p56 = scmp.eq.s32.totalorder %s18, 0
      %p57 = por %p55, %p56
      %s59 = sadd.s32 %s58, 1
      %p62 = scmp.eq.s32.totalorder %s12, 1
      %p63 = scmp.ne.s32.totalorder %s58, %s60
      %p64 = scmp.eq.s32.totalorder %s12, 0
      %p65 = por %p63, %p64
      %p66 = scmp.ne.s32.totalorder %s58, %s60
      %p67 = scmp.eq.s32.totalorder %s17, 1
      %p68 = por %p66, %p67
      %p69 = scmp.ne.s32.totalorder %s60, %s61
      %p70 = scmp.eq.s32.totalorder %s17, 0
      %p71 = por %p69, %p70
      %p72 = scmp.ne.s32.totalorder %s60, %s61
      %p73 = scmp.eq.s32.totalorder %s18, 1
      %p74 = por %p72, %p73
      %p76 = scmp.ne.s32.totalorder %s61, %s75
      %p77 = scmp.eq.s32.totalorder %s18, 0
      %p78 = por %p76, %p77
      %s80 = sadd.s32 %s79, 1
      %p83 = scmp.eq.s32.totalorder %s12, 1
      %p84 = scmp.ne.s32.totalorder %s79, %s81
      %p85 = scmp.eq.s32.totalorder %s12, 0
      %p86 = por %p84, %p85
      %p87 = scmp.ne.s32.totalorder %s79, %s81
      %p88 = scmp.eq.s32.totalorder %s17, 1
      %p89 = por %p87, %p88
      %p90 = scmp.ne.s32.totalorder %s81, %s82
      %p91 = scmp.eq.s32.totalorder %s17, 0
      %p92 = por %p90, %p91
      %p93 = scmp.ne.s32.totalorder %s81, %s82
      %p94 = scmp.eq.s32.totalorder %s18, 1
      %p95 = por %p93, %p94
      %p97 = scmp.ne.s32.totalorder %s82, %s96
      %p98 = scmp.eq.s32.totalorder %s18, 0
      %p99 = por %p97, %p98
      %s100 = ssub.s32 %s19, %s31
      %s101 = ssub.s32 %s20, %s27
      %s102 = sor.u32 %s100, %s101
      %p103 = scmp.eq.s32.totalorder %s102, 0
      %s105 = sadd.s32 %s104, 1
      %s106 = scalar_select %p103, %s104, %s105
      %p109 = pneg %p103
      %p110 = scmp.eq.s32.totalorder %s12, 1
      %p111 = por %p109, %p110
      %p112 = scmp.ne.s32.totalorder %s104, %s107
      %p113 = scmp.eq.s32.totalorder %s12, 0
      %p114 = por %p112, %p113
      %p115 = scmp.ne.s32.totalorder %s104, %s107
      %p116 = scmp.eq.s32.totalorder %s17, 1
      %p117 = por %p115, %p116
      %p118 = scmp.ne.s32.totalorder %s107, %s108
      %p119 = scmp.eq.s32.totalorder %s17, 0
      %p120 = por %p118, %p119
      %p121 = scmp.ne.s32.totalorder %s107, %s108
      %p122 = scmp.eq.s32.totalorder %s18, 1
      %p123 = por %p121, %p122
      %p125 = scmp.ne.s32.totalorder %s108, %s124
      %p126 = scmp.eq.s32.totalorder %s18, 0
      %p127 = por %p125, %p126
      %p128 = scmp.le.s32.totalorder 1, %s12
      %p129 = scmp.lt.s32.totalorder %s12, 3
      %p130 = pnand %p128, %p129
      %p131 = pneg %p130
      // Predicated region
      $region9: #{tpu_custom_call.1} parent=5 // pred_check
        _
      $region10: #{tpu_custom_call.1} parent=5 // pred_check_branch
        %133 = sbr.rel (%p130) target = $region12
      $region11: #{tpu_custom_call.1} parent=5 // pred_region
        %s134 = ssub.s32 %s12, 1
        // Predicated region
        $region13: #{tpu_custom_call.1} parent=11 // pred_check
          %p135 = pneg %p71
        $region14: #{tpu_custom_call.1} parent=11 // pred_check_branch
          %137 = sbr.rel (%p135) target = $region16
        $region15: #{tpu_custom_call.1} parent=11 // pred_region
          _
        $region16: #{tpu_custom_call.1} parent=11 // pred_fallthru
          _
        // Predicated region
        $region17: #{tpu_custom_call.1} parent=11 // pred_check
          %p138 = pneg %p92
        $region18: #{tpu_custom_call.1} parent=11 // pred_check_branch
          %140 = sbr.rel (%p138) target = $region20
        $region19: #{tpu_custom_call.1} parent=11 // pred_region
          _
        $region20: #{tpu_custom_call.1} parent=11 // pred_fallthru
          _
      $region12: #{tpu_custom_call.1} parent=5 // pred_fallthru
        _
      %p141 = scmp.lt.s32.totalorder %s12, 2
      // Predicated region
      $region21: #{tpu_custom_call.1} parent=5 // pred_check
        %p142 = pneg %p141
      $region22: #{tpu_custom_call.1} parent=5 // pred_check_branch
        %144 = sbr.rel (%p142) target = $region24
      $region23: #{tpu_custom_call.1} parent=5 // pred_region
        // Predicated region
        $region25: #{tpu_custom_call.1} parent=23 // pred_check
          %p145 = pneg %p44
        $region26: #{tpu_custom_call.1} parent=23 // pred_check_branch
          %147 = sbr.rel (%p145) target = $region28
        $region27: #{tpu_custom_call.1} parent=23 // pred_region
          %p148 = scmp.lt.s32.totalorder %s19, 1
          %s149 = scalar_select %p148, %s19, 1
          %s150 = smul.addr %s149, 54
          %s151 = smul.addr %s150, 4
          %s152 = scalar_lea.vmem %s0, %s151
        $region28: #{tpu_custom_call.1} parent=23 // pred_fallthru
          _
      $region24: #{tpu_custom_call.1} parent=5 // pred_fallthru
        _
      %p153 = scmp.le.s32.totalorder 1, %s12
      %p154 = scmp.lt.s32.totalorder %s12, 3
      %p155 = pnand %p153, %p154
      %p156 = pneg %p155
      // Predicated region
      $region29: #{tpu_custom_call.1} parent=5 // pred_check
        _
      $region30: #{tpu_custom_call.1} parent=5 // pred_check_branch
        %158 = sbr.rel (%p155) target = $region32
      $region31: #{tpu_custom_call.1} parent=5 // pred_region
        %s159 = ssub.s32 %s12, 1
        %p160 = scmp.lt.s32.totalorder %s21, 1
        %s161 = scalar_select %p160, %s21, 1
        %s162 = smul.addr %s161, 54
        %s163 = smul.addr %s162, 4
        %s164 = scalar_lea.vmem %s0, %s163
        %p165 = pneg %p50
        %p166 = pneg %p47
        %p167 = pneg %p71
        %p168 = pneg %p68
        %p169 = pneg %p92
        %p170 = pneg %p89
        %p171 = pneg %p120
        %p172 = pneg %p117
        %s173 = sand.u32 %s107, 1
        %s174 = scalar_lea.sflag [#allocation3], %s173
        %s175 = sand.u32 %s107, 1
        %s176 = smul.addr %s175, 256
        %s177 = scalar_lea.vmem [#allocation2], %s176
        %p178 = scmp.lt.s32.totalorder %s21, 1
        %s179 = scalar_select %p178, %s21, 1
        %s180 = smul.addr %s179, 54
        %s181 = smul.addr %s180, 4
        %s182 = scalar_lea.vmem %s0, %s181
        %s183 = smul.u32 16, %s22
        %s185 = smul.u32 %s22, 16
        %s186 = smul.u32 %s185, 3
        %s187 = smul.addr %s186, 4
        %s188 = scalar_lea.vmem %s182, %s187
        %v189 = vld [vmem:[%s188] sm:$0xf]
        %v190 = vld [vmem:[%s188 + $0x4] sm:$0xf]
        %v191 = vld [vmem:[%s188 + $0x8] sm:$0x1]
        %v192 = vld [vmem:[%s188 + $0xc] sm:$0xf]
        %v193 = vld [vmem:[%s188 + $0x10] sm:$0xf]
        %v194 = vld [vmem:[%s188 + $0x14] sm:$0x1]
        %v195 = vld [vmem:[%s188 + $0x18] sm:$0xf]
        %v196 = vld [vmem:[%s188 + $0x1c] sm:$0xf]
        %v197 = vld [vmem:[%s188 + $0x20] sm:$0x1]
        %v198 = vld [vmem:[%s188 + $0x24] sm:$0xf]
        %v199 = vld [vmem:[%s188 + $0x28] sm:$0xf]
        %v200 = vld [vmem:[%s188 + $0x2c] sm:$0x1]
        %v201 = vld [vmem:[%s188 + $0x30] sm:$0xf]
        %v202 = vld [vmem:[%s188 + $0x34] sm:$0xf]
        %v203 = vld [vmem:[%s188 + $0x38] sm:$0x1]
        %v204 = vld [vmem:[%s188 + $0x3c] sm:$0xf]
        %v205 = vld [vmem:[%s188 + $0x40] sm:$0xf]
        %v206 = vld [vmem:[%s188 + $0x44] sm:$0x1]
        %v207 = vld [vmem:[%s188 + $0x48] sm:$0xf]
        %v208 = vld [vmem:[%s188 + $0x4c] sm:$0xf]
        %v209 = vld [vmem:[%s188 + $0x50] sm:$0x1]
        %v210 = vld [vmem:[%s188 + $0x54] sm:$0xf]
        %v211 = vld [vmem:[%s188 + $0x58] sm:$0xf]
        %v212 = vld [vmem:[%s188 + $0x5c] sm:$0x1]
        %v213 = vld [vmem:[%s188 + $0x60] sm:$0xf]
        %v214 = vld [vmem:[%s188 + $0x64] sm:$0xf]
        %v215 = vld [vmem:[%s188 + $0x68] sm:$0x1]
        %v216 = vld [vmem:[%s188 + $0x6c] sm:$0xf]
        %v217 = vld [vmem:[%s188 + $0x70] sm:$0xf]
        %v218 = vld [vmem:[%s188 + $0x74] sm:$0x1]
        %v219 = vld [vmem:[%s188 + $0x78] sm:$0xf]
        %v220 = vld [vmem:[%s188 + $0x7c] sm:$0xf]
        %v221 = vld [vmem:[%s188 + $0x80] sm:$0x1]
        %v222 = vld [vmem:[%s188 + $0x84] sm:$0xf]
        %v223 = vld [vmem:[%s188 + $0x88] sm:$0xf]
        %v224 = vld [vmem:[%s188 + $0x8c] sm:$0x1]
        %v225 = vld [vmem:[%s188 + $0x90] sm:$0xf]
        %v226 = vld [vmem:[%s188 + $0x94] sm:$0xf]
        %v227 = vld [vmem:[%s188 + $0x98] sm:$0x1]
        %v228 = vld [vmem:[%s188 + $0x9c] sm:$0xf]
        %v229 = vld [vmem:[%s188 + $0xa0] sm:$0xf]
        %v230 = vld [vmem:[%s188 + $0xa4] sm:$0x1]
        %v231 = vld [vmem:[%s188 + $0xa8] sm:$0xf]
        %v232 = vld [vmem:[%s188 + $0xac] sm:$0xf]
        %v233 = vld [vmem:[%s188 + $0xb0] sm:$0x1]
        %v234 = vld [vmem:[%s188 + $0xb4] sm:$0xf]
        %v235 = vld [vmem:[%s188 + $0xb8] sm:$0xf]
        %v236 = vld [vmem:[%s188 + $0xbc] sm:$0x1]
        %v237 = vld [vmem:[%s1] sm:$0x3]
        %s238 = scalar_lea.vmem %s1, 2
        %v239 = vld [vmem:[%s238] sm:$0x3]
        %vm240 = vsmask.f32 3328
        %vm241 = vsmask.f32 7440
        %vm242 = vmor %vm240, %vm241
        %v244 = vshrl.u32 %v189, 16
        %v246 = vrot.slane %v244, 4
        %v247 = vshll.u32 %v189, 16
        %v249 = vrot.slane %v247, 5
        %v250 = vor.u32 %v246, %v249
        %v251 = vrot.slane %v250, 4
        %v253 = vshll.u32 %v190, 16
        %v255 = vrot.slane %v253, 5
        %v256 = vsel %vm242, %v251, %v255
        %v257 = vshrl.u32 %v190, 16
        %v259 = vrot.slane %v257, 4
        %v260 = vor.u32 %v259, %v255
        %v261 = vrot.slane %v260, 4
        %v263 = vshll.u32 %v191, 16
        %v265 = vrot.slane %v263, 5
        %v266 = vsel %vm242, %v261, %v265
        %v268 = vshrl.u32 %v192, 16
        %v270 = vrot.slane %v268, 4
        %v271 = vshll.u32 %v192, 16
        %v273 = vrot.slane %v271, 5
        %v274 = vor.u32 %v270, %v273
        %v275 = vrot.slane %v274, 4
        %v277 = vshll.u32 %v193, 16
        %v279 = vrot.slane %v277, 5
        %v280 = vsel %vm242, %v275, %v279
        %v281 = vshrl.u32 %v193, 16
        %v283 = vrot.slane %v281, 4
        %v284 = vor.u32 %v283, %v279
        %v285 = vrot.slane %v284, 4
        %v287 = vshll.u32 %v194, 16
        %v289 = vrot.slane %v287, 5
        %v290 = vsel %vm242, %v285, %v289
        %v292 = vshrl.u32 %v195, 16
        %v294 = vrot.slane %v292, 4
        %v295 = vshll.u32 %v195, 16
        %v297 = vrot.slane %v295, 5
        %v298 = vor.u32 %v294, %v297
        %v299 = vrot.slane %v298, 4
        %v301 = vshll.u32 %v196, 16
        %v303 = vrot.slane %v301, 5
        %v304 = vsel %vm242, %v299, %v303
        %v305 = vshrl.u32 %v196, 16
        %v307 = vrot.slane %v305, 4
        %v308 = vor.u32 %v307, %v303
        %v309 = vrot.slane %v308, 4
        %v311 = vshll.u32 %v197, 16
        %v313 = vrot.slane %v311, 5
        %v314 = vsel %vm242, %v309, %v313
        %v316 = vshrl.u32 %v198, 16
        %v318 = vrot.slane %v316, 4
        %v319 = vshll.u32 %v198, 16
        %v321 = vrot.slane %v319, 5
        %v322 = vor.u32 %v318, %v321
        %v323 = vrot.slane %v322, 4
        %v325 = vshll.u32 %v199, 16
        %v327 = vrot.slane %v325, 5
        %v328 = vsel %vm242, %v323, %v327
        %v329 = vshrl.u32 %v199, 16
        %v331 = vrot.slane %v329, 4
        %v332 = vor.u32 %v331, %v327
        %v333 = vrot.slane %v332, 4
        %v335 = vshll.u32 %v200, 16
        %v337 = vrot.slane %v335, 5
        %v338 = vsel %vm242, %v333, %v337
        %v340 = vshrl.u32 %v201, 16
        %v342 = vrot.slane %v340, 4
        %v343 = vshll.u32 %v201, 16
        %v345 = vrot.slane %v343, 5
        %v346 = vor.u32 %v342, %v345
        %v347 = vrot.slane %v346, 4
        %v349 = vshll.u32 %v202, 16
        %v351 = vrot.slane %v349, 5
        %v352 = vsel %vm242, %v347, %v351
        %v353 = vshrl.u32 %v202, 16
        %v355 = vrot.slane %v353, 4
        %v356 = vor.u32 %v355, %v351
        %v357 = vrot.slane %v356, 4
        %v359 = vshll.u32 %v203, 16
        %v361 = vrot.slane %v359, 5
        %v362 = vsel %vm242, %v357, %v361
        %v364 = vshrl.u32 %v204, 16
        %v366 = vrot.slane %v364, 4
        %v367 = vshll.u32 %v204, 16
        %v369 = vrot.slane %v367, 5
        %v370 = vor.u32 %v366, %v369
        %v371 = vrot.slane %v370, 4
        %v373 = vshll.u32 %v205, 16
        %v375 = vrot.slane %v373, 5
        %v376 = vsel %vm242, %v371, %v375
        %v377 = vshrl.u32 %v205, 16
        %v379 = vrot.slane %v377, 4
        %v380 = vor.u32 %v379, %v375
        %v381 = vrot.slane %v380, 4
        %v383 = vshll.u32 %v206, 16
        %v385 = vrot.slane %v383, 5
        %v386 = vsel %vm242, %v381, %v385
        %v388 = vshrl.u32 %v207, 16
        %v390 = vrot.slane %v388, 4
        %v391 = vshll.u32 %v207, 16
        %v393 = vrot.slane %v391, 5
        %v394 = vor.u32 %v390, %v393
        %v395 = vrot.slane %v394, 4
        %v397 = vshll.u32 %v208, 16
        %v399 = vrot.slane %v397, 5
        %v400 = vsel %vm242, %v395, %v399
        %v401 = vshrl.u32 %v208, 16
        %v403 = vrot.slane %v401, 4
        %v404 = vor.u32 %v403, %v399
        %v405 = vrot.slane %v404, 4
        %v407 = vshll.u32 %v209, 16
        %v409 = vrot.slane %v407, 5
        %v410 = vsel %vm242, %v405, %v409
        %v412 = vshrl.u32 %v210, 16
        %v414 = vrot.slane %v412, 4
        %v415 = vshll.u32 %v210, 16
        %v417 = vrot.slane %v415, 5
        %v418 = vor.u32 %v414, %v417
        %v419 = vrot.slane %v418, 4
        %v421 = vshll.u32 %v211, 16
        %v423 = vrot.slane %v421, 5
        %v424 = vsel %vm242, %v419, %v423
        %v425 = vshrl.u32 %v211, 16
        %v427 = vrot.slane %v425, 4
        %v428 = vor.u32 %v427, %v423
        %v429 = vrot.slane %v428, 4
        %v431 = vshll.u32 %v212, 16
        %v433 = vrot.slane %v431, 5
        %v434 = vsel %vm242, %v429, %v433
        %v436 = vshrl.u32 %v213, 16
        %v438 = vrot.slane %v436, 4
        %v439 = vshll.u32 %v213, 16
        %v441 = vrot.slane %v439, 5
        %v442 = vor.u32 %v438, %v441
        %v443 = vrot.slane %v442, 4
        %v445 = vshll.u32 %v214, 16
        %v447 = vrot.slane %v445, 5
        %v448 = vsel %vm242, %v443, %v447
        %v449 = vshrl.u32 %v214, 16
        %v451 = vrot.slane %v449, 4
        %v452 = vor.u32 %v451, %v447
        %v453 = vrot.slane %v452, 4
        %v455 = vshll.u32 %v215, 16
        %v457 = vrot.slane %v455, 5
        %v458 = vsel %vm242, %v453, %v457
        %v460 = vshrl.u32 %v216, 16
        %v462 = vrot.slane %v460, 4
        %v463 = vshll.u32 %v216, 16
        %v465 = vrot.slane %v463, 5
        %v466 = vor.u32 %v462, %v465
        %v467 = vrot.slane %v466, 4
        %v469 = vshll.u32 %v217, 16
        %v471 = vrot.slane %v469, 5
        %v472 = vsel %vm242, %v467, %v471
        %v473 = vshrl.u32 %v217, 16
        %v475 = vrot.slane %v473, 4
        %v476 = vor.u32 %v475, %v471
        %v477 = vrot.slane %v476, 4
        %v479 = vshll.u32 %v218, 16
        %v481 = vrot.slane %v479, 5
        %v482 = vsel %vm242, %v477, %v481
        %v484 = vshrl.u32 %v219, 16
        %v486 = vrot.slane %v484, 4
        %v487 = vshll.u32 %v219, 16
        %v489 = vrot.slane %v487, 5
        %v490 = vor.u32 %v486, %v489
        %v491 = vrot.slane %v490, 4
        %v493 = vshll.u32 %v220, 16
        %v495 = vrot.slane %v493, 5
        %v496 = vsel %vm242, %v491, %v495
        %v497 = vshrl.u32 %v220, 16
        %v499 = vrot.slane %v497, 4
        %v500 = vor.u32 %v499, %v495
        %v501 = vrot.slane %v500, 4
        %v503 = vshll.u32 %v221, 16
        %v505 = vrot.slane %v503, 5
        %v506 = vsel %vm242, %v501, %v505
        %v508 = vshrl.u32 %v222, 16
        %v510 = vrot.slane %v508, 4
        %v511 = vshll.u32 %v222, 16
        %v513 = vrot.slane %v511, 5
        %v514 = vor.u32 %v510, %v513
        %v515 = vrot.slane %v514, 4
        %v517 = vshll.u32 %v223, 16
        %v519 = vrot.slane %v517, 5
        %v520 = vsel %vm242, %v515, %v519
        %v521 = vshrl.u32 %v223, 16
        %v523 = vrot.slane %v521, 4
        %v524 = vor.u32 %v523, %v519
        %v525 = vrot.slane %v524, 4
        %v527 = vshll.u32 %v224, 16
        %v529 = vrot.slane %v527, 5
        %v530 = vsel %vm242, %v525, %v529
        %v532 = vshrl.u32 %v225, 16
        %v534 = vrot.slane %v532, 4
        %v535 = vshll.u32 %v225, 16
        %v537 = vrot.slane %v535, 5
        %v538 = vor.u32 %v534, %v537
        %v539 = vrot.slane %v538, 4
        %v541 = vshll.u32 %v226, 16
        %v543 = vrot.slane %v541, 5
        %v544 = vsel %vm242, %v539, %v543
        %v545 = vshrl.u32 %v226, 16
        %v547 = vrot.slane %v545, 4
        %v548 = vor.u32 %v547, %v543
        %v549 = vrot.slane %v548, 4
        %v551 = vshll.u32 %v227, 16
        %v553 = vrot.slane %v551, 5
        %v554 = vsel %vm242, %v549, %v553
        %v556 = vshrl.u32 %v228, 16
        %v558 = vrot.slane %v556, 4
        %v559 = vshll.u32 %v228, 16
        %v561 = vrot.slane %v559, 5
        %v562 = vor.u32 %v558, %v561
        %v563 = vrot.slane %v562, 4
        %v565 = vshll.u32 %v229, 16
        %v567 = vrot.slane %v565, 5
        %v568 = vsel %vm242, %v563, %v567
        %v569 = vshrl.u32 %v229, 16
        %v571 = vrot.slane %v569, 4
        %v572 = vor.u32 %v571, %v567
        %v573 = vrot.slane %v572, 4
        %v575 = vshll.u32 %v230, 16
        %v577 = vrot.slane %v575, 5
        %v578 = vsel %vm242, %v573, %v577
        %v580 = vshrl.u32 %v231, 16
        %v582 = vrot.slane %v580, 4
        %v583 = vshll.u32 %v231, 16
        %v585 = vrot.slane %v583, 5
        %v586 = vor.u32 %v582, %v585
        %v587 = vrot.slane %v586, 4
        %v589 = vshll.u32 %v232, 16
        %v591 = vrot.slane %v589, 5
        %v592 = vsel %vm242, %v587, %v591
        %v593 = vshrl.u32 %v232, 16
        %v595 = vrot.slane %v593, 4
        %v596 = vor.u32 %v595, %v591
        %v597 = vrot.slane %v596, 4
        %v599 = vshll.u32 %v233, 16
        %v601 = vrot.slane %v599, 5
        %v602 = vsel %vm242, %v597, %v601
        %v604 = vshrl.u32 %v234, 16
        %v606 = vrot.slane %v604, 4
        %v607 = vshll.u32 %v234, 16
        %v609 = vrot.slane %v607, 5
        %v610 = vor.u32 %v606, %v609
        %v611 = vrot.slane %v610, 4
        %v613 = vshll.u32 %v235, 16
        %v615 = vrot.slane %v613, 5
        %v616 = vsel %vm242, %v611, %v615
        %v617 = vshrl.u32 %v235, 16
        %v619 = vrot.slane %v617, 4
        %v620 = vor.u32 %v619, %v615
        %v621 = vrot.slane %v620, 4
        %v623 = vshll.u32 %v236, 16
        %v625 = vrot.slane %v623, 5
        %v626 = vsel %vm242, %v621, %v625
        %v627 = vunpack.c.l.b16 %v256
        %v628 = vunpack.c.l.b16 %v266
        %v629 = vunpack.c.l.b16 %v280
        %v630 = vunpack.c.l.b16 %v290
        %v631 = vunpack.c.l.b16 %v304
        %v632 = vunpack.c.l.b16 %v314
        %v633 = vunpack.c.l.b16 %v328
        %v634 = vunpack.c.l.b16 %v338
        %v635 = vunpack.c.l.b16 %v352
        %v636 = vunpack.c.l.b16 %v362
        %v637 = vunpack.c.l.b16 %v376
        %v638 = vunpack.c.l.b16 %v386
        %v639 = vunpack.c.l.b16 %v400
        %v640 = vunpack.c.l.b16 %v410
        %v641 = vunpack.c.l.b16 %v424
        %v642 = vunpack.c.l.b16 %v434
        %v643 = vunpack.c.l.b16 %v448
        %v644 = vunpack.c.l.b16 %v458
        %v645 = vunpack.c.l.b16 %v472
        %v646 = vunpack.c.l.b16 %v482
        %v647 = vunpack.c.l.b16 %v496
        %v648 = vunpack.c.l.b16 %v506
        %v649 = vunpack.c.l.b16 %v520
        %v650 = vunpack.c.l.b16 %v530
        %v651 = vunpack.c.l.b16 %v544
        %v652 = vunpack.c.l.b16 %v554
        %v653 = vunpack.c.l.b16 %v568
        %v654 = vunpack.c.l.b16 %v578
        %v655 = vunpack.c.l.b16 %v592
        %v656 = vunpack.c.l.b16 %v602
        %v657 = vunpack.c.l.b16 %v616
        %v658 = vunpack.c.l.b16 %v626
        %v659 = vpack.c.b16 %v628, %v627
        %v660 = vpack.c.b16 %v630, %v629
        %v661 = vpack.c.b16 %v632, %v631
        %v662 = vpack.c.b16 %v634, %v633
        %v663 = vpack.c.b16 %v636, %v635
        %v664 = vpack.c.b16 %v638, %v637
        %v665 = vpack.c.b16 %v640, %v639
        %v666 = vpack.c.b16 %v642, %v641
        %v667 = vpack.c.b16 %v644, %v643
        %v668 = vpack.c.b16 %v646, %v645
        %v669 = vpack.c.b16 %v648, %v647
        %v670 = vpack.c.b16 %v650, %v649
        %v671 = vpack.c.b16 %v652, %v651
        %v672 = vpack.c.b16 %v654, %v653
        %v673 = vpack.c.b16 %v656, %v655
        %v674 = vpack.c.b16 %v658, %v657
        %vm675 = vcmask 31744
        %v677 = vsel %vm675, %v659, 0
        %v680 = vsel %vm675, %v660, 0
        %v683 = vsel %vm675, %v661, 0
        %v686 = vsel %vm675, %v662, 0
        %v689 = vsel %vm675, %v663, 0
        %v692 = vsel %vm675, %v664, 0
        %v695 = vsel %vm675, %v665, 0
        %v698 = vsel %vm675, %v666, 0
        %v701 = vsel %vm675, %v667, 0
        %v704 = vsel %vm675, %v668, 0
        %v707 = vsel %vm675, %v669, 0
        %v710 = vsel %vm675, %v670, 0
        %v713 = vsel %vm675, %v671, 0
        %v716 = vsel %vm675, %v672, 0
        %v719 = vsel %vm675, %v673, 0
        %v722 = vsel %vm675, %v674, 0
        %vm724 = vcmask 1041408
        %v726 = vsel %vm724, %v239, 0
        %728 = vmatprep.subr.bf16.mxu0 0
        %729 = vmatpush1.bf16.msra.mxu0 %v726
        %730 = vmatprep.subr.bf16.mxu0 0
        %731 = vmatpush1.bf16.msra.mxu0 0
        %732 = vmatprep.subr.bf16.mxu0 0
        %733 = vmatpush1.bf16.msra.mxu0 0
        %734 = vmatprep.subr.bf16.mxu0 0
        %735 = vmatpush1.bf16.msra.mxu0 0
        %736 = vmatprep.subr.bf16.mxu0 0
        %737 = vmatpush1.bf16.msra.mxu0 0
        %738 = vmatprep.subr.bf16.mxu0 0
        %739 = vmatpush1.bf16.msra.mxu0 0
        %740 = vmatprep.subr.bf16.mxu0 0
        %741 = vmatpush1.bf16.msra.mxu0 0
        %742 = vmatprep.subr.bf16.mxu0 0
        %743 = vmatpush1.bf16.msra.mxu0 0
        %744 = vmatprep.subr.bf16.mxu0 0
        %745 = vmatpush1.bf16.msra.mxu0 0
        %746 = vmatprep.subr.bf16.mxu0 0
        %747 = vmatpush1.bf16.msra.mxu0 0
        %748 = vmatprep.subr.bf16.mxu0 0
        %749 = vmatpush1.bf16.msra.mxu0 0
        %750 = vmatprep.subr.bf16.mxu0 0
        %751 = vmatpush1.bf16.msra.mxu0 0
        %752 = vmatprep.subr.bf16.mxu0 0
        %753 = vmatpush1.bf16.msra.mxu0 0
        %754 = vmatprep.subr.bf16.mxu0 0
        %755 = vmatpush1.bf16.msra.mxu0 0
        %756 = vmatprep.subr.bf16.mxu0 0
        %757 = vmatpush1.bf16.msra.mxu0 0
        %758 = vmatprep.subr.bf16.mxu0 0
        %759 = vmatpush1.bf16.msra.mxu0 0
        %760 = vmatprep.mubr.bf16.mxu0 0
        %761 = vmatmul.mubr.bf16.gmra.mrb[0].mxu0 %v677
        %v762 = vpop.f32.mrb[0].mxu0
        %v763 = vadd.f32 0.0, %v762
        %v764 = vpop.f32.mrb[0].mxu0
        %v765 = vpop.f32.mrb[0].mxu0
        %v766 = vadd.f32 0.0, %v765
        %v767 = vpop.f32.mrb[0].mxu0
        %768 = vmatprep.mubr.bf16.mxu0 0
        %769 = vmatmul.mubr.bf16.gmra.mrb[0].mxu0 %v680
        %v770 = vpop.f32.mrb[0].mxu0
        %v771 = vadd.f32 0.0, %v770
        %v772 = vpop.f32.mrb[0].mxu0
        %v773 = vpop.f32.mrb[0].mxu0
        %v774 = vadd.f32 0.0, %v773
        %v775 = vpop.f32.mrb[0].mxu0
        %776 = vmatprep.mubr.bf16.mxu0 0
        %777 = vmatmul.mubr.bf16.gmra.mrb[0].mxu0 %v683
        %v778 = vpop.f32.mrb[0].mxu0
        %v779 = vadd.f32 0.0, %v778
        %v780 = vpop.f32.mrb[0].mxu0
        %v781 = vpop.f32.mrb[0].mxu0
        %v782 = vadd.f32 0.0, %v781
        %v783 = vpop.f32.mrb[0].mxu0
        %784 = vmatprep.mubr.bf16.mxu0 0
        %785 = vmatmul.mubr.bf16.gmra.mrb[0].mxu0 %v686
        %v786 = vpop.f32.mrb[0].mxu0
        %v787 = vadd.f32 0.0, %v786
        %v788 = vpop.f32.mrb[0].mxu0
        %v789 = vpop.f32.mrb[0].mxu0
        %v790 = vadd.f32 0.0, %v789
        %v791 = vpop.f32.mrb[0].mxu0
        %792 = vmatprep.mubr.bf16.mxu0 0
        %793 = vmatmul.mubr.bf16.gmra.mrb[0].mxu0 %v689
        %v794 = vpop.f32.mrb[0].mxu0
        %v795 = vadd.f32 0.0, %v794
        %v796 = vpop.f32.mrb[0].mxu0
        %v797 = vpop.f32.mrb[0].mxu0
        %v798 = vadd.f32 0.0, %v797
        %v799 = vpop.f32.mrb[0].mxu0
        %800 = vmatprep.mubr.bf16.mxu0 0
        %801 = vmatmul.mubr.bf16.gmra.mrb[0].mxu0 %v692
        %v802 = vpop.f32.mrb[0].mxu0
        %v803 = vadd.f32 0.0, %v802
        %v804 = vpop.f32.mrb[0].mxu0
        %v805 = vpop.f32.mrb[0].mxu0
        %v806 = vadd.f32 0.0, %v805
        %v807 = vpop.f32.mrb[0].mxu0
        %808 = vmatprep.mubr.bf16.mxu0 0
        %809 = vmatmul.mubr.bf16.gmra.mrb[0].mxu0 %v695
        %v810 = vpop.f32.mrb[0].mxu0
        %v811 = vadd.f32 0.0, %v810
        %v812 = vpop.f32.mrb[0].mxu0
        %v813 = vpop.f32.mrb[0].mxu0
        %v814 = vadd.f32 0.0, %v813
        %v815 = vpop.f32.mrb[0].mxu0
        %816 = vmatprep.mubr.bf16.mxu0 0
        %817 = vmatmul.mubr.bf16.gmra.mrb[0].mxu0 %v698
        %v818 = vpop.f32.mrb[0].mxu0
        %v819 = vadd.f32 0.0, %v818
        %v820 = vpop.f32.mrb[0].mxu0
        %v821 = vpop.f32.mrb[0].mxu0
        %v822 = vadd.f32 0.0, %v821
        %v823 = vpop.f32.mrb[0].mxu0
        %824 = vmatprep.mubr.bf16.mxu0 0
        %825 = vmatmul.mubr.bf16.gmra.mrb[0].mxu0 %v701
        %v826 = vpop.f32.mrb[0].mxu0
        %v827 = vadd.f32 0.0, %v826
        %v828 = vpop.f32.mrb[0].mxu0
        %v829 = vpop.f32.mrb[0].mxu0
        %v830 = vadd.f32 0.0, %v829
        %v831 = vpop.f32.mrb[0].mxu0
        %832 = vmatprep.mubr.bf16.mxu0 0
        %833 = vmatmul.mubr.bf16.gmra.mrb[0].mxu0 %v704
        %v834 = vpop.f32.mrb[0].mxu0
        %v835 = vadd.f32 0.0, %v834
        %v836 = vpop.f32.mrb[0].mxu0
        %v837 = vpop.f32.mrb[0].mxu0
        %v838 = vadd.f32 0.0, %v837
        %v839 = vpop.f32.mrb[0].mxu0
        %840 = vmatprep.mubr.bf16.mxu0 0
        %841 = vmatmul.mubr.bf16.gmra.mrb[0].mxu0 %v707
        %v842 = vpop.f32.mrb[0].mxu0
        %v843 = vadd.f32 0.0, %v842
        %v844 = vpop.f32.mrb[0].mxu0
        %v845 = vpop.f32.mrb[0].mxu0
        %v846 = vadd.f32 0.0, %v845
        %v847 = vpop.f32.mrb[0].mxu0
        %848 = vmatprep.mubr.bf16.mxu0 0
        %849 = vmatmul.mubr.bf16.gmra.mrb[0].mxu0 %v710
        %v850 = vpop.f32.mrb[0].mxu0
        %v851 = vadd.f32 0.0, %v850
        %v852 = vpop.f32.mrb[0].mxu0
        %v853 = vpop.f32.mrb[0].mxu0
        %v854 = vadd.f32 0.0, %v853
        %v855 = vpop.f32.mrb[0].mxu0
        %856 = vmatprep.mubr.bf16.mxu0 0
        %857 = vmatmul.mubr.bf16.gmra.mrb[0].mxu0 %v713
        %v858 = vpop.f32.mrb[0].mxu0
        %v859 = vadd.f32 0.0, %v858
        %v860 = vpop.f32.mrb[0].mxu0
        %v861 = vpop.f32.mrb[0].mxu0
        %v862 = vadd.f32 0.0, %v861
        %v863 = vpop.f32.mrb[0].mxu0
        %864 = vmatprep.mubr.bf16.mxu0 0
        %865 = vmatmul.mubr.bf16.gmra.mrb[0].mxu0 %v716
        %v866 = vpop.f32.mrb[0].mxu0
        %v867 = vadd.f32 0.0, %v866
        %v868 = vpop.f32.mrb[0].mxu0
        %v869 = vpop.f32.mrb[0].mxu0
        %v870 = vadd.f32 0.0, %v869
        %v871 = vpop.f32.mrb[0].mxu0
        %872 = vmatprep.mubr.bf16.mxu0 0
        %873 = vmatmul.mubr.bf16.gmra.mrb[0].mxu0 %v719
        %v874 = vpop.f32.mrb[0].mxu0
        %v875 = vadd.f32 0.0, %v874
        %v876 = vpop.f32.mrb[0].mxu0
        %v877 = vpop.f32.mrb[0].mxu0
        %v878 = vadd.f32 0.0, %v877
        %v879 = vpop.f32.mrb[0].mxu0
        %880 = vmatprep.mubr.bf16.mxu0 0
        %881 = vmatmul.mubr.bf16.gmra.mrb[0].mxu0 %v722
        %v882 = vpop.f32.mrb[0].mxu0
        %v883 = vadd.f32 0.0, %v882
        %v884 = vpop.f32.mrb[0].mxu0
        %v885 = vpop.f32.mrb[0].mxu0
        %v886 = vadd.f32 0.0, %v885
        %v887 = vpop.f32.mrb[0].mxu0
        %888 = vdwg.mxu0
        %v921 = vunpack.c.l.b16 %v189
        %v922 = vunpack.c.l.b16 %v190
        %v923 = vunpack.c.l.b16 %v192
        %v924 = vunpack.c.l.b16 %v193
        %v925 = vunpack.c.l.b16 %v195
        %v926 = vunpack.c.l.b16 %v196
        %v927 = vunpack.c.l.b16 %v198
        %v928 = vunpack.c.l.b16 %v199
        %v929 = vunpack.c.l.b16 %v201
        %v930 = vunpack.c.l.b16 %v202
        %v931 = vunpack.c.l.b16 %v204
        %v932 = vunpack.c.l.b16 %v205
        %v933 = vunpack.c.l.b16 %v207
        %v934 = vunpack.c.l.b16 %v208
        %v935 = vunpack.c.l.b16 %v210
        %v936 = vunpack.c.l.b16 %v211
        %v937 = vunpack.c.l.b16 %v213
        %v938 = vunpack.c.l.b16 %v214
        %v939 = vunpack.c.l.b16 %v216
        %v940 = vunpack.c.l.b16 %v217
        %v941 = vunpack.c.l.b16 %v219
        %v942 = vunpack.c.l.b16 %v220
        %v943 = vunpack.c.l.b16 %v222
        %v944 = vunpack.c.l.b16 %v223
        %v945 = vunpack.c.l.b16 %v225
        %v946 = vunpack.c.l.b16 %v226
        %v947 = vunpack.c.l.b16 %v228
        %v948 = vunpack.c.l.b16 %v229
        %v949 = vunpack.c.l.b16 %v231
        %v950 = vunpack.c.l.b16 %v232
        %v951 = vunpack.c.l.b16 %v234
        %v952 = vunpack.c.l.b16 %v235
        %v953 = vpack.c.b16 %v922, %v921
        %v954 = vpack.c.b16 %v924, %v923
        %v955 = vpack.c.b16 %v926, %v925
        %v956 = vpack.c.b16 %v928, %v927
        %v957 = vpack.c.b16 %v930, %v929
        %v958 = vpack.c.b16 %v932, %v931
        %v959 = vpack.c.b16 %v934, %v933
        %v960 = vpack.c.b16 %v936, %v935
        %v961 = vpack.c.b16 %v938, %v937
        %v962 = vpack.c.b16 %v940, %v939
        %v963 = vpack.c.b16 %v942, %v941
        %v964 = vpack.c.b16 %v944, %v943
        %v965 = vpack.c.b16 %v946, %v945
        %v966 = vpack.c.b16 %v948, %v947
        %v967 = vpack.c.b16 %v950, %v949
        %v968 = vpack.c.b16 %v952, %v951
        %v970 = vsel %vm675, %v953, 0
        %v973 = vsel %vm675, %v954, 0
        %v976 = vsel %vm675, %v955, 0
        %v979 = vsel %vm675, %v956, 0
        %v982 = vsel %vm675, %v957, 0
        %v985 = vsel %vm675, %v958, 0
        %v988 = vsel %vm675, %v959, 0
        %v991 = vsel %vm675, %v960, 0
        %v994 = vsel %vm675, %v961, 0
        %v997 = vsel %vm675, %v962, 0
        %v1000 = vsel %vm675, %v963, 0
        %v1003 = vsel %vm675, %v964, 0
        %v1006 = vsel %vm675, %v965, 0
        %v1009 = vsel %vm675, %v966, 0
        %v1012 = vsel %vm675, %v967, 0
        %v1015 = vsel %vm675, %v968, 0
        %v1018 = vsel %vm724, %v237, 0
        %1020 = vmatprep.subr.bf16.mxu0 0
        %1021 = vmatpush1.bf16.msra.mxu0 %v1018
        %1022 = vmatprep.subr.bf16.mxu0 0
        %1023 = vmatpush1.bf16.msra.mxu0 0
        %1024 = vmatprep.subr.bf16.mxu0 0
        %1025 = vmatpush1.bf16.msra.mxu0 0
        %1026 = vmatprep.subr.bf16.mxu0 0
        %1027 = vmatpush1.bf16.msra.mxu0 0
        %1028 = vmatprep.subr.bf16.mxu0 0
        %1029 = vmatpush1.bf16.msra.mxu0 0
        %1030 = vmatprep.subr.bf16.mxu0 0
        %1031 = vmatpush1.bf16.msra.mxu0 0
        %1032 = vmatprep.subr.bf16.mxu0 0
        %1033 = vmatpush1.bf16.msra.mxu0 0
        %1034 = vmatprep.subr.bf16.mxu0 0
        %1035 = vmatpush1.bf16.msra.mxu0 0
        %1036 = vmatprep.subr.bf16.mxu0 0
        %1037 = vmatpush1.bf16.msra.mxu0 0
        %1038 = vmatprep.subr.bf16.mxu0 0
        %1039 = vmatpush1.bf16.msra.mxu0 0
        %1040 = vmatprep.subr.bf16.mxu0 0
        %1041 = vmatpush1.bf16.msra.mxu0 0
        %1042 = vmatprep.subr.bf16.mxu0 0
        %1043 = vmatpush1.bf16.msra.mxu0 0
        %1044 = vmatprep.subr.bf16.mxu0 0
        %1045 = vmatpush1.bf16.msra.mxu0 0
        %1046 = vmatprep.subr.bf16.mxu0 0
        %1047 = vmatpush1.bf16.msra.mxu0 0
        %1048 = vmatprep.subr.bf16.mxu0 0
        %1049 = vmatpush1.bf16.msra.mxu0 0
        %1050 = vmatprep.subr.bf16.mxu0 0
        %1051 = vmatpush1.bf16.msra.mxu0 0
        %1052 = vmatprep.mubr.bf16.mxu0 0
        %1053 = vmatmul.mubr.bf16.gmra.mrb[0].mxu0 %v970
        %v1054 = vpop.f32.mrb[0].mxu0
        %v1055 = vadd.f32 %v763, %v1054
        %v1056 = vpop.f32.mrb[0].mxu0
        %v1057 = vpop.f32.mrb[0].mxu0
        %v1058 = vadd.f32 %v766, %v1057
        %v1059 = vpop.f32.mrb[0].mxu0
        %1060 = vmatprep.mubr.bf16.mxu0 0
        %1061 = vmatmul.mubr.bf16.gmra.mrb[0].mxu0 %v973
        %v1062 = vpop.f32.mrb[0].mxu0
        %v1063 = vadd.f32 %v771, %v1062
        %v1064 = vpop.f32.mrb[0].mxu0
        %v1065 = vpop.f32.mrb[0].mxu0
        %v1066 = vadd.f32 %v774, %v1065
        %v1067 = vpop.f32.mrb[0].mxu0
        %1068 = vmatprep.mubr.bf16.mxu0 0
        %1069 = vmatmul.mubr.bf16.gmra.mrb[0].mxu0 %v976
        %v1070 = vpop.f32.mrb[0].mxu0
        %v1071 = vadd.f32 %v779, %v1070
        %v1072 = vpop.f32.mrb[0].mxu0
        %v1073 = vpop.f32.mrb[0].mxu0
        %v1074 = vadd.f32 %v782, %v1073
        %v1075 = vpop.f32.mrb[0].mxu0
        %1076 = vmatprep.mubr.bf16.mxu0 0
        %1077 = vmatmul.mubr.bf16.gmra.mrb[0].mxu0 %v979
        %v1078 = vpop.f32.mrb[0].mxu0
        %v1079 = vadd.f32 %v787, %v1078
        %v1080 = vpop.f32.mrb[0].mxu0
        %v1081 = vpop.f32.mrb[0].mxu0
        %v1082 = vadd.f32 %v790, %v1081
        %v1083 = vpop.f32.mrb[0].mxu0
        %1084 = vmatprep.mubr.bf16.mxu0 0
        %1085 = vmatmul.mubr.bf16.gmra.mrb[0].mxu0 %v982
        %v1086 = vpop.f32.mrb[0].mxu0
        %v1087 = vadd.f32 %v795, %v1086
        %v1088 = vpop.f32.mrb[0].mxu0
        %v1089 = vpop.f32.mrb[0].mxu0
        %v1090 = vadd.f32 %v798, %v1089
        %v1091 = vpop.f32.mrb[0].mxu0
        %1092 = vmatprep.mubr.bf16.mxu0 0
        %1093 = vmatmul.mubr.bf16.gmra.mrb[0].mxu0 %v985
        %v1094 = vpop.f32.mrb[0].mxu0
        %v1095 = vadd.f32 %v803, %v1094
        %v1096 = vpop.f32.mrb[0].mxu0
        %v1097 = vpop.f32.mrb[0].mxu0
        %v1098 = vadd.f32 %v806, %v1097
        %v1099 = vpop.f32.mrb[0].mxu0
        %1100 = vmatprep.mubr.bf16.mxu0 0
        %1101 = vmatmul.mubr.bf16.gmra.mrb[0].mxu0 %v988
        %v1102 = vpop.f32.mrb[0].mxu0
        %v1103 = vadd.f32 %v811, %v1102
        %v1104 = vpop.f32.mrb[0].mxu0
        %v1105 = vpop.f32.mrb[0].mxu0
        %v1106 = vadd.f32 %v814, %v1105
        %v1107 = vpop.f32.mrb[0].mxu0
        %1108 = vmatprep.mubr.bf16.mxu0 0
        %1109 = vmatmul.mubr.bf16.gmra.mrb[0].mxu0 %v991
        %v1110 = vpop.f32.mrb[0].mxu0
        %v1111 = vadd.f32 %v819, %v1110
        %v1112 = vpop.f32.mrb[0].mxu0
        %v1113 = vpop.f32.mrb[0].mxu0
        %v1114 = vadd.f32 %v822, %v1113
        %v1115 = vpop.f32.mrb[0].mxu0
        %1116 = vmatprep.mubr.bf16.mxu0 0
        %1117 = vmatmul.mubr.bf16.gmra.mrb[0].mxu0 %v994
        %v1118 = vpop.f32.mrb[0].mxu0
        %v1119 = vadd.f32 %v827, %v1118
        %v1120 = vpop.f32.mrb[0].mxu0
        %v1121 = vpop.f32.mrb[0].mxu0
        %v1122 = vadd.f32 %v830, %v1121
        %v1123 = vpop.f32.mrb[0].mxu0
        %1124 = vmatprep.mubr.bf16.mxu0 0
        %1125 = vmatmul.mubr.bf16.gmra.mrb[0].mxu0 %v997
        %v1126 = vpop.f32.mrb[0].mxu0
        %v1127 = vadd.f32 %v835, %v1126
        %v1128 = vpop.f32.mrb[0].mxu0
        %v1129 = vpop.f32.mrb[0].mxu0
        %v1130 = vadd.f32 %v838, %v1129
        %v1131 = vpop.f32.mrb[0].mxu0
        %1132 = vmatprep.mubr.bf16.mxu0 0
        %1133 = vmatmul.mubr.bf16.gmra.mrb[0].mxu0 %v1000
        %v1134 = vpop.f32.mrb[0].mxu0
        %v1135 = vadd.f32 %v843, %v1134
        %v1136 = vpop.f32.mrb[0].mxu0
        %v1137 = vpop.f32.mrb[0].mxu0
        %v1138 = vadd.f32 %v846, %v1137
        %v1139 = vpop.f32.mrb[0].mxu0
        %1140 = vmatprep.mubr.bf16.mxu0 0
        %1141 = vmatmul.mubr.bf16.gmra.mrb[0].mxu0 %v1003
        %v1142 = vpop.f32.mrb[0].mxu0
        %v1143 = vadd.f32 %v851, %v1142
        %v1144 = vpop.f32.mrb[0].mxu0
        %v1145 = vpop.f32.mrb[0].mxu0
        %v1146 = vadd.f32 %v854, %v1145
        %v1147 = vpop.f32.mrb[0].mxu0
        %1148 = vmatprep.mubr.bf16.mxu0 0
        %1149 = vmatmul.mubr.bf16.gmra.mrb[0].mxu0 %v1006
        %v1150 = vpop.f32.mrb[0].mxu0
        %v1151 = vadd.f32 %v859, %v1150
        %v1152 = vpop.f32.mrb[0].mxu0
        %v1153 = vpop.f32.mrb[0].mxu0
        %v1154 = vadd.f32 %v862, %v1153
        %v1155 = vpop.f32.mrb[0].mxu0
        %1156 = vmatprep.mubr.bf16.mxu0 0
        %1157 = vmatmul.mubr.bf16.gmra.mrb[0].mxu0 %v1009
        %v1158 = vpop.f32.mrb[0].mxu0
        %v1159 = vadd.f32 %v867, %v1158
        %v1160 = vpop.f32.mrb[0].mxu0
        %v1161 = vpop.f32.mrb[0].mxu0
        %v1162 = vadd.f32 %v870, %v1161
        %v1163 = vpop.f32.mrb[0].mxu0
        %1164 = vmatprep.mubr.bf16.mxu0 0
        %1165 = vmatmul.mubr.bf16.gmra.mrb[0].mxu0 %v1012
        %v1166 = vpop.f32.mrb[0].mxu0
        %v1167 = vadd.f32 %v875, %v1166
        %v1168 = vpop.f32.mrb[0].mxu0
        %v1169 = vpop.f32.mrb[0].mxu0
        %v1170 = vadd.f32 %v878, %v1169
        %v1171 = vpop.f32.mrb[0].mxu0
        %1172 = vmatprep.mubr.bf16.mxu0 0
        %1173 = vmatmul.mubr.bf16.gmra.mrb[0].mxu0 %v1015
        %v1174 = vpop.f32.mrb[0].mxu0
        %v1175 = vadd.f32 %v883, %v1174
        %v1176 = vpop.f32.mrb[0].mxu0
        %v1177 = vpop.f32.mrb[0].mxu0
        %v1178 = vadd.f32 %v886, %v1177
        %v1179 = vpop.f32.mrb[0].mxu0
        %1180 = vdwg.mxu0
        %s1181 = scalar_lea.vmem %s1, 4
        %v1182 = vld [vmem:[%s1181] sm:$0x3]
        %vm1199 = vcmask 1042432
        %vm1200 = vcmask 1046532
        %vm1201 = vmor %vm1199, %vm1200
        %v1202 = vrot.slane %v189, 5
        %v1203 = vrot.slane %v1202, 4
        %v1204 = vrot.slane %v190, 5
        %v1205 = vsel %vm1201, %v1203, %v1204
        %v1206 = vrot.slane %v1204, 4
        %v1207 = vrot.slane %v191, 5
        %v1208 = vsel %vm1201, %v1206, %v1207
        %v1209 = vrot.slane %v192, 5
        %v1210 = vrot.slane %v1209, 4
        %v1211 = vrot.slane %v193, 5
        %v1212 = vsel %vm1201, %v1210, %v1211
        %v1213 = vrot.slane %v1211, 4
        %v1214 = vrot.slane %v194, 5
        %v1215 = vsel %vm1201, %v1213, %v1214
        %v1216 = vrot.slane %v195, 5
        %v1217 = vrot.slane %v1216, 4
        %v1218 = vrot.slane %v196, 5
        %v1219 = vsel %vm1201, %v1217, %v1218
        %v1220 = vrot.slane %v1218, 4
        %v1221 = vrot.slane %v197, 5
        %v1222 = vsel %vm1201, %v1220, %v1221
        %v1223 = vrot.slane %v198, 5
        %v1224 = vrot.slane %v1223, 4
        %v1225 = vrot.slane %v199, 5
        %v1226 = vsel %vm1201, %v1224, %v1225
        %v1227 = vrot.slane %v1225, 4
        %v1228 = vrot.slane %v200, 5
        %v1229 = vsel %vm1201, %v1227, %v1228
        %v1230 = vrot.slane %v201, 5
        %v1231 = vrot.slane %v1230, 4
        %v1232 = vrot.slane %v202, 5
        %v1233 = vsel %vm1201, %v1231, %v1232
        %v1234 = vrot.slane %v1232, 4
        %v1235 = vrot.slane %v203, 5
        %v1236 = vsel %vm1201, %v1234, %v1235
        %v1237 = vrot.slane %v204, 5
        %v1238 = vrot.slane %v1237, 4
        %v1239 = vrot.slane %v205, 5
        %v1240 = vsel %vm1201, %v1238, %v1239
        %v1241 = vrot.slane %v1239, 4
        %v1242 = vrot.slane %v206, 5
        %v1243 = vsel %vm1201, %v1241, %v1242
        %v1244 = vrot.slane %v207, 5
        %v1245 = vrot.slane %v1244, 4
        %v1246 = vrot.slane %v208, 5
        %v1247 = vsel %vm1201, %v1245, %v1246
        %v1248 = vrot.slane %v1246, 4
        %v1249 = vrot.slane %v209, 5
        %v1250 = vsel %vm1201, %v1248, %v1249
        %v1251 = vrot.slane %v210, 5
        %v1252 = vrot.slane %v1251, 4
        %v1253 = vrot.slane %v211, 5
        %v1254 = vsel %vm1201, %v1252, %v1253
        %v1255 = vrot.slane %v1253, 4
        %v1256 = vrot.slane %v212, 5
        %v1257 = vsel %vm1201, %v1255, %v1256
        %v1258 = vrot.slane %v213, 5
        %v1259 = vrot.slane %v1258, 4
        %v1260 = vrot.slane %v214, 5
        %v1261 = vsel %vm1201, %v1259, %v1260
        %v1262 = vrot.slane %v1260, 4
        %v1263 = vrot.slane %v215, 5
        %v1264 = vsel %vm1201, %v1262, %v1263
        %v1265 = vrot.slane %v216, 5
        %v1266 = vrot.slane %v1265, 4
        %v1267 = vrot.slane %v217, 5
        %v1268 = vsel %vm1201, %v1266, %v1267
        %v1269 = vrot.slane %v1267, 4
        %v1270 = vrot.slane %v218, 5
        %v1271 = vsel %vm1201, %v1269, %v1270
        %v1272 = vrot.slane %v219, 5
        %v1273 = vrot.slane %v1272, 4
        %v1274 = vrot.slane %v220, 5
        %v1275 = vsel %vm1201, %v1273, %v1274
        %v1276 = vrot.slane %v1274, 4
        %v1277 = vrot.slane %v221, 5
        %v1278 = vsel %vm1201, %v1276, %v1277
        %v1279 = vrot.slane %v222, 5
        %v1280 = vrot.slane %v1279, 4
        %v1281 = vrot.slane %v223, 5
        %v1282 = vsel %vm1201, %v1280, %v1281
        %v1283 = vrot.slane %v1281, 4
        %v1284 = vrot.slane %v224, 5
        %v1285 = vsel %vm1201, %v1283, %v1284
        %v1286 = vrot.slane %v225, 5
        %v1287 = vrot.slane %v1286, 4
        %v1288 = vrot.slane %v226, 5
        %v1289 = vsel %vm1201, %v1287, %v1288
        %v1290 = vrot.slane %v1288, 4
        %v1291 = vrot.slane %v227, 5
        %v1292 = vsel %vm1201, %v1290, %v1291
        %v1293 = vrot.slane %v228, 5
        %v1294 = vrot.slane %v1293, 4
        %v1295 = vrot.slane %v229, 5
        %v1296 = vsel %vm1201, %v1294, %v1295
        %v1297 = vrot.slane %v1295, 4
        %v1298 = vrot.slane %v230, 5
        %v1299 = vsel %vm1201, %v1297, %v1298
        %v1300 = vrot.slane %v231, 5
        %v1301 = vrot.slane %v1300, 4
        %v1302 = vrot.slane %v232, 5
        %v1303 = vsel %vm1201, %v1301, %v1302
        %v1304 = vrot.slane %v1302, 4
        %v1305 = vrot.slane %v233, 5
        %v1306 = vsel %vm1201, %v1304, %v1305
        %v1307 = vrot.slane %v234, 5
        %v1308 = vrot.slane %v1307, 4
        %v1309 = vrot.slane %v235, 5
        %v1310 = vsel %vm1201, %v1308, %v1309
        %v1311 = vrot.slane %v1309, 4
        %v1312 = vrot.slane %v236, 5
        %v1313 = vsel %vm1201, %v1311, %v1312
        %v1314 = vunpack.c.l.b16 %v1205
        %v1315 = vunpack.c.l.b16 %v1208
        %v1316 = vunpack.c.l.b16 %v1212
        %v1317 = vunpack.c.l.b16 %v1215
        %v1318 = vunpack.c.l.b16 %v1219
        %v1319 = vunpack.c.l.b16 %v1222
        %v1320 = vunpack.c.l.b16 %v1226
        %v1321 = vunpack.c.l.b16 %v1229
        %v1322 = vunpack.c.l.b16 %v1233
        %v1323 = vunpack.c.l.b16 %v1236
        %v1324 = vunpack.c.l.b16 %v1240
        %v1325 = vunpack.c.l.b16 %v1243
        %v1326 = vunpack.c.l.b16 %v1247
        %v1327 = vunpack.c.l.b16 %v1250
        %v1328 = vunpack.c.l.b16 %v1254
        %v1329 = vunpack.c.l.b16 %v1257
        %v1330 = vunpack.c.l.b16 %v1261
        %v1331 = vunpack.c.l.b16 %v1264
        %v1332 = vunpack.c.l.b16 %v1268
        %v1333 = vunpack.c.l.b16 %v1271
        %v1334 = vunpack.c.l.b16 %v1275
        %v1335 = vunpack.c.l.b16 %v1278
        %v1336 = vunpack.c.l.b16 %v1282
        %v1337 = vunpack.c.l.b16 %v1285
        %v1338 = vunpack.c.l.b16 %v1289
        %v1339 = vunpack.c.l.b16 %v1292
        %v1340 = vunpack.c.l.b16 %v1296
        %v1341 = vunpack.c.l.b16 %v1299
        %v1342 = vunpack.c.l.b16 %v1303
        %v1343 = vunpack.c.l.b16 %v1306
        %v1344 = vunpack.c.l.b16 %v1310
        %v1345 = vunpack.c.l.b16 %v1313
        %v1346 = vpack.c.b16 %v1315, %v1314
        %v1347 = vpack.c.b16 %v1317, %v1316
        %v1348 = vpack.c.b16 %v1319, %v1318
        %v1349 = vpack.c.b16 %v1321, %v1320
        %v1350 = vpack.c.b16 %v1323, %v1322
        %v1351 = vpack.c.b16 %v1325, %v1324
        %v1352 = vpack.c.b16 %v1327, %v1326
        %v1353 = vpack.c.b16 %v1329, %v1328
        %v1354 = vpack.c.b16 %v1331, %v1330
        %v1355 = vpack.c.b16 %v1333, %v1332
        %v1356 = vpack.c.b16 %v1335, %v1334
        %v1357 = vpack.c.b16 %v1337, %v1336
        %v1358 = vpack.c.b16 %v1339, %v1338
        %v1359 = vpack.c.b16 %v1341, %v1340
        %v1360 = vpack.c.b16 %v1343, %v1342
        %v1361 = vpack.c.b16 %v1345, %v1344
        %v1363 = vsel %vm675, %v1346, 0
        %v1366 = vsel %vm675, %v1347, 0
        %v1369 = vsel %vm675, %v1348, 0
        %v1372 = vsel %vm675, %v1349, 0
        %v1375 = vsel %vm675, %v1350, 0
        %v1378 = vsel %vm675, %v1351, 0
        %v1381 = vsel %vm675, %v1352, 0
        %v1384 = vsel %vm675, %v1353, 0
        %v1387 = vsel %vm675, %v1354, 0
        %v1390 = vsel %vm675, %v1355, 0
        %v1393 = vsel %vm675, %v1356, 0
        %v1396 = vsel %vm675, %v1357, 0
        %v1399 = vsel %vm675, %v1358, 0
        %v1402 = vsel %vm675, %v1359, 0
        %v1405 = vsel %vm675, %v1360, 0
        %v1408 = vsel %vm675, %v1361, 0
        %v1411 = vsel %vm724, %v1182, 0
        %1413 = vmatprep.subr.bf16.mxu0 0
        %1414 = vmatpush1.bf16.msra.mxu0 %v1411
        %1415 = vmatprep.subr.bf16.mxu0 0
        %1416 = vmatpush1.bf16.msra.mxu0 0
        %1417 = vmatprep.subr.bf16.mxu0 0
        %1418 = vmatpush1.bf16.msra.mxu0 0
        %1419 = vmatprep.subr.bf16.mxu0 0
        %1420 = vmatpush1.bf16.msra.mxu0 0
        %1421 = vmatprep.subr.bf16.mxu0 0
        %1422 = vmatpush1.bf16.msra.mxu0 0
        %1423 = vmatprep.subr.bf16.mxu0 0
        %1424 = vmatpush1.bf16.msra.mxu0 0
        %1425 = vmatprep.subr.bf16.mxu0 0
        %1426 = vmatpush1.bf16.msra.mxu0 0
        %1427 = vmatprep.subr.bf16.mxu0 0
        %1428 = vmatpush1.bf16.msra.mxu0 0
        %1429 = vmatprep.subr.bf16.mxu0 0
        %1430 = vmatpush1.bf16.msra.mxu0 0
        %1431 = vmatprep.subr.bf16.mxu0 0
        %1432 = vmatpush1.bf16.msra.mxu0 0
        %1433 = vmatprep.subr.bf16.mxu0 0
        %1434 = vmatpush1.bf16.msra.mxu0 0
        %1435 = vmatprep.subr.bf16.mxu0 0
        %1436 = vmatpush1.bf16.msra.mxu0 0
        %1437 = vmatprep.subr.bf16.mxu0 0
        %1438 = vmatpush1.bf16.msra.mxu0 0
        %1439 = vmatprep.subr.bf16.mxu0 0
        %1440 = vmatpush1.bf16.msra.mxu0 0
        %1441 = vmatprep.subr.bf16.mxu0 0
        %1442 = vmatpush1.bf16.msra.mxu0 0
        %1443 = vmatprep.subr.bf16.mxu0 0
        %1444 = vmatpush1.bf16.msra.mxu0 0
        %1445 = vmatprep.mubr.bf16.mxu0 0
        %1446 = vmatmul.mubr.bf16.gmra.mrb[0].mxu0 %v1363
        %v1447 = vpop.f32.mrb[0].mxu0
        %v1448 = vadd.f32 0.0, %v1447
        %v1449 = vpop.f32.mrb[0].mxu0
        %v1450 = vpop.f32.mrb[0].mxu0
        %v1451 = vadd.f32 0.0, %v1450
        %v1452 = vpop.f32.mrb[0].mxu0
        %1453 = vmatprep.mubr.bf16.mxu0 0
        %1454 = vmatmul.mubr.bf16.gmra.mrb[0].mxu0 %v1366
        %v1455 = vpop.f32.mrb[0].mxu0
        %v1456 = vadd.f32 0.0, %v1455
        %v1457 = vpop.f32.mrb[0].mxu0
        %v1458 = vpop.f32.mrb[0].mxu0
        %v1459 = vadd.f32 0.0, %v1458
        %v1460 = vpop.f32.mrb[0].mxu0
        %1461 = vmatprep.mubr.bf16.mxu0 0
        %1462 = vmatmul.mubr.bf16.gmra.mrb[0].mxu0 %v1369
        %v1463 = vpop.f32.mrb[0].mxu0
        %v1464 = vadd.f32 0.0, %v1463
        %v1465 = vpop.f32.mrb[0].mxu0
        %v1466 = vpop.f32.mrb[0].mxu0
        %v1467 = vadd.f32 0.0, %v1466
        %v1468 = vpop.f32.mrb[0].mxu0
        %1469 = vmatprep.mubr.bf16.mxu0 0
        %1470 = vmatmul.mubr.bf16.gmra.mrb[0].mxu0 %v1372
        %v1471 = vpop.f32.mrb[0].mxu0
        %v1472 = vadd.f32 0.0, %v1471
        %v1473 = vpop.f32.mrb[0].mxu0
        %v1474 = vpop.f32.mrb[0].mxu0
        %v1475 = vadd.f32 0.0, %v1474
        %v1476 = vpop.f32.mrb[0].mxu0
        %1477 = vmatprep.mubr.bf16.mxu0 0
        %1478 = vmatmul.mubr.bf16.gmra.mrb[0].mxu0 %v1375
        %v1479 = vpop.f32.mrb[0].mxu0
        %v1480 = vadd.f32 0.0, %v1479
        %v1481 = vpop.f32.mrb[0].mxu0
        %v1482 = vpop.f32.mrb[0].mxu0
        %v1483 = vadd.f32 0.0, %v1482
        %v1484 = vpop.f32.mrb[0].mxu0
        %1485 = vmatprep.mubr.bf16.mxu0 0
        %1486 = vmatmul.mubr.bf16.gmra.mrb[0].mxu0 %v1378
        %v1487 = vpop.f32.mrb[0].mxu0
        %v1488 = vadd.f32 0.0, %v1487
        %v1489 = vpop.f32.mrb[0].mxu0
        %v1490 = vpop.f32.mrb[0].mxu0
        %v1491 = vadd.f32 0.0, %v1490
        %v1492 = vpop.f32.mrb[0].mxu0
        %1493 = vmatprep.mubr.bf16.mxu0 0
        %1494 = vmatmul.mubr.bf16.gmra.mrb[0].mxu0 %v1381
        %v1495 = vpop.f32.mrb[0].mxu0
        %v1496 = vadd.f32 0.0, %v1495
        %v1497 = vpop.f32.mrb[0].mxu0
        %v1498 = vpop.f32.mrb[0].mxu0
        %v1499 = vadd.f32 0.0, %v1498
        %v1500 = vpop.f32.mrb[0].mxu0
        %1501 = vmatprep.mubr.bf16.mxu0 0
        %1502 = vmatmul.mubr.bf16.gmra.mrb[0].mxu0 %v1384
        %v1503 = vpop.f32.mrb[0].mxu0
        %v1504 = vadd.f32 0.0, %v1503
        %v1505 = vpop.f32.mrb[0].mxu0
        %v1506 = vpop.f32.mrb[0].mxu0
        %v1507 = vadd.f32 0.0, %v1506
        %v1508 = vpop.f32.mrb[0].mxu0
        %1509 = vmatprep.mubr.bf16.mxu0 0
        %1510 = vmatmul.mubr.bf16.gmra.mrb[0].mxu0 %v1387
        %v1511 = vpop.f32.mrb[0].mxu0
        %v1512 = vadd.f32 0.0, %v1511
        %v1513 = vpop.f32.mrb[0].mxu0
        %v1514 = vpop.f32.mrb[0].mxu0
        %v1515 = vadd.f32 0.0, %v1514
        %v1516 = vpop.f32.mrb[0].mxu0
        %1517 = vmatprep.mubr.bf16.mxu0 0
        %1518 = vmatmul.mubr.bf16.gmra.mrb[0].mxu0 %v1390
        %v1519 = vpop.f32.mrb[0].mxu0
        %v1520 = vadd.f32 0.0, %v1519
        %v1521 = vpop.f32.mrb[0].mxu0
        %v1522 = vpop.f32.mrb[0].mxu0
        %v1523 = vadd.f32 0.0, %v1522
        %v1524 = vpop.f32.mrb[0].mxu0
        %1525 = vmatprep.mubr.bf16.mxu0 0
        %1526 = vmatmul.mubr.bf16.gmra.mrb[0].mxu0 %v1393
        %v1527 = vpop.f32.mrb[0].mxu0
        %v1528 = vadd.f32 0.0, %v1527
        %v1529 = vpop.f32.mrb[0].mxu0
        %v1530 = vpop.f32.mrb[0].mxu0
        %v1531 = vadd.f32 0.0, %v1530
        %v1532 = vpop.f32.mrb[0].mxu0
        %1533 = vmatprep.mubr.bf16.mxu0 0
        %1534 = vmatmul.mubr.bf16.gmra.mrb[0].mxu0 %v1396
        %v1535 = vpop.f32.mrb[0].mxu0
        %v1536 = vadd.f32 0.0, %v1535
        %v1537 = vpop.f32.mrb[0].mxu0
        %v1538 = vpop.f32.mrb[0].mxu0
        %v1539 = vadd.f32 0.0, %v1538
        %v1540 = vpop.f32.mrb[0].mxu0
        %1541 = vmatprep.mubr.bf16.mxu0 0
        %1542 = vmatmul.mubr.bf16.gmra.mrb[0].mxu0 %v1399
        %v1543 = vpop.f32.mrb[0].mxu0
        %v1544 = vadd.f32 0.0, %v1543
        %v1545 = vpop.f32.mrb[0].mxu0
        %v1546 = vpop.f32.mrb[0].mxu0
        %v1547 = vadd.f32 0.0, %v1546
        %v1548 = vpop.f32.mrb[0].mxu0
        %1549 = vmatprep.mubr.bf16.mxu0 0
        %1550 = vmatmul.mubr.bf16.gmra.mrb[0].mxu0 %v1402
        %v1551 = vpop.f32.mrb[0].mxu0
        %v1552 = vadd.f32 0.0, %v1551
        %v1553 = vpop.f32.mrb[0].mxu0
        %v1554 = vpop.f32.mrb[0].mxu0
        %v1555 = vadd.f32 0.0, %v1554
        %v1556 = vpop.f32.mrb[0].mxu0
        %1557 = vmatprep.mubr.bf16.mxu0 0
        %1558 = vmatmul.mubr.bf16.gmra.mrb[0].mxu0 %v1405
        %v1559 = vpop.f32.mrb[0].mxu0
        %v1560 = vadd.f32 0.0, %v1559
        %v1561 = vpop.f32.mrb[0].mxu0
        %v1562 = vpop.f32.mrb[0].mxu0
        %v1563 = vadd.f32 0.0, %v1562
        %v1564 = vpop.f32.mrb[0].mxu0
        %1565 = vmatprep.mubr.bf16.mxu0 0
        %1566 = vmatmul.mubr.bf16.gmra.mrb[0].mxu0 %v1408
        %v1567 = vpop.f32.mrb[0].mxu0
        %v1568 = vadd.f32 0.0, %v1567
        %v1569 = vpop.f32.mrb[0].mxu0
        %v1570 = vpop.f32.mrb[0].mxu0
        %v1571 = vadd.f32 0.0, %v1570
        %v1572 = vpop.f32.mrb[0].mxu0
        %1573 = vdwg.mxu0
        %v1574 = vadd.f32 %v1055, %v1448
        %v1575 = vadd.f32 %v1058, %v1451
        %v1576 = vadd.f32 %v1063, %v1456
        %v1577 = vadd.f32 %v1066, %v1459
        %v1578 = vadd.f32 %v1071, %v1464
        %v1579 = vadd.f32 %v1074, %v1467
        %v1580 = vadd.f32 %v1079, %v1472
        %v1581 = vadd.f32 %v1082, %v1475
        %v1582 = vadd.f32 %v1087, %v1480
        %v1583 = vadd.f32 %v1090, %v1483
        %v1584 = vadd.f32 %v1095, %v1488
        %v1585 = vadd.f32 %v1098, %v1491
        %v1586 = vadd.f32 %v1103, %v1496
        %v1587 = vadd.f32 %v1106, %v1499
        %v1588 = vadd.f32 %v1111, %v1504
        %v1589 = vadd.f32 %v1114, %v1507
        %v1590 = vadd.f32 %v1119, %v1512
        %v1591 = vadd.f32 %v1122, %v1515
        %v1592 = vadd.f32 %v1127, %v1520
        %v1593 = vadd.f32 %v1130, %v1523
        %v1594 = vadd.f32 %v1135, %v1528
        %v1595 = vadd.f32 %v1138, %v1531
        %v1596 = vadd.f32 %v1143, %v1536
        %v1597 = vadd.f32 %v1146, %v1539
        %v1598 = vadd.f32 %v1151, %v1544
        %v1599 = vadd.f32 %v1154, %v1547
        %v1600 = vadd.f32 %v1159, %v1552
        %v1601 = vadd.f32 %v1162, %v1555
        %v1602 = vadd.f32 %v1167, %v1560
        %v1603 = vadd.f32 %v1170, %v1563
        %v1604 = vadd.f32 %v1175, %v1568
        %v1605 = vadd.f32 %v1178, %v1571
        %s1606 = sadd.s32 %s185, 1
        %s1607 = smul.u32 %s1606, 3
        %s1608 = smul.addr %s1607, 4
        %s1609 = scalar_lea.vmem %s182, %s1608
        %v1610 = vld [vmem:[%s1609] sm:$0xf]
        %v1611 = vld [vmem:[%s1609 + $0x4] sm:$0xf]
        %v1612 = vld [vmem:[%s1609 + $0x8] sm:$0x1]
        %v1613 = vld [vmem:[%s1609 + $0xc] sm:$0xf]
        %v1614 = vld [vmem:[%s1609 + $0x10] sm:$0xf]
        %v1615 = vld [vmem:[%s1609 + $0x14] sm:$0x1]
        %v1616 = vld [vmem:[%s1609 + $0x18] sm:$0xf]
        %v1617 = vld [vmem:[%s1609 + $0x1c] sm:$0xf]
        %v1618 = vld [vmem:[%s1609 + $0x20] sm:$0x1]
        %v1619 = vld [vmem:[%s1609 + $0x24] sm:$0xf]
        %v1620 = vld [vmem:[%s1609 + $0x28] sm:$0xf]
        %v1621 = vld [vmem:[%s1609 + $0x2c] sm:$0x1]
        %v1622 = vld [vmem:[%s1609 + $0x30] sm:$0xf]
        %v1623 = vld [vmem:[%s1609 + $0x34] sm:$0xf]
        %v1624 = vld [vmem:[%s1609 + $0x38] sm:$0x1]
        %v1625 = vld [vmem:[%s1609 + $0x3c] sm:$0xf]
        %v1626 = vld [vmem:[%s1609 + $0x40] sm:$0xf]
        %v1627 = vld [vmem:[%s1609 + $0x44] sm:$0x1]
        %v1628 = vld [vmem:[%s1609 + $0x48] sm:$0xf]
        %v1629 = vld [vmem:[%s1609 + $0x4c] sm:$0xf]
        %v1630 = vld [vmem:[%s1609 + $0x50] sm:$0x1]
        %v1631 = vld [vmem:[%s1609 + $0x54] sm:$0xf]
        %v1632 = vld [vmem:[%s1609 + $0x58] sm:$0xf]
        %v1633 = vld [vmem:[%s1609 + $0x5c] sm:$0x1]
        %v1634 = vld [vmem:[%s1609 + $0x60] sm:$0xf]
        %v1635 = vld [vmem:[%s1609 + $0x64] sm:$0xf]
        %v1636 = vld [vmem:[%s1609 + $0x68] sm:$0x1]
        %v1637 = vld [vmem:[%s1609 + $0x6c] sm:$0xf]
        %v1638 = vld [vmem:[%s1609 + $0x70] sm:$0xf]
        %v1639 = vld [vmem:[%s1609 + $0x74] sm:$0x1]
        %v1640 = vld [vmem:[%s1609 + $0x78] sm:$0xf]
        %v1641 = vld [vmem:[%s1609 + $0x7c] sm:$0xf]
        %v1642 = vld [vmem:[%s1609 + $0x80] sm:$0x1]
        %v1643 = vld [vmem:[%s1609 + $0x84] sm:$0xf]
        %v1644 = vld [vmem:[%s1609 + $0x88] sm:$0xf]
        %v1645 = vld [vmem:[%s1609 + $0x8c] sm:$0x1]
        %v1646 = vld [vmem:[%s1609 + $0x90] sm:$0xf]
        %v1647 = vld [vmem:[%s1609 + $0x94] sm:$0xf]
        %v1648 = vld [vmem:[%s1609 + $0x98] sm:$0x1]
        %v1649 = vld [vmem:[%s1609 + $0x9c] sm:$0xf]
        %v1650 = vld [vmem:[%s1609 + $0xa0] sm:$0xf]
        %v1651 = vld [vmem:[%s1609 + $0xa4] sm:$0x1]
        %v1652 = vld [vmem:[%s1609 + $0xa8] sm:$0xf]
        %v1653 = vld [vmem:[%s1609 + $0xac] sm:$0xf]
        %v1654 = vld [vmem:[%s1609 + $0xb0] sm:$0x1]
        %v1655 = vld [vmem:[%s1609 + $0xb4] sm:$0xf]
        %v1656 = vld [vmem:[%s1609 + $0xb8] sm:$0xf]
        %v1657 = vld [vmem:[%s1609 + $0xbc] sm:$0x1]
        %s1658 = scalar_lea.vmem %s1, 6
        %v1659 = vld [vmem:[%s1658] sm:$0x3]
        %v1692 = vunpack.c.l.b16 %v1610
        %v1693 = vunpack.c.l.b16 %v1611
        %v1694 = vunpack.c.l.b16 %v1613
        %v1695 = vunpack.c.l.b16 %v1614
        %v1696 = vunpack.c.l.b16 %v1616
        %v1697 = vunpack.c.l.b16 %v1617
        %v1698 = vunpack.c.l.b16 %v1619
        %v1699 = vunpack.c.l.b16 %v1620
        %v1700 = vunpack.c.l.b16 %v1622
        %v1701 = vunpack.c.l.b16 %v1623
        %v1702 = vunpack.c.l.b16 %v1625
        %v1703 = vunpack.c.l.b16 %v1626
        %v1704 = vunpack.c.l.b16 %v1628
        %v1705 = vunpack.c.l.b16 %v1629
        %v1706 = vunpack.c.l.b16 %v1631
        %v1707 = vunpack.c.l.b16 %v1632
        %v1708 = vunpack.c.l.b16 %v1634
        %v1709 = vunpack.c.l.b16 %v1635
        %v1710 = vunpack.c.l.b16 %v1637
        %v1711 = vunpack.c.l.b16 %v1638
        %v1712 = vunpack.c.l.b16 %v1640
        %v1713 = vunpack.c.l.b16 %v1641
        %v1714 = vunpack.c.l.b16 %v1643
        %v1715 = vunpack.c.l.b16 %v1644
        %v1716 = vunpack.c.l.b16 %v1646
        %v1717 = vunpack.c.l.b16 %v1647
        %v1718 = vunpack.c.l.b16 %v1649
        %v1719 = vunpack.c.l.b16 %v1650
        %v1720 = vunpack.c.l.b16 %v1652
        %v1721 = vunpack.c.l.b16 %v1653
        %v1722 = vunpack.c.l.b16 %v1655
        %v1723 = vunpack.c.l.b16 %v1656
        %v1724 = vpack.c.b16 %v1693, %v1692
        %v1725 = vpack.c.b16 %v1695, %v1694
        %v1726 = vpack.c.b16 %v1697, %v1696
        %v1727 = vpack.c.b16 %v1699, %v1698
        %v1728 = vpack.c.b16 %v1701, %v1700
        %v1729 = vpack.c.b16 %v1703, %v1702
        %v1730 = vpack.c.b16 %v1705, %v1704
        %v1731 = vpack.c.b16 %v1707, %v1706
        %v1732 = vpack.c.b16 %v1709, %v1708
        %v1733 = vpack.c.b16 %v1711, %v1710
        %v1734 = vpack.c.b16 %v1713, %v1712
        %v1735 = vpack.c.b16 %v1715, %v1714
        %v1736 = vpack.c.b16 %v1717, %v1716
        %v1737 = vpack.c.b16 %v1719, %v1718
        %v1738 = vpack.c.b16 %v1721, %v1720
        %v1739 = vpack.c.b16 %v1723, %v1722
        %v1741 = vsel %vm675, %v1724, 0
        %v1744 = vsel %vm675, %v1725, 0
        %v1747 = vsel %vm675, %v1726, 0
        %v1750 = vsel %vm675, %v1727, 0
        %v1753 = vsel %vm675, %v1728, 0
        %v1756 = vsel %vm675, %v1729, 0
        %v1759 = vsel %vm675, %v1730, 0
        %v1762 = vsel %vm675, %v1731, 0
        %v1765 = vsel %vm675, %v1732, 0
        %v1768 = vsel %vm675, %v1733, 0
        %v1771 = vsel %vm675, %v1734, 0
        %v1774 = vsel %vm675, %v1735, 0
        %v1777 = vsel %vm675, %v1736, 0
        %v1780 = vsel %vm675, %v1737, 0
        %v1783 = vsel %vm675, %v1738, 0
        %v1786 = vsel %vm675, %v1739, 0
        %v1789 = vsel %vm724, %v1659, 0
        %1791 = vmatprep.subr.bf16.mxu0 0
        %1792 = vmatpush1.bf16.msra.mxu0 %v1789
        %1793 = vmatprep.subr.bf16.mxu0 0
        %1794 = vmatpush1.bf16.msra.mxu0 0
        %1795 = vmatprep.subr.bf16.mxu0 0
        %1796 = vmatpush1.bf16.msra.mxu0 0
        %1797 = vmatprep.subr.bf16.mxu0 0
        %1798 = vmatpush1.bf16.msra.mxu0 0
        %1799 = vmatprep.subr.bf16.mxu0 0
        %1800 = vmatpush1.bf16.msra.mxu0 0
        %1801 = vmatprep.subr.bf16.mxu0 0
        %1802 = vmatpush1.bf16.msra.mxu0 0
        %1803 = vmatprep.subr.bf16.mxu0 0
        %1804 = vmatpush1.bf16.msra.mxu0 0
        %1805 = vmatprep.subr.bf16.mxu0 0
        %1806 = vmatpush1.bf16.msra.mxu0 0
        %1807 = vmatprep.subr.bf16.mxu0 0
        %1808 = vmatpush1.bf16.msra.mxu0 0
        %1809 = vmatprep.subr.bf16.mxu0 0
        %1810 = vmatpush1.bf16.msra.mxu0 0
        %1811 = vmatprep.subr.bf16.mxu0 0
        %1812 = vmatpush1.bf16.msra.mxu0 0
        %1813 = vmatprep.subr.bf16.mxu0 0
        %1814 = vmatpush1.bf16.msra.mxu0 0
        %1815 = vmatprep.subr.bf16.mxu0 0
        %1816 = vmatpush1.bf16.msra.mxu0 0
        %1817 = vmatprep.subr.bf16.mxu0 0
        %1818 = vmatpush1.bf16.msra.mxu0 0
        %1819 = vmatprep.subr.bf16.mxu0 0
        %1820 = vmatpush1.bf16.msra.mxu0 0
        %1821 = vmatprep.subr.bf16.mxu0 0
        %1822 = vmatpush1.bf16.msra.mxu0 0
        %1823 = vmatprep.mubr.bf16.mxu0 0
        %1824 = vmatmul.mubr.bf16.gmra.mrb[0].mxu0 %v1741
        %v1825 = vpop.f32.mrb[0].mxu0
        %v1826 = vadd.f32 0.0, %v1825
        %v1827 = vpop.f32.mrb[0].mxu0
        %v1828 = vpop.f32.mrb[0].mxu0
        %v1829 = vadd.f32 0.0, %v1828
        %v1830 = vpop.f32.mrb[0].mxu0
        %1831 = vmatprep.mubr.bf16.mxu0 0
        %1832 = vmatmul.mubr.bf16.gmra.mrb[0].mxu0 %v1744
        %v1833 = vpop.f32.mrb[0].mxu0
        %v1834 = vadd.f32 0.0, %v1833
        %v1835 = vpop.f32.mrb[0].mxu0
        %v1836 = vpop.f32.mrb[0].mxu0
        %v1837 = vadd.f32 0.0, %v1836
        %v1838 = vpop.f32.mrb[0].mxu0
        %1839 = vmatprep.mubr.bf16.mxu0 0
        %1840 = vmatmul.mubr.bf16.gmra.mrb[0].mxu0 %v1747
        %v1841 = vpop.f32.mrb[0].mxu0
        %v1842 = vadd.f32 0.0, %v1841
        %v1843 = vpop.f32.mrb[0].mxu0
        %v1844 = vpop.f32.mrb[0].mxu0
        %v1845 = vadd.f32 0.0, %v1844
        %v1846 = vpop.f32.mrb[0].mxu0
        %1847 = vmatprep.mubr.bf16.mxu0 0
        %1848 = vmatmul.mubr.bf16.gmra.mrb[0].mxu0 %v1750
        %v1849 = vpop.f32.mrb[0].mxu0
        %v1850 = vadd.f32 0.0, %v1849
        %v1851 = vpop.f32.mrb[0].mxu0
        %v1852 = vpop.f32.mrb[0].mxu0
        %v1853 = vadd.f32 0.0, %v1852
        %v1854 = vpop.f32.mrb[0].mxu0
        %1855 = vmatprep.mubr.bf16.mxu0 0
        %1856 = vmatmul.mubr.bf16.gmra.mrb[0].mxu0 %v1753
        %v1857 = vpop.f32.mrb[0].mxu0
        %v1858 = vadd.f32 0.0, %v1857
        %v1859 = vpop.f32.mrb[0].mxu0
        %v1860 = vpop.f32.mrb[0].mxu0
        %v1861 = vadd.f32 0.0, %v1860
        %v1862 = vpop.f32.mrb[0].mxu0
        %1863 = vmatprep.mubr.bf16.mxu0 0
        %1864 = vmatmul.mubr.bf16.gmra.mrb[0].mxu0 %v1756
        %v1865 = vpop.f32.mrb[0].mxu0
        %v1866 = vadd.f32 0.0, %v1865
        %v1867 = vpop.f32.mrb[0].mxu0
        %v1868 = vpop.f32.mrb[0].mxu0
        %v1869 = vadd.f32 0.0, %v1868
        %v1870 = vpop.f32.mrb[0].mxu0
        %1871 = vmatprep.mubr.bf16.mxu0 0
        %1872 = vmatmul.mubr.bf16.gmra.mrb[0].mxu0 %v1759
        %v1873 = vpop.f32.mrb[0].mxu0
        %v1874 = vadd.f32 0.0, %v1873
        %v1875 = vpop.f32.mrb[0].mxu0
        %v1876 = vpop.f32.mrb[0].mxu0
        %v1877 = vadd.f32 0.0, %v1876
        %v1878 = vpop.f32.mrb[0].mxu0
        %1879 = vmatprep.mubr.bf16.mxu0 0
        %1880 = vmatmul.mubr.bf16.gmra.mrb[0].mxu0 %v1762
        %v1881 = vpop.f32.mrb[0].mxu0
        %v1882 = vadd.f32 0.0, %v1881
        %v1883 = vpop.f32.mrb[0].mxu0
        %v1884 = vpop.f32.mrb[0].mxu0
        %v1885 = vadd.f32 0.0, %v1884
        %v1886 = vpop.f32.mrb[0].mxu0
        %1887 = vmatprep.mubr.bf16.mxu0 0
        %1888 = vmatmul.mubr.bf16.gmra.mrb[0].mxu0 %v1765
        %v1889 = vpop.f32.mrb[0].mxu0
        %v1890 = vadd.f32 0.0, %v1889
        %v1891 = vpop.f32.mrb[0].mxu0
        %v1892 = vpop.f32.mrb[0].mxu0
        %v1893 = vadd.f32 0.0, %v1892
        %v1894 = vpop.f32.mrb[0].mxu0
        %1895 = vmatprep.mubr.bf16.mxu0 0
        %1896 = vmatmul.mubr.bf16.gmra.mrb[0].mxu0 %v1768
        %v1897 = vpop.f32.mrb[0].mxu0
        %v1898 = vadd.f32 0.0, %v1897
        %v1899 = vpop.f32.mrb[0].mxu0
        %v1900 = vpop.f32.mrb[0].mxu0
        %v1901 = vadd.f32 0.0, %v1900
        %v1902 = vpop.f32.mrb[0].mxu0
        %1903 = vmatprep.mubr.bf16.mxu0 0
        %1904 = vmatmul.mubr.bf16.gmra.mrb[0].mxu0 %v1771
        %v1905 = vpop.f32.mrb[0].mxu0
        %v1906 = vadd.f32 0.0, %v1905
        %v1907 = vpop.f32.mrb[0].mxu0
        %v1908 = vpop.f32.mrb[0].mxu0
        %v1909 = vadd.f32 0.0, %v1908
        %v1910 = vpop.f32.mrb[0].mxu0
        %1911 = vmatprep.mubr.bf16.mxu0 0
        %1912 = vmatmul.mubr.bf16.gmra.mrb[0].mxu0 %v1774
        %v1913 = vpop.f32.mrb[0].mxu0
        %v1914 = vadd.f32 0.0, %v1913
        %v1915 = vpop.f32.mrb[0].mxu0
        %v1916 = vpop.f32.mrb[0].mxu0
        %v1917 = vadd.f32 0.0, %v1916
        %v1918 = vpop.f32.mrb[0].mxu0
        %1919 = vmatprep.mubr.bf16.mxu0 0
        %1920 = vmatmul.mubr.bf16.gmra.mrb[0].mxu0 %v1777
        %v1921 = vpop.f32.mrb[0].mxu0
        %v1922 = vadd.f32 0.0, %v1921
        %v1923 = vpop.f32.mrb[0].mxu0
        %v1924 = vpop.f32.mrb[0].mxu0
        %v1925 = vadd.f32 0.0, %v1924
        %v1926 = vpop.f32.mrb[0].mxu0
        %1927 = vmatprep.mubr.bf16.mxu0 0
        %1928 = vmatmul.mubr.bf16.gmra.mrb[0].mxu0 %v1780
        %v1929 = vpop.f32.mrb[0].mxu0
        %v1930 = vadd.f32 0.0, %v1929
        %v1931 = vpop.f32.mrb[0].mxu0
        %v1932 = vpop.f32.mrb[0].mxu0
        %v1933 = vadd.f32 0.0, %v1932
        %v1934 = vpop.f32.mrb[0].mxu0
        %1935 = vmatprep.mubr.bf16.mxu0 0
        %1936 = vmatmul.mubr.bf16.gmra.mrb[0].mxu0 %v1783
        %v1937 = vpop.f32.mrb[0].mxu0
        %v1938 = vadd.f32 0.0, %v1937
        %v1939 = vpop.f32.mrb[0].mxu0
        %v1940 = vpop.f32.mrb[0].mxu0
        %v1941 = vadd.f32 0.0, %v1940
        %v1942 = vpop.f32.mrb[0].mxu0
        %1943 = vmatprep.mubr.bf16.mxu0 0
        %1944 = vmatmul.mubr.bf16.gmra.mrb[0].mxu0 %v1786
        %v1945 = vpop.f32.mrb[0].mxu0
        %v1946 = vadd.f32 0.0, %v1945
        %v1947 = vpop.f32.mrb[0].mxu0
        %v1948 = vpop.f32.mrb[0].mxu0
        %v1949 = vadd.f32 0.0, %v1948
        %v1950 = vpop.f32.mrb[0].mxu0
        %1951 = vdwg.mxu0
        %v1952 = vadd.f32 %v1574, %v1826
        %v1953 = vadd.f32 %v1575, %v1829
        %v1954 = vadd.f32 %v1576, %v1834
        %v1955 = vadd.f32 %v1577, %v1837
        %v1956 = vadd.f32 %v1578, %v1842
        %v1957 = vadd.f32 %v1579, %v1845
        %v1958 = vadd.f32 %v1580, %v1850
        %v1959 = vadd.f32 %v1581, %v1853
        %v1960 = vadd.f32 %v1582, %v1858
        %v1961 = vadd.f32 %v1583, %v1861
        %v1962 = vadd.f32 %v1584, %v1866
        %v1963 = vadd.f32 %v1585, %v1869
        %v1964 = vadd.f32 %v1586, %v1874
        %v1965 = vadd.f32 %v1587, %v1877
        %v1966 = vadd.f32 %v1588, %v1882
        %v1967 = vadd.f32 %v1589, %v1885
        %v1968 = vadd.f32 %v1590, %v1890
        %v1969 = vadd.f32 %v1591, %v1893
        %v1970 = vadd.f32 %v1592, %v1898
        %v1971 = vadd.f32 %v1593, %v1901
        %v1972 = vadd.f32 %v1594, %v1906
        %v1973 = vadd.f32 %v1595, %v1909
        %v1974 = vadd.f32 %v1596, %v1914
        %v1975 = vadd.f32 %v1597, %v1917
        %v1976 = vadd.f32 %v1598, %v1922
        %v1977 = vadd.f32 %v1599, %v1925
        %v1978 = vadd.f32 %v1600, %v1930
        %v1979 = vadd.f32 %v1601, %v1933
        %v1980 = vadd.f32 %v1602, %v1938
        %v1981 = vadd.f32 %v1603, %v1941
        %v1982 = vadd.f32 %v1604, %v1946
        %v1983 = vadd.f32 %v1605, %v1949
        %s1984 = scalar_lea.vmem %s1, 8
        %v1985 = vld [vmem:[%s1984] sm:$0x3]
        %v1987 = vshrl.u32 %v1610, 16
        %v1989 = vrot.slane %v1987, 4
        %v1990 = vshll.u32 %v1610, 16
        %v1992 = vrot.slane %v1990, 5
        %v1993 = vor.u32 %v1989, %v1992
        %v1994 = vrot.slane %v1993, 4
        %v1996 = vshll.u32 %v1611, 16
        %v1998 = vrot.slane %v1996, 5
        %v1999 = vsel %vm242, %v1994, %v1998
        %v2000 = vshrl.u32 %v1611, 16
        %v2002 = vrot.slane %v2000, 4
        %v2003 = vor.u32 %v2002, %v1998
        %v2004 = vrot.slane %v2003, 4
        %v2006 = vshll.u32 %v1612, 16
        %v2008 = vrot.slane %v2006, 5
        %v2009 = vsel %vm242, %v2004, %v2008
        %v2011 = vshrl.u32 %v1613, 16
        %v2013 = vrot.slane %v2011, 4
        %v2014 = vshll.u32 %v1613, 16
        %v2016 = vrot.slane %v2014, 5
        %v2017 = vor.u32 %v2013, %v2016
        %v2018 = vrot.slane %v2017, 4
        %v2020 = vshll.u32 %v1614, 16
        %v2022 = vrot.slane %v2020, 5
        %v2023 = vsel %vm242, %v2018, %v2022
        %v2024 = vshrl.u32 %v1614, 16
        %v2026 = vrot.slane %v2024, 4
        %v2027 = vor.u32 %v2026, %v2022
        %v2028 = vrot.slane %v2027, 4
        %v2030 = vshll.u32 %v1615, 16
        %v2032 = vrot.slane %v2030, 5
        %v2033 = vsel %vm242, %v2028, %v2032
        %v2035 = vshrl.u32 %v1616, 16
        %v2037 = vrot.slane %v2035, 4
        %v2038 = vshll.u32 %v1616, 16
        %v2040 = vrot.slane %v2038, 5
        %v2041 = vor.u32 %v2037, %v2040
        %v2042 = vrot.slane %v2041, 4
        %v2044 = vshll.u32 %v1617, 16
        %v2046 = vrot.slane %v2044, 5
        %v2047 = vsel %vm242, %v2042, %v2046
        %v2048 = vshrl.u32 %v1617, 16
        %v2050 = vrot.slane %v2048, 4
        %v2051 = vor.u32 %v2050, %v2046
        %v2052 = vrot.slane %v2051, 4
        %v2054 = vshll.u32 %v1618, 16
        %v2056 = vrot.slane %v2054, 5
        %v2057 = vsel %vm242, %v2052, %v2056
        %v2059 = vshrl.u32 %v1619, 16
        %v2061 = vrot.slane %v2059, 4
        %v2062 = vshll.u32 %v1619, 16
        %v2064 = vrot.slane %v2062, 5
        %v2065 = vor.u32 %v2061, %v2064
        %v2066 = vrot.slane %v2065, 4
        %v2068 = vshll.u32 %v1620, 16
        %v2070 = vrot.slane %v2068, 5
        %v2071 = vsel %vm242, %v2066, %v2070
        %v2072 = vshrl.u32 %v1620, 16
        %v2074 = vrot.slane %v2072, 4
        %v2075 = vor.u32 %v2074, %v2070
        %v2076 = vrot.slane %v2075, 4
        %v2078 = vshll.u32 %v1621, 16
        %v2080 = vrot.slane %v2078, 5
        %v2081 = vsel %vm242, %v2076, %v2080
        %v2083 = vshrl.u32 %v1622, 16
        %v2085 = vrot.slane %v2083, 4
        %v2086 = vshll.u32 %v1622, 16
        %v2088 = vrot.slane %v2086, 5
        %v2089 = vor.u32 %v2085, %v2088
        %v2090 = vrot.slane %v2089, 4
        %v2092 = vshll.u32 %v1623, 16
        %v2094 = vrot.slane %v2092, 5
        %v2095 = vsel %vm242, %v2090, %v2094
        %v2096 = vshrl.u32 %v1623, 16
        %v2098 = vrot.slane %v2096, 4
        %v2099 = vor.u32 %v2098, %v2094
        %v2100 = vrot.slane %v2099, 4
        %v2102 = vshll.u32 %v1624, 16
        %v2104 = vrot.slane %v2102, 5
        %v2105 = vsel %vm242, %v2100, %v2104
        %v2107 = vshrl.u32 %v1625, 16
        %v2109 = vrot.slane %v2107, 4
        %v2110 = vshll.u32 %v1625, 16
        %v2112 = vrot.slane %v2110, 5
        %v2113 = vor.u32 %v2109, %v2112
        %v2114 = vrot.slane %v2113, 4
        %v2116 = vshll.u32 %v1626, 16
        %v2118 = vrot.slane %v2116, 5
        %v2119 = vsel %vm242, %v2114, %v2118
        %v2120 = vshrl.u32 %v1626, 16
        %v2122 = vrot.slane %v2120, 4
        %v2123 = vor.u32 %v2122, %v2118
        %v2124 = vrot.slane %v2123, 4
        %v2126 = vshll.u32 %v1627, 16
        %v2128 = vrot.slane %v2126, 5
        %v2129 = vsel %vm242, %v2124, %v2128
        %v2131 = vshrl.u32 %v1628, 16
        %v2133 = vrot.slane %v2131, 4
        %v2134 = vshll.u32 %v1628, 16
        %v2136 = vrot.slane %v2134, 5
        %v2137 = vor.u32 %v2133, %v2136
        %v2138 = vrot.slane %v2137, 4
        %v2140 = vshll.u32 %v1629, 16
        %v2142 = vrot.slane %v2140, 5
        %v2143 = vsel %vm242, %v2138, %v2142
        %v2144 = vshrl.u32 %v1629, 16
        %v2146 = vrot.slane %v2144, 4
        %v2147 = vor.u32 %v2146, %v2142
        %v2148 = vrot.slane %v2147, 4
        %v2150 = vshll.u32 %v1630, 16
        %v2152 = vrot.slane %v2150, 5
        %v2153 = vsel %vm242, %v2148, %v2152
        %v2155 = vshrl.u32 %v1631, 16
        %v2157 = vrot.slane %v2155, 4
        %v2158 = vshll.u32 %v1631, 16
        %v2160 = vrot.slane %v2158, 5
        %v2161 = vor.u32 %v2157, %v2160
        %v2162 = vrot.slane %v2161, 4
        %v2164 = vshll.u32 %v1632, 16
        %v2166 = vrot.slane %v2164, 5
        %v2167 = vsel %vm242, %v2162, %v2166
        %v2168 = vshrl.u32 %v1632, 16
        %v2170 = vrot.slane %v2168, 4
        %v2171 = vor.u32 %v2170, %v2166
        %v2172 = vrot.slane %v2171, 4
        %v2174 = vshll.u32 %v1633, 16
        %v2176 = vrot.slane %v2174, 5
        %v2177 = vsel %vm242, %v2172, %v2176
        %v2179 = vshrl.u32 %v1634, 16
        %v2181 = vrot.slane %v2179, 4
        %v2182 = vshll.u32 %v1634, 16
        %v2184 = vrot.slane %v2182, 5
        %v2185 = vor.u32 %v2181, %v2184
        %v2186 = vrot.slane %v2185, 4
        %v2188 = vshll.u32 %v1635, 16
        %v2190 = vrot.slane %v2188, 5
        %v2191 = vsel %vm242, %v2186, %v2190
        %v2192 = vshrl.u32 %v1635, 16
        %v2194 = vrot.slane %v2192, 4
        %v2195 = vor.u32 %v2194, %v2190
        %v2196 = vrot.slane %v2195, 4
        %v2198 = vshll.u32 %v1636, 16
        %v2200 = vrot.slane %v2198, 5
        %v2201 = vsel %vm242, %v2196, %v2200
        %v2203 = vshrl.u32 %v1637, 16
        %v2205 = vrot.slane %v2203, 4
        %v2206 = vshll.u32 %v1637, 16
        %v2208 = vrot.slane %v2206, 5
        %v2209 = vor.u32 %v2205, %v2208
        %v2210 = vrot.slane %v2209, 4
        %v2212 = vshll.u32 %v1638, 16
        %v2214 = vrot.slane %v2212, 5
        %v2215 = vsel %vm242, %v2210, %v2214
        %v2216 = vshrl.u32 %v1638, 16
        %v2218 = vrot.slane %v2216, 4
        %v2219 = vor.u32 %v2218, %v2214
        %v2220 = vrot.slane %v2219, 4
        %v2222 = vshll.u32 %v1639, 16
        %v2224 = vrot.slane %v2222, 5
        %v2225 = vsel %vm242, %v2220, %v2224
        %v2227 = vshrl.u32 %v1640, 16
        %v2229 = vrot.slane %v2227, 4
        %v2230 = vshll.u32 %v1640, 16
        %v2232 = vrot.slane %v2230, 5
        %v2233 = vor.u32 %v2229, %v2232
        %v2234 = vrot.slane %v2233, 4
        %v2236 = vshll.u32 %v1641, 16
        %v2238 = vrot.slane %v2236, 5
        %v2239 = vsel %vm242, %v2234, %v2238
        %v2240 = vshrl.u32 %v1641, 16
        %v2242 = vrot.slane %v2240, 4
        %v2243 = vor.u32 %v2242, %v2238
        %v2244 = vrot.slane %v2243, 4
        %v2246 = vshll.u32 %v1642, 16
        %v2248 = vrot.slane %v2246, 5
        %v2249 = vsel %vm242, %v2244, %v2248
        %v2251 = vshrl.u32 %v1643, 16
        %v2253 = vrot.slane %v2251, 4
        %v2254 = vshll.u32 %v1643, 16
        %v2256 = vrot.slane %v2254, 5
        %v2257 = vor.u32 %v2253, %v2256
        %v2258 = vrot.slane %v2257, 4
        %v2260 = vshll.u32 %v1644, 16
        %v2262 = vrot.slane %v2260, 5
        %v2263 = vsel %vm242, %v2258, %v2262
        %v2264 = vshrl.u32 %v1644, 16
        %v2266 = vrot.slane %v2264, 4
        %v2267 = vor.u32 %v2266, %v2262
        %v2268 = vrot.slane %v2267, 4
        %v2270 = vshll.u32 %v1645, 16
        %v2272 = vrot.slane %v2270, 5
        %v2273 = vsel %vm242, %v2268, %v2272
        %v2275 = vshrl.u32 %v1646, 16
        %v2277 = vrot.slane %v2275, 4
        %v2278 = vshll.u32 %v1646, 16
        %v2280 = vrot.slane %v2278, 5
        %v2281 = vor.u32 %v2277, %v2280
        %v2282 = vrot.slane %v2281, 4
        %v2284 = vshll.u32 %v1647, 16
        %v2286 = vrot.slane %v2284, 5
        %v2287 = vsel %vm242, %v2282, %v2286
        %v2288 = vshrl.u32 %v1647, 16
        %v2290 = vrot.slane %v2288, 4
        %v2291 = vor.u32 %v2290, %v2286
        %v2292 = vrot.slane %v2291, 4
        %v2294 = vshll.u32 %v1648, 16
        %v2296 = vrot.slane %v2294, 5
        %v2297 = vsel %vm242, %v2292, %v2296
        %v2299 = vshrl.u32 %v1649, 16
        %v2301 = vrot.slane %v2299, 4
        %v2302 = vshll.u32 %v1649, 16
        %v2304 = vrot.slane %v2302, 5
        %v2305 = vor.u32 %v2301, %v2304
        %v2306 = vrot.slane %v2305, 4
        %v2308 = vshll.u32 %v1650, 16
        %v2310 = vrot.slane %v2308, 5
        %v2311 = vsel %vm242, %v2306, %v2310
        %v2312 = vshrl.u32 %v1650, 16
        %v2314 = vrot.slane %v2312, 4
        %v2315 = vor.u32 %v2314, %v2310
        %v2316 = vrot.slane %v2315, 4
        %v2318 = vshll.u32 %v1651, 16
        %v2320 = vrot.slane %v2318, 5
        %v2321 = vsel %vm242, %v2316, %v2320
        %v2323 = vshrl.u32 %v1652, 16
        %v2325 = vrot.slane %v2323, 4
        %v2326 = vshll.u32 %v1652, 16
        %v2328 = vrot.slane %v2326, 5
        %v2329 = vor.u32 %v2325, %v2328
        %v2330 = vrot.slane %v2329, 4
        %v2332 = vshll.u32 %v1653, 16
        %v2334 = vrot.slane %v2332, 5
        %v2335 = vsel %vm242, %v2330, %v2334
        %v2336 = vshrl.u32 %v1653, 16
        %v2338 = vrot.slane %v2336, 4
        %v2339 = vor.u32 %v2338, %v2334
        %v2340 = vrot.slane %v2339, 4
        %v2342 = vshll.u32 %v1654, 16
        %v2344 = vrot.slane %v2342, 5
        %v2345 = vsel %vm242, %v2340, %v2344
        %v2347 = vshrl.u32 %v1655, 16
        %v2349 = vrot.slane %v2347, 4
        %v2350 = vshll.u32 %v1655, 16
        %v2352 = vrot.slane %v2350, 5
        %v2353 = vor.u32 %v2349, %v2352
        %v2354 = vrot.slane %v2353, 4
        %v2356 = vshll.u32 %v1656, 16
        %v2358 = vrot.slane %v2356, 5
        %v2359 = vsel %vm242, %v2354, %v2358
        %v2360 = vshrl.u32 %v1656, 16
        %v2362 = vrot.slane %v2360, 4
        %v2363 = vor.u32 %v2362, %v2358
        %v2364 = vrot.slane %v2363, 4
        %v2366 = vshll.u32 %v1657, 16
        %v2368 = vrot.slane %v2366, 5
        %v2369 = vsel %vm242, %v2364, %v2368
        %v2370 = vunpack.c.l.b16 %v1999
        %v2371 = vunpack.c.l.b16 %v2009
        %v2372 = vunpack.c.l.b16 %v2023
        %v2373 = vunpack.c.l.b16 %v2033
        %v2374 = vunpack.c.l.b16 %v2047
        %v2375 = vunpack.c.l.b16 %v2057
        %v2376 = vunpack.c.l.b16 %v2071
        %v2377 = vunpack.c.l.b16 %v2081
        %v2378 = vunpack.c.l.b16 %v2095
        %v2379 = vunpack.c.l.b16 %v2105
        %v2380 = vunpack.c.l.b16 %v2119
        %v2381 = vunpack.c.l.b16 %v2129
        %v2382 = vunpack.c.l.b16 %v2143
        %v2383 = vunpack.c.l.b16 %v2153
        %v2384 = vunpack.c.l.b16 %v2167
        %v2385 = vunpack.c.l.b16 %v2177
        %v2386 = vunpack.c.l.b16 %v2191
        %v2387 = vunpack.c.l.b16 %v2201
        %v2388 = vunpack.c.l.b16 %v2215
        %v2389 = vunpack.c.l.b16 %v2225
        %v2390 = vunpack.c.l.b16 %v2239
        %v2391 = vunpack.c.l.b16 %v2249
        %v2392 = vunpack.c.l.b16 %v2263
        %v2393 = vunpack.c.l.b16 %v2273
        %v2394 = vunpack.c.l.b16 %v2287
        %v2395 = vunpack.c.l.b16 %v2297
        %v2396 = vunpack.c.l.b16 %v2311
        %v2397 = vunpack.c.l.b16 %v2321
        %v2398 = vunpack.c.l.b16 %v2335
        %v2399 = vunpack.c.l.b16 %v2345
        %v2400 = vunpack.c.l.b16 %v2359
        %v2401 = vunpack.c.l.b16 %v2369
        %v2402 = vpack.c.b16 %v2371, %v2370
        %v2403 = vpack.c.b16 %v2373, %v2372
        %v2404 = vpack.c.b16 %v2375, %v2374
        %v2405 = vpack.c.b16 %v2377, %v2376
        %v2406 = vpack.c.b16 %v2379, %v2378
        %v2407 = vpack.c.b16 %v2381, %v2380
        %v2408 = vpack.c.b16 %v2383, %v2382
        %v2409 = vpack.c.b16 %v2385, %v2384
        %v2410 = vpack.c.b16 %v2387, %v2386
        %v2411 = vpack.c.b16 %v2389, %v2388
        %v2412 = vpack.c.b16 %v2391, %v2390
        %v2413 = vpack.c.b16 %v2393, %v2392
        %v2414 = vpack.c.b16 %v2395, %v2394
        %v2415 = vpack.c.b16 %v2397, %v2396
        %v2416 = vpack.c.b16 %v2399, %v2398
        %v2417 = vpack.c.b16 %v2401, %v2400
        %v2419 = vsel %vm675, %v2402, 0
        %v2422 = vsel %vm675, %v2403, 0
        %v2425 = vsel %vm675, %v2404, 0
        %v2428 = vsel %vm675, %v2405, 0
        %v2431 = vsel %vm675, %v2406, 0
        %v2434 = vsel %vm675, %v2407, 0
        %v2437 = vsel %vm675, %v2408, 0
        %v2440 = vsel %vm675, %v2409, 0
        %v2443 = vsel %vm675, %v2410, 0
        %v2446 = vsel %vm675, %v2411, 0
        %v2449 = vsel %vm675, %v2412, 0
        %v2452 = vsel %vm675, %v2413, 0
        %v2455 = vsel %vm675, %v2414, 0
        %v2458 = vsel %vm675, %v2415, 0
        %v2461 = vsel %vm675, %v2416, 0
        %v2464 = vsel %vm675, %v2417, 0
        %v2467 = vsel %vm724, %v1985, 0
        %2469 = vmatprep.subr.bf16.mxu0 0
        %2470 = vmatpush1.bf16.msra.mxu0 %v2467
        %2471 = vmatprep.subr.bf16.mxu0 0
        %2472 = vmatpush1.bf16.msra.mxu0 0
        %2473 = vmatprep.subr.bf16.mxu0 0
        %2474 = vmatpush1.bf16.msra.mxu0 0
        %2475 = vmatprep.subr.bf16.mxu0 0
        %2476 = vmatpush1.bf16.msra.mxu0 0
        %2477 = vmatprep.subr.bf16.mxu0 0
        %2478 = vmatpush1.bf16.msra.mxu0 0
        %2479 = vmatprep.subr.bf16.mxu0 0
        %2480 = vmatpush1.bf16.msra.mxu0 0
        %2481 = vmatprep.subr.bf16.mxu0 0
        %2482 = vmatpush1.bf16.msra.mxu0 0
        %2483 = vmatprep.subr.bf16.mxu0 0
        %2484 = vmatpush1.bf16.msra.mxu0 0
        %2485 = vmatprep.subr.bf16.mxu0 0
        %2486 = vmatpush1.bf16.msra.mxu0 0
        %2487 = vmatprep.subr.bf16.mxu0 0
        %2488 = vmatpush1.bf16.msra.mxu0 0
        %2489 = vmatprep.subr.bf16.mxu0 0
        %2490 = vmatpush1.bf16.msra.mxu0 0
        %2491 = vmatprep.subr.bf16.mxu0 0
        %2492 = vmatpush1.bf16.msra.mxu0 0
        %2493 = vmatprep.subr.bf16.mxu0 0
        %2494 = vmatpush1.bf16.msra.mxu0 0
        %2495 = vmatprep.subr.bf16.mxu0 0
        %2496 = vmatpush1.bf16.msra.mxu0 0
        %2497 = vmatprep.subr.bf16.mxu0 0
        %2498 = vmatpush1.bf16.msra.mxu0 0
        %2499 = vmatprep.subr.bf16.mxu0 0
        %2500 = vmatpush1.bf16.msra.mxu0 0
        %2501 = vmatprep.mubr.bf16.mxu0 0
        %2502 = vmatmul.mubr.bf16.gmra.mrb[0].mxu0 %v2419
        %v2503 = vpop.f32.mrb[0].mxu0
        %v2504 = vadd.f32 0.0, %v2503
        %v2505 = vpop.f32.mrb[0].mxu0
        %v2506 = vpop.f32.mrb[0].mxu0
        %v2507 = vadd.f32 0.0, %v2506
        %v2508 = vpop.f32.mrb[0].mxu0
        %2509 = vmatprep.mubr.bf16.mxu0 0
        %2510 = vmatmul.mubr.bf16.gmra.mrb[0].mxu0 %v2422
        %v2511 = vpop.f32.mrb[0].mxu0
        %v2512 = vadd.f32 0.0, %v2511
        %v2513 = vpop.f32.mrb[0].mxu0
        %v2514 = vpop.f32.mrb[0].mxu0
        %v2515 = vadd.f32 0.0, %v2514
        %v2516 = vpop.f32.mrb[0].mxu0
        %2517 = vmatprep.mubr.bf16.mxu0 0
        %2518 = vmatmul.mubr.bf16.gmra.mrb[0].mxu0 %v2425
        %v2519 = vpop.f32.mrb[0].mxu0
        %v2520 = vadd.f32 0.0, %v2519
        %v2521 = vpop.f32.mrb[0].mxu0
        %v2522 = vpop.f32.mrb[0].mxu0
        %v2523 = vadd.f32 0.0, %v2522
        %v2524 = vpop.f32.mrb[0].mxu0
        %2525 = vmatprep.mubr.bf16.mxu0 0
        %2526 = vmatmul.mubr.bf16.gmra.mrb[0].mxu0 %v2428
        %v2527 = vpop.f32.mrb[0].mxu0
        %v2528 = vadd.f32 0.0, %v2527
        %v2529 = vpop.f32.mrb[0].mxu0
        %v2530 = vpop.f32.mrb[0].mxu0
        %v2531 = vadd.f32 0.0, %v2530
        %v2532 = vpop.f32.mrb[0].mxu0
        %2533 = vmatprep.mubr.bf16.mxu0 0
        %2534 = vmatmul.mubr.bf16.gmra.mrb[0].mxu0 %v2431
        %v2535 = vpop.f32.mrb[0].mxu0
        %v2536 = vadd.f32 0.0, %v2535
        %v2537 = vpop.f32.mrb[0].mxu0
        %v2538 = vpop.f32.mrb[0].mxu0
        %v2539 = vadd.f32 0.0, %v2538
        %v2540 = vpop.f32.mrb[0].mxu0
        %2541 = vmatprep.mubr.bf16.mxu0 0
        %2542 = vmatmul.mubr.bf16.gmra.mrb[0].mxu0 %v2434
        %v2543 = vpop.f32.mrb[0].mxu0
        %v2544 = vadd.f32 0.0, %v2543
        %v2545 = vpop.f32.mrb[0].mxu0
        %v2546 = vpop.f32.mrb[0].mxu0
        %v2547 = vadd.f32 0.0, %v2546
        %v2548 = vpop.f32.mrb[0].mxu0
        %2549 = vmatprep.mubr.bf16.mxu0 0
        %2550 = vmatmul.mubr.bf16.gmra.mrb[0].mxu0 %v2437
        %v2551 = vpop.f32.mrb[0].mxu0
        %v2552 = vadd.f32 0.0, %v2551
        %v2553 = vpop.f32.mrb[0].mxu0
        %v2554 = vpop.f32.mrb[0].mxu0
        %v2555 = vadd.f32 0.0, %v2554
        %v2556 = vpop.f32.mrb[0].mxu0
        %2557 = vmatprep.mubr.bf16.mxu0 0
        %2558 = vmatmul.mubr.bf16.gmra.mrb[0].mxu0 %v2440
        %v2559 = vpop.f32.mrb[0].mxu0
        %v2560 = vadd.f32 0.0, %v2559
        %v2561 = vpop.f32.mrb[0].mxu0
        %v2562 = vpop.f32.mrb[0].mxu0
        %v2563 = vadd.f32 0.0, %v2562
        %v2564 = vpop.f32.mrb[0].mxu0
        %2565 = vmatprep.mubr.bf16.mxu0 0
        %2566 = vmatmul.mubr.bf16.gmra.mrb[0].mxu0 %v2443
        %v2567 = vpop.f32.mrb[0].mxu0
        %v2568 = vadd.f32 0.0, %v2567
        %v2569 = vpop.f32.mrb[0].mxu0
        %v2570 = vpop.f32.mrb[0].mxu0
        %v2571 = vadd.f32 0.0, %v2570
        %v2572 = vpop.f32.mrb[0].mxu0
        %2573 = vmatprep.mubr.bf16.mxu0 0
        %2574 = vmatmul.mubr.bf16.gmra.mrb[0].mxu0 %v2446
        %v2575 = vpop.f32.mrb[0].mxu0
        %v2576 = vadd.f32 0.0, %v2575
        %v2577 = vpop.f32.mrb[0].mxu0
        %v2578 = vpop.f32.mrb[0].mxu0
        %v2579 = vadd.f32 0.0, %v2578
        %v2580 = vpop.f32.mrb[0].mxu0
        %2581 = vmatprep.mubr.bf16.mxu0 0
        %2582 = vmatmul.mubr.bf16.gmra.mrb[0].mxu0 %v2449
        %v2583 = vpop.f32.mrb[0].mxu0
        %v2584 = vadd.f32 0.0, %v2583
        %v2585 = vpop.f32.mrb[0].mxu0
        %v2586 = vpop.f32.mrb[0].mxu0
        %v2587 = vadd.f32 0.0, %v2586
        %v2588 = vpop.f32.mrb[0].mxu0
        %2589 = vmatprep.mubr.bf16.mxu0 0
        %2590 = vmatmul.mubr.bf16.gmra.mrb[0].mxu0 %v2452
        %v2591 = vpop.f32.mrb[0].mxu0
        %v2592 = vadd.f32 0.0, %v2591
        %v2593 = vpop.f32.mrb[0].mxu0
        %v2594 = vpop.f32.mrb[0].mxu0
        %v2595 = vadd.f32 0.0, %v2594
        %v2596 = vpop.f32.mrb[0].mxu0
        %2597 = vmatprep.mubr.bf16.mxu0 0
        %2598 = vmatmul.mubr.bf16.gmra.mrb[0].mxu0 %v2455
        %v2599 = vpop.f32.mrb[0].mxu0
        %v2600 = vadd.f32 0.0, %v2599
        %v2601 = vpop.f32.mrb[0].mxu0
        %v2602 = vpop.f32.mrb[0].mxu0
        %v2603 = vadd.f32 0.0, %v2602
        %v2604 = vpop.f32.mrb[0].mxu0
        %2605 = vmatprep.mubr.bf16.mxu0 0
        %2606 = vmatmul.mubr.bf16.gmra.mrb[0].mxu0 %v2458
        %v2607 = vpop.f32.mrb[0].mxu0
        %v2608 = vadd.f32 0.0, %v2607
        %v2609 = vpop.f32.mrb[0].mxu0
        %v2610 = vpop.f32.mrb[0].mxu0
        %v2611 = vadd.f32 0.0, %v2610
        %v2612 = vpop.f32.mrb[0].mxu0
        %2613 = vmatprep.mubr.bf16.mxu0 0
        %2614 = vmatmul.mubr.bf16.gmra.mrb[0].mxu0 %v2461
        %v2615 = vpop.f32.mrb[0].mxu0
        %v2616 = vadd.f32 0.0, %v2615
        %v2617 = vpop.f32.mrb[0].mxu0
        %v2618 = vpop.f32.mrb[0].mxu0
        %v2619 = vadd.f32 0.0, %v2618
        %v2620 = vpop.f32.mrb[0].mxu0
        %2621 = vmatprep.mubr.bf16.mxu0 0
        %2622 = vmatmul.mubr.bf16.gmra.mrb[0].mxu0 %v2464
        %v2623 = vpop.f32.mrb[0].mxu0
        %v2624 = vadd.f32 0.0, %v2623
        %v2625 = vpop.f32.mrb[0].mxu0
        %v2626 = vpop.f32.mrb[0].mxu0
        %v2627 = vadd.f32 0.0, %v2626
        %v2628 = vpop.f32.mrb[0].mxu0
        %2629 = vdwg.mxu0
        %v2630 = vadd.f32 %v1952, %v2504
        %v2631 = vadd.f32 %v1953, %v2507
        %v2632 = vadd.f32 %v1954, %v2512
        %v2633 = vadd.f32 %v1955, %v2515
        %v2634 = vadd.f32 %v1956, %v2520
        %v2635 = vadd.f32 %v1957, %v2523
        %v2636 = vadd.f32 %v1958, %v2528
        %v2637 = vadd.f32 %v1959, %v2531
        %v2638 = vadd.f32 %v1960, %v2536
        %v2639 = vadd.f32 %v1961, %v2539
        %v2640 = vadd.f32 %v1962, %v2544
        %v2641 = vadd.f32 %v1963, %v2547
        %v2642 = vadd.f32 %v1964, %v2552
        %v2643 = vadd.f32 %v1965, %v2555
        %v2644 = vadd.f32 %v1966, %v2560
        %v2645 = vadd.f32 %v1967, %v2563
        %v2646 = vadd.f32 %v1968, %v2568
        %v2647 = vadd.f32 %v1969, %v2571
        %v2648 = vadd.f32 %v1970, %v2576
        %v2649 = vadd.f32 %v1971, %v2579
        %v2650 = vadd.f32 %v1972, %v2584
        %v2651 = vadd.f32 %v1973, %v2587
        %v2652 = vadd.f32 %v1974, %v2592
        %v2653 = vadd.f32 %v1975, %v2595
        %v2654 = vadd.f32 %v1976, %v2600
        %v2655 = vadd.f32 %v1977, %v2603
        %v2656 = vadd.f32 %v1978, %v2608
        %v2657 = vadd.f32 %v1979, %v2611
        %v2658 = vadd.f32 %v1980, %v2616
        %v2659 = vadd.f32 %v1981, %v2619
        %v2660 = vadd.f32 %v1982, %v2624
        %v2661 = vadd.f32 %v1983, %v2627
        %s2662 = scalar_lea.vmem %s1, 10
        %v2663 = vld [vmem:[%s2662] sm:$0x3]
        %v2680 = vrot.slane %v1610, 5
        %v2681 = vrot.slane %v2680, 4
        %v2682 = vrot.slane %v1611, 5
        %v2683 = vsel %vm1201, %v2681, %v2682
        %v2684 = vrot.slane %v2682, 4
        %v2685 = vrot.slane %v1612, 5
        %v2686 = vsel %vm1201, %v2684, %v2685
        %v2687 = vrot.slane %v1613, 5
        %v2688 = vrot.slane %v2687, 4
        %v2689 = vrot.slane %v1614, 5
        %v2690 = vsel %vm1201, %v2688, %v2689
        %v2691 = vrot.slane %v2689, 4
        %v2692 = vrot.slane %v1615, 5
        %v2693 = vsel %vm1201, %v2691, %v2692
        %v2694 = vrot.slane %v1616, 5
        %v2695 = vrot.slane %v2694, 4
        %v2696 = vrot.slane %v1617, 5
        %v2697 = vsel %vm1201, %v2695, %v2696
        %v2698 = vrot.slane %v2696, 4
        %v2699 = vrot.slane %v1618, 5
        %v2700 = vsel %vm1201, %v2698, %v2699
        %v2701 = vrot.slane %v1619, 5
        %v2702 = vrot.slane %v2701, 4
        %v2703 = vrot.slane %v1620, 5
        %v2704 = vsel %vm1201, %v2702, %v2703
        %v2705 = vrot.slane %v2703, 4
        %v2706 = vrot.slane %v1621, 5
        %v2707 = vsel %vm1201, %v2705, %v2706
        %v2708 = vrot.slane %v1622, 5
        %v2709 = vrot.slane %v2708, 4
        %v2710 = vrot.slane %v1623, 5
        %v2711 = vsel %vm1201, %v2709, %v2710
        %v2712 = vrot.slane %v2710, 4
        %v2713 = vrot.slane %v1624, 5
        %v2714 = vsel %vm1201, %v2712, %v2713
        %v2715 = vrot.slane %v1625, 5
        %v2716 = vrot.slane %v2715, 4
        %v2717 = vrot.slane %v1626, 5
        %v2718 = vsel %vm1201, %v2716, %v2717
        %v2719 = vrot.slane %v2717, 4
        %v2720 = vrot.slane %v1627, 5
        %v2721 = vsel %vm1201, %v2719, %v2720
        %v2722 = vrot.slane %v1628, 5
        %v2723 = vrot.slane %v2722, 4
        %v2724 = vrot.slane %v1629, 5
        %v2725 = vsel %vm1201, %v2723, %v2724
        %v2726 = vrot.slane %v2724, 4
        %v2727 = vrot.slane %v1630, 5
        %v2728 = vsel %vm1201, %v2726, %v2727
        %v2729 = vrot.slane %v1631, 5
        %v2730 = vrot.slane %v2729, 4
        %v2731 = vrot.slane %v1632, 5
        %v2732 = vsel %vm1201, %v2730, %v2731
        %v2733 = vrot.slane %v2731, 4
        %v2734 = vrot.slane %v1633, 5
        %v2735 = vsel %vm1201, %v2733, %v2734
        %v2736 = vrot.slane %v1634, 5
        %v2737 = vrot.slane %v2736, 4
        %v2738 = vrot.slane %v1635, 5
        %v2739 = vsel %vm1201, %v2737, %v2738
        %v2740 = vrot.slane %v2738, 4
        %v2741 = vrot.slane %v1636, 5
        %v2742 = vsel %vm1201, %v2740, %v2741
        %v2743 = vrot.slane %v1637, 5
        %v2744 = vrot.slane %v2743, 4
        %v2745 = vrot.slane %v1638, 5
        %v2746 = vsel %vm1201, %v2744, %v2745
        %v2747 = vrot.slane %v2745, 4
        %v2748 = vrot.slane %v1639, 5
        %v2749 = vsel %vm1201, %v2747, %v2748
        %v2750 = vrot.slane %v1640, 5
        %v2751 = vrot.slane %v2750, 4
        %v2752 = vrot.slane %v1641, 5
        %v2753 = vsel %vm1201, %v2751, %v2752
        %v2754 = vrot.slane %v2752, 4
        %v2755 = vrot.slane %v1642, 5
        %v2756 = vsel %vm1201, %v2754, %v2755
        %v2757 = vrot.slane %v1643, 5
        %v2758 = vrot.slane %v2757, 4
        %v2759 = vrot.slane %v1644, 5
        %v2760 = vsel %vm1201, %v2758, %v2759
        %v2761 = vrot.slane %v2759, 4
        %v2762 = vrot.slane %v1645, 5
        %v2763 = vsel %vm1201, %v2761, %v2762
        %v2764 = vrot.slane %v1646, 5
        %v2765 = vrot.slane %v2764, 4
        %v2766 = vrot.slane %v1647, 5
        %v2767 = vsel %vm1201, %v2765, %v2766
        %v2768 = vrot.slane %v2766, 4
        %v2769 = vrot.slane %v1648, 5
        %v2770 = vsel %vm1201, %v2768, %v2769
        %v2771 = vrot.slane %v1649, 5
        %v2772 = vrot.slane %v2771, 4
        %v2773 = vrot.slane %v1650, 5
        %v2774 = vsel %vm1201, %v2772, %v2773
        %v2775 = vrot.slane %v2773, 4
        %v2776 = vrot.slane %v1651, 5
        %v2777 = vsel %vm1201, %v2775, %v2776
        %v2778 = vrot.slane %v1652, 5
        %v2779 = vrot.slane %v2778, 4
        %v2780 = vrot.slane %v1653, 5
        %v2781 = vsel %vm1201, %v2779, %v2780
        %v2782 = vrot.slane %v2780, 4
        %v2783 = vrot.slane %v1654, 5
        %v2784 = vsel %vm1201, %v2782, %v2783
        %v2785 = vrot.slane %v1655, 5
        %v2786 = vrot.slane %v2785, 4
        %v2787 = vrot.slane %v1656, 5
        %v2788 = vsel %vm1201, %v2786, %v2787
        %v2789 = vrot.slane %v2787, 4
        %v2790 = vrot.slane %v1657, 5
        %v2791 = vsel %vm1201, %v2789, %v2790
        %v2792 = vunpack.c.l.b16 %v2683
        %v2793 = vunpack.c.l.b16 %v2686
        %v2794 = vunpack.c.l.b16 %v2690
        %v2795 = vunpack.c.l.b16 %v2693
        %v2796 = vunpack.c.l.b16 %v2697
        %v2797 = vunpack.c.l.b16 %v2700
        %v2798 = vunpack.c.l.b16 %v2704
        %v2799 = vunpack.c.l.b16 %v2707
        %v2800 = vunpack.c.l.b16 %v2711
        %v2801 = vunpack.c.l.b16 %v2714
        %v2802 = vunpack.c.l.b16 %v2718
        %v2803 = vunpack.c.l.b16 %v2721
        %v2804 = vunpack.c.l.b16 %v2725
        %v2805 = vunpack.c.l.b16 %v2728
        %v2806 = vunpack.c.l.b16 %v2732
        %v2807 = vunpack.c.l.b16 %v2735
        %v2808 = vunpack.c.l.b16 %v2739
        %v2809 = vunpack.c.l.b16 %v2742
        %v2810 = vunpack.c.l.b16 %v2746
        %v2811 = vunpack.c.l.b16 %v2749
        %v2812 = vunpack.c.l.b16 %v2753
        %v2813 = vunpack.c.l.b16 %v2756
        %v2814 = vunpack.c.l.b16 %v2760
        %v2815 = vunpack.c.l.b16 %v2763
        %v2816 = vunpack.c.l.b16 %v2767
        %v2817 = vunpack.c.l.b16 %v2770
        %v2818 = vunpack.c.l.b16 %v2774
        %v2819 = vunpack.c.l.b16 %v2777
        %v2820 = vunpack.c.l.b16 %v2781
        %v2821 = vunpack.c.l.b16 %v2784
        %v2822 = vunpack.c.l.b16 %v2788
        %v2823 = vunpack.c.l.b16 %v2791
        %v2824 = vpack.c.b16 %v2793, %v2792
        %v2825 = vpack.c.b16 %v2795, %v2794
        %v2826 = vpack.c.b16 %v2797, %v2796
        %v2827 = vpack.c.b16 %v2799, %v2798
        %v2828 = vpack.c.b16 %v2801, %v2800
        %v2829 = vpack.c.b16 %v2803, %v2802
        %v2830 = vpack.c.b16 %v2805, %v2804
        %v2831 = vpack.c.b16 %v2807, %v2806
        %v2832 = vpack.c.b16 %v2809, %v2808
        %v2833 = vpack.c.b16 %v2811, %v2810
        %v2834 = vpack.c.b16 %v2813, %v2812
        %v2835 = vpack.c.b16 %v2815, %v2814
        %v2836 = vpack.c.b16 %v2817, %v2816
        %v2837 = vpack.c.b16 %v2819, %v2818
        %v2838 = vpack.c.b16 %v2821, %v2820
        %v2839 = vpack.c.b16 %v2823, %v2822
        %v2841 = vsel %vm675, %v2824, 0
        %v2844 = vsel %vm675, %v2825, 0
        %v2847 = vsel %vm675, %v2826, 0
        %v2850 = vsel %vm675, %v2827, 0
        %v2853 = vsel %vm675, %v2828, 0
        %v2856 = vsel %vm675, %v2829, 0
        %v2859 = vsel %vm675, %v2830, 0
        %v2862 = vsel %vm675, %v2831, 0
        %v2865 = vsel %vm675, %v2832, 0
        %v2868 = vsel %vm675, %v2833, 0
        %v2871 = vsel %vm675, %v2834, 0
        %v2874 = vsel %vm675, %v2835, 0
        %v2877 = vsel %vm675, %v2836, 0
        %v2880 = vsel %vm675, %v2837, 0
        %v2883 = vsel %vm675, %v2838, 0
        %v2886 = vsel %vm675, %v2839, 0
        %v2889 = vsel %vm724, %v2663, 0
        %2891 = vmatprep.subr.bf16.mxu0 0
        %2892 = vmatpush1.bf16.msra.mxu0 %v2889
        %2893 = vmatprep.subr.bf16.mxu0 0
        %2894 = vmatpush1.bf16.msra.mxu0 0
        %2895 = vmatprep.subr.bf16.mxu0 0
        %2896 = vmatpush1.bf16.msra.mxu0 0
        %2897 = vmatprep.subr.bf16.mxu0 0
        %2898 = vmatpush1.bf16.msra.mxu0 0
        %2899 = vmatprep.subr.bf16.mxu0 0
        %2900 = vmatpush1.bf16.msra.mxu0 0
        %2901 = vmatprep.subr.bf16.mxu0 0
        %2902 = vmatpush1.bf16.msra.mxu0 0
        %2903 = vmatprep.subr.bf16.mxu0 0
        %2904 = vmatpush1.bf16.msra.mxu0 0
        %2905 = vmatprep.subr.bf16.mxu0 0
        %2906 = vmatpush1.bf16.msra.mxu0 0
        %2907 = vmatprep.subr.bf16.mxu0 0
        %2908 = vmatpush1.bf16.msra.mxu0 0
        %2909 = vmatprep.subr.bf16.mxu0 0
        %2910 = vmatpush1.bf16.msra.mxu0 0
        %2911 = vmatprep.subr.bf16.mxu0 0
        %2912 = vmatpush1.bf16.msra.mxu0 0
        %2913 = vmatprep.subr.bf16.mxu0 0
        %2914 = vmatpush1.bf16.msra.mxu0 0
        %2915 = vmatprep.subr.bf16.mxu0 0
        %2916 = vmatpush1.bf16.msra.mxu0 0
        %2917 = vmatprep.subr.bf16.mxu0 0
        %2918 = vmatpush1.bf16.msra.mxu0 0
        %2919 = vmatprep.subr.bf16.mxu0 0
        %2920 = vmatpush1.bf16.msra.mxu0 0
        %2921 = vmatprep.subr.bf16.mxu0 0
        %2922 = vmatpush1.bf16.msra.mxu0 0
        %2923 = vmatprep.mubr.bf16.mxu0 0
        %2924 = vmatmul.mubr.bf16.gmra.mrb[0].mxu0 %v2841
        %v2925 = vpop.f32.mrb[0].mxu0
        %v2926 = vadd.f32 0.0, %v2925
        %v2927 = vpop.f32.mrb[0].mxu0
        %v2928 = vpop.f32.mrb[0].mxu0
        %v2929 = vadd.f32 0.0, %v2928
        %v2930 = vpop.f32.mrb[0].mxu0
        %2931 = vmatprep.mubr.bf16.mxu0 0
        %2932 = vmatmul.mubr.bf16.gmra.mrb[0].mxu0 %v2844
        %v2933 = vpop.f32.mrb[0].mxu0
        %v2934 = vadd.f32 0.0, %v2933
        %v2935 = vpop.f32.mrb[0].mxu0
        %v2936 = vpop.f32.mrb[0].mxu0
        %v2937 = vadd.f32 0.0, %v2936
        %v2938 = vpop.f32.mrb[0].mxu0
        %2939 = vmatprep.mubr.bf16.mxu0 0
        %2940 = vmatmul.mubr.bf16.gmra.mrb[0].mxu0 %v2847
        %v2941 = vpop.f32.mrb[0].mxu0
        %v2942 = vadd.f32 0.0, %v2941
        %v2943 = vpop.f32.mrb[0].mxu0
        %v2944 = vpop.f32.mrb[0].mxu0
        %v2945 = vadd.f32 0.0, %v2944
        %v2946 = vpop.f32.mrb[0].mxu0
        %2947 = vmatprep.mubr.bf16.mxu0 0
        %2948 = vmatmul.mubr.bf16.gmra.mrb[0].mxu0 %v2850
        %v2949 = vpop.f32.mrb[0].mxu0
        %v2950 = vadd.f32 0.0, %v2949
        %v2951 = vpop.f32.mrb[0].mxu0
        %v2952 = vpop.f32.mrb[0].mxu0
        %v2953 = vadd.f32 0.0, %v2952
        %v2954 = vpop.f32.mrb[0].mxu0
        %2955 = vmatprep.mubr.bf16.mxu0 0
        %2956 = vmatmul.mubr.bf16.gmra.mrb[0].mxu0 %v2853
        %v2957 = vpop.f32.mrb[0].mxu0
        %v2958 = vadd.f32 0.0, %v2957
        %v2959 = vpop.f32.mrb[0].mxu0
        %v2960 = vpop.f32.mrb[0].mxu0
        %v2961 = vadd.f32 0.0, %v2960
        %v2962 = vpop.f32.mrb[0].mxu0
        %2963 = vmatprep.mubr.bf16.mxu0 0
        %2964 = vmatmul.mubr.bf16.gmra.mrb[0].mxu0 %v2856
        %v2965 = vpop.f32.mrb[0].mxu0
        %v2966 = vadd.f32 0.0, %v2965
        %v2967 = vpop.f32.mrb[0].mxu0
        %v2968 = vpop.f32.mrb[0].mxu0
        %v2969 = vadd.f32 0.0, %v2968
        %v2970 = vpop.f32.mrb[0].mxu0
        %2971 = vmatprep.mubr.bf16.mxu0 0
        %2972 = vmatmul.mubr.bf16.gmra.mrb[0].mxu0 %v2859
        %v2973 = vpop.f32.mrb[0].mxu0
        %v2974 = vadd.f32 0.0, %v2973
        %v2975 = vpop.f32.mrb[0].mxu0
        %v2976 = vpop.f32.mrb[0].mxu0
        %v2977 = vadd.f32 0.0, %v2976
        %v2978 = vpop.f32.mrb[0].mxu0
        %2979 = vmatprep.mubr.bf16.mxu0 0
        %2980 = vmatmul.mubr.bf16.gmra.mrb[0].mxu0 %v2862
        %v2981 = vpop.f32.mrb[0].mxu0
        %v2982 = vadd.f32 0.0, %v2981
        %v2983 = vpop.f32.mrb[0].mxu0
        %v2984 = vpop.f32.mrb[0].mxu0
        %v2985 = vadd.f32 0.0, %v2984
        %v2986 = vpop.f32.mrb[0].mxu0
        %2987 = vmatprep.mubr.bf16.mxu0 0
        %2988 = vmatmul.mubr.bf16.gmra.mrb[0].mxu0 %v2865
        %v2989 = vpop.f32.mrb[0].mxu0
        %v2990 = vadd.f32 0.0, %v2989
        %v2991 = vpop.f32.mrb[0].mxu0
        %v2992 = vpop.f32.mrb[0].mxu0
        %v2993 = vadd.f32 0.0, %v2992
        %v2994 = vpop.f32.mrb[0].mxu0
        %2995 = vmatprep.mubr.bf16.mxu0 0
        %2996 = vmatmul.mubr.bf16.gmra.mrb[0].mxu0 %v2868
        %v2997 = vpop.f32.mrb[0].mxu0
        %v2998 = vadd.f32 0.0, %v2997
        %v2999 = vpop.f32.mrb[0].mxu0
        %v3000 = vpop.f32.mrb[0].mxu0
        %v3001 = vadd.f32 0.0, %v3000
        %v3002 = vpop.f32.mrb[0].mxu0
        %3003 = vmatprep.mubr.bf16.mxu0 0
        %3004 = vmatmul.mubr.bf16.gmra.mrb[0].mxu0 %v2871
        %v3005 = vpop.f32.mrb[0].mxu0
        %v3006 = vadd.f32 0.0, %v3005
        %v3007 = vpop.f32.mrb[0].mxu0
        %v3008 = vpop.f32.mrb[0].mxu0
        %v3009 = vadd.f32 0.0, %v3008
        %v3010 = vpop.f32.mrb[0].mxu0
        %3011 = vmatprep.mubr.bf16.mxu0 0
        %3012 = vmatmul.mubr.bf16.gmra.mrb[0].mxu0 %v2874
        %v3013 = vpop.f32.mrb[0].mxu0
        %v3014 = vadd.f32 0.0, %v3013
        %v3015 = vpop.f32.mrb[0].mxu0
        %v3016 = vpop.f32.mrb[0].mxu0
        %v3017 = vadd.f32 0.0, %v3016
        %v3018 = vpop.f32.mrb[0].mxu0
        %3019 = vmatprep.mubr.bf16.mxu0 0
        %3020 = vmatmul.mubr.bf16.gmra.mrb[0].mxu0 %v2877
        %v3021 = vpop.f32.mrb[0].mxu0
        %v3022 = vadd.f32 0.0, %v3021
        %v3023 = vpop.f32.mrb[0].mxu0
        %v3024 = vpop.f32.mrb[0].mxu0
        %v3025 = vadd.f32 0.0, %v3024
        %v3026 = vpop.f32.mrb[0].mxu0
        %3027 = vmatprep.mubr.bf16.mxu0 0
        %3028 = vmatmul.mubr.bf16.gmra.mrb[0].mxu0 %v2880
        %v3029 = vpop.f32.mrb[0].mxu0
        %v3030 = vadd.f32 0.0, %v3029
        %v3031 = vpop.f32.mrb[0].mxu0
        %v3032 = vpop.f32.mrb[0].mxu0
        %v3033 = vadd.f32 0.0, %v3032
        %v3034 = vpop.f32.mrb[0].mxu0
        %3035 = vmatprep.mubr.bf16.mxu0 0
        %3036 = vmatmul.mubr.bf16.gmra.mrb[0].mxu0 %v2883
        %v3037 = vpop.f32.mrb[0].mxu0
        %v3038 = vadd.f32 0.0, %v3037
        %v3039 = vpop.f32.mrb[0].mxu0
        %v3040 = vpop.f32.mrb[0].mxu0
        %v3041 = vadd.f32 0.0, %v3040
        %v3042 = vpop.f32.mrb[0].mxu0
        %3043 = vmatprep.mubr.bf16.mxu0 0
        %3044 = vmatmul.mubr.bf16.gmra.mrb[0].mxu0 %v2886
        %v3045 = vpop.f32.mrb[0].mxu0
        %v3046 = vadd.f32 0.0, %v3045
        %v3047 = vpop.f32.mrb[0].mxu0
        %v3048 = vpop.f32.mrb[0].mxu0
        %v3049 = vadd.f32 0.0, %v3048
        %v3050 = vpop.f32.mrb[0].mxu0
        %3051 = vdwg.mxu0
        %v3052 = vadd.f32 %v2630, %v2926
        %v3053 = vadd.f32 %v2631, %v2929
        %v3054 = vadd.f32 %v2632, %v2934
        %v3055 = vadd.f32 %v2633, %v2937
        %v3056 = vadd.f32 %v2634, %v2942
        %v3057 = vadd.f32 %v2635, %v2945
        %v3058 = vadd.f32 %v2636, %v2950
        %v3059 = vadd.f32 %v2637, %v2953
        %v3060 = vadd.f32 %v2638, %v2958
        %v3061 = vadd.f32 %v2639, %v2961
        %v3062 = vadd.f32 %v2640, %v2966
        %v3063 = vadd.f32 %v2641, %v2969
        %v3064 = vadd.f32 %v2642, %v2974
        %v3065 = vadd.f32 %v2643, %v2977
        %v3066 = vadd.f32 %v2644, %v2982
        %v3067 = vadd.f32 %v2645, %v2985
        %v3068 = vadd.f32 %v2646, %v2990
        %v3069 = vadd.f32 %v2647, %v2993
        %v3070 = vadd.f32 %v2648, %v2998
        %v3071 = vadd.f32 %v2649, %v3001
        %v3072 = vadd.f32 %v2650, %v3006
        %v3073 = vadd.f32 %v2651, %v3009
        %v3074 = vadd.f32 %v2652, %v3014
        %v3075 = vadd.f32 %v2653, %v3017
        %v3076 = vadd.f32 %v2654, %v3022
        %v3077 = vadd.f32 %v2655, %v3025
        %v3078 = vadd.f32 %v2656, %v3030
        %v3079 = vadd.f32 %v2657, %v3033
        %v3080 = vadd.f32 %v2658, %v3038
        %v3081 = vadd.f32 %v2659, %v3041
        %v3082 = vadd.f32 %v2660, %v3046
        %v3083 = vadd.f32 %v2661, %v3049
        %s3084 = sadd.s32 %s185, 2
        %s3085 = smul.u32 %s3084, 3
        %s3086 = smul.addr %s3085, 4
        %s3087 = scalar_lea.vmem %s182, %s3086
        %v3088 = vld [vmem:[%s3087] sm:$0xf]
        %v3089 = vld [vmem:[%s3087 + $0x4] sm:$0xf]
        %v3090 = vld [vmem:[%s3087 + $0x8] sm:$0x1]
        %v3091 = vld [vmem:[%s3087 + $0xc] sm:$0xf]
        %v3092 = vld [vmem:[%s3087 + $0x10] sm:$0xf]
        %v3093 = vld [vmem:[%s3087 + $0x14] sm:$0x1]
        %v3094 = vld [vmem:[%s3087 + $0x18] sm:$0xf]
        %v3095 = vld [vmem:[%s3087 + $0x1c] sm:$0xf]
        %v3096 = vld [vmem:[%s3087 + $0x20] sm:$0x1]
        %v3097 = vld [vmem:[%s3087 + $0x24] sm:$0xf]
        %v3098 = vld [vmem:[%s3087 + $0x28] sm:$0xf]
        %v3099 = vld [vmem:[%s3087 + $0x2c] sm:$0x1]
        %v3100 = vld [vmem:[%s3087 + $0x30] sm:$0xf]
        %v3101 = vld [vmem:[%s3087 + $0x34] sm:$0xf]
        %v3102 = vld [vmem:[%s3087 + $0x38] sm:$0x1]
        %v3103 = vld [vmem:[%s3087 + $0x3c] sm:$0xf]
        %v3104 = vld [vmem:[%s3087 + $0x40] sm:$0xf]
        %v3105 = vld [vmem:[%s3087 + $0x44] sm:$0x1]
        %v3106 = vld [vmem:[%s3087 + $0x48] sm:$0xf]
        %v3107 = vld [vmem:[%s3087 + $0x4c] sm:$0xf]
        %v3108 = vld [vmem:[%s3087 + $0x50] sm:$0x1]
        %v3109 = vld [vmem:[%s3087 + $0x54] sm:$0xf]
        %v3110 = vld [vmem:[%s3087 + $0x58] sm:$0xf]
        %v3111 = vld [vmem:[%s3087 + $0x5c] sm:$0x1]
        %v3112 = vld [vmem:[%s3087 + $0x60] sm:$0xf]
        %v3113 = vld [vmem:[%s3087 + $0x64] sm:$0xf]
        %v3114 = vld [vmem:[%s3087 + $0x68] sm:$0x1]
        %v3115 = vld [vmem:[%s3087 + $0x6c] sm:$0xf]
        %v3116 = vld [vmem:[%s3087 + $0x70] sm:$0xf]
        %v3117 = vld [vmem:[%s3087 + $0x74] sm:$0x1]
        %v3118 = vld [vmem:[%s3087 + $0x78] sm:$0xf]
        %v3119 = vld [vmem:[%s3087 + $0x7c] sm:$0xf]
        %v3120 = vld [vmem:[%s3087 + $0x80] sm:$0x1]
        %v3121 = vld [vmem:[%s3087 + $0x84] sm:$0xf]
        %v3122 = vld [vmem:[%s3087 + $0x88] sm:$0xf]
        %v3123 = vld [vmem:[%s3087 + $0x8c] sm:$0x1]
        %v3124 = vld [vmem:[%s3087 + $0x90] sm:$0xf]
        %v3125 = vld [vmem:[%s3087 + $0x94] sm:$0xf]
        %v3126 = vld [vmem:[%s3087 + $0x98] sm:$0x1]
        %v3127 = vld [vmem:[%s3087 + $0x9c] sm:$0xf]
        %v3128 = vld [vmem:[%s3087 + $0xa0] sm:$0xf]
        %v3129 = vld [vmem:[%s3087 + $0xa4] sm:$0x1]
        %v3130 = vld [vmem:[%s3087 + $0xa8] sm:$0xf]
        %v3131 = vld [vmem:[%s3087 + $0xac] sm:$0xf]
        %v3132 = vld [vmem:[%s3087 + $0xb0] sm:$0x1]
        %v3133 = vld [vmem:[%s3087 + $0xb4] sm:$0xf]
        %v3134 = vld [vmem:[%s3087 + $0xb8] sm:$0xf]
        %v3135 = vld [vmem:[%s3087 + $0xbc] sm:$0x1]
        %s3136 = scalar_lea.vmem %s1, 12
        %v3137 = vld [vmem:[%s3136] sm:$0x3]
        %v3170 = vunpack.c.l.b16 %v3088
        %v3171 = vunpack.c.l.b16 %v3089
        %v3172 = vunpack.c.l.b16 %v3091
        %v3173 = vunpack.c.l.b16 %v3092
        %v3174 = vunpack.c.l.b16 %v3094
        %v3175 = vunpack.c.l.b16 %v3095
        %v3176 = vunpack.c.l.b16 %v3097
        %v3177 = vunpack.c.l.b16 %v3098
        %v3178 = vunpack.c.l.b16 %v3100
        %v3179 = vunpack.c.l.b16 %v3101
        %v3180 = vunpack.c.l.b16 %v3103
        %v3181 = vunpack.c.l.b16 %v3104
        %v3182 = vunpack.c.l.b16 %v3106
        %v3183 = vunpack.c.l.b16 %v3107
        %v3184 = vunpack.c.l.b16 %v3109
        %v3185 = vunpack.c.l.b16 %v3110
        %v3186 = vunpack.c.l.b16 %v3112
        %v3187 = vunpack.c.l.b16 %v3113
        %v3188 = vunpack.c.l.b16 %v3115
        %v3189 = vunpack.c.l.b16 %v3116
        %v3190 = vunpack.c.l.b16 %v3118
        %v3191 = vunpack.c.l.b16 %v3119
        %v3192 = vunpack.c.l.b16 %v3121
        %v3193 = vunpack.c.l.b16 %v3122
        %v3194 = vunpack.c.l.b16 %v3124
        %v3195 = vunpack.c.l.b16 %v3125
        %v3196 = vunpack.c.l.b16 %v3127
        %v3197 = vunpack.c.l.b16 %v3128
        %v3198 = vunpack.c.l.b16 %v3130
        %v3199 = vunpack.c.l.b16 %v3131
        %v3200 = vunpack.c.l.b16 %v3133
        %v3201 = vunpack.c.l.b16 %v3134
        %v3202 = vpack.c.b16 %v3171, %v3170
        %v3203 = vpack.c.b16 %v3173, %v3172
        %v3204 = vpack.c.b16 %v3175, %v3174
        %v3205 = vpack.c.b16 %v3177, %v3176
        %v3206 = vpack.c.b16 %v3179, %v3178
        %v3207 = vpack.c.b16 %v3181, %v3180
        %v3208 = vpack.c.b16 %v3183, %v3182
        %v3209 = vpack.c.b16 %v3185, %v3184
        %v3210 = vpack.c.b16 %v3187, %v3186
        %v3211 = vpack.c.b16 %v3189, %v3188
        %v3212 = vpack.c.b16 %v3191, %v3190
        %v3213 = vpack.c.b16 %v3193, %v3192
        %v3214 = vpack.c.b16 %v3195, %v3194
        %v3215 = vpack.c.b16 %v3197, %v3196
        %v3216 = vpack.c.b16 %v3199, %v3198
        %v3217 = vpack.c.b16 %v3201, %v3200
        %v3219 = vsel %vm675, %v3202, 0
        %v3222 = vsel %vm675, %v3203, 0
        %v3225 = vsel %vm675, %v3204, 0
        %v3228 = vsel %vm675, %v3205, 0
        %v3231 = vsel %vm675, %v3206, 0
        %v3234 = vsel %vm675, %v3207, 0
        %v3237 = vsel %vm675, %v3208, 0
        %v3240 = vsel %vm675, %v3209, 0
        %v3243 = vsel %vm675, %v3210, 0
        %v3246 = vsel %vm675, %v3211, 0
        %v3249 = vsel %vm675, %v3212, 0
        %v3252 = vsel %vm675, %v3213, 0
        %v3255 = vsel %vm675, %v3214, 0
        %v3258 = vsel %vm675, %v3215, 0
        %v3261 = vsel %vm675, %v3216, 0
        %v3264 = vsel %vm675, %v3217, 0
        %v3267 = vsel %vm724, %v3137, 0
        %3269 = vmatprep.subr.bf16.mxu0 0
        %3270 = vmatpush1.bf16.msra.mxu0 %v3267
        %3271 = vmatprep.subr.bf16.mxu0 0
        %3272 = vmatpush1.bf16.msra.mxu0 0
        %3273 = vmatprep.subr.bf16.mxu0 0
        %3274 = vmatpush1.bf16.msra.mxu0 0
        %3275 = vmatprep.subr.bf16.mxu0 0
        %3276 = vmatpush1.bf16.msra.mxu0 0
        %3277 = vmatprep.subr.bf16.mxu0 0
        %3278 = vmatpush1.bf16.msra.mxu0 0
        %3279 = vmatprep.subr.bf16.mxu0 0
        %3280 = vmatpush1.bf16.msra.mxu0 0
        %3281 = vmatprep.subr.bf16.mxu0 0
        %3282 = vmatpush1.bf16.msra.mxu0 0
        %3283 = vmatprep.subr.bf16.mxu0 0
        %3284 = vmatpush1.bf16.msra.mxu0 0
        %3285 = vmatprep.subr.bf16.mxu0 0
        %3286 = vmatpush1.bf16.msra.mxu0 0
        %3287 = vmatprep.subr.bf16.mxu0 0
        %3288 = vmatpush1.bf16.msra.mxu0 0
        %3289 = vmatprep.subr.bf16.mxu0 0
        %3290 = vmatpush1.bf16.msra.mxu0 0
        %3291 = vmatprep.subr.bf16.mxu0 0
        %3292 = vmatpush1.bf16.msra.mxu0 0
        %3293 = vmatprep.subr.bf16.mxu0 0
        %3294 = vmatpush1.bf16.msra.mxu0 0
        %3295 = vmatprep.subr.bf16.mxu0 0
        %3296 = vmatpush1.bf16.msra.mxu0 0
        %3297 = vmatprep.subr.bf16.mxu0 0
        %3298 = vmatpush1.bf16.msra.mxu0 0
        %3299 = vmatprep.subr.bf16.mxu0 0
        %3300 = vmatpush1.bf16.msra.mxu0 0
        %3301 = vmatprep.mubr.bf16.mxu0 0
        %3302 = vmatmul.mubr.bf16.gmra.mrb[0].mxu0 %v3219
        %v3303 = vpop.f32.mrb[0].mxu0
        %v3304 = vadd.f32 0.0, %v3303
        %v3305 = vpop.f32.mrb[0].mxu0
        %v3306 = vpop.f32.mrb[0].mxu0
        %v3307 = vadd.f32 0.0, %v3306
        %v3308 = vpop.f32.mrb[0].mxu0
        %3309 = vmatprep.mubr.bf16.mxu0 0
        %3310 = vmatmul.mubr.bf16.gmra.mrb[0].mxu0 %v3222
        %v3311 = vpop.f32.mrb[0].mxu0
        %v3312 = vadd.f32 0.0, %v3311
        %v3313 = vpop.f32.mrb[0].mxu0
        %v3314 = vpop.f32.mrb[0].mxu0
        %v3315 = vadd.f32 0.0, %v3314
        %v3316 = vpop.f32.mrb[0].mxu0
        %3317 = vmatprep.mubr.bf16.mxu0 0
        %3318 = vmatmul.mubr.bf16.gmra.mrb[0].mxu0 %v3225
        %v3319 = vpop.f32.mrb[0].mxu0
        %v3320 = vadd.f32 0.0, %v3319
        %v3321 = vpop.f32.mrb[0].mxu0
        %v3322 = vpop.f32.mrb[0].mxu0
        %v3323 = vadd.f32 0.0, %v3322
        %v3324 = vpop.f32.mrb[0].mxu0
        %3325 = vmatprep.mubr.bf16.mxu0 0
        %3326 = vmatmul.mubr.bf16.gmra.mrb[0].mxu0 %v3228
        %v3327 = vpop.f32.mrb[0].mxu0
        %v3328 = vadd.f32 0.0, %v3327
        %v3329 = vpop.f32.mrb[0].mxu0
        %v3330 = vpop.f32.mrb[0].mxu0
        %v3331 = vadd.f32 0.0, %v3330
        %v3332 = vpop.f32.mrb[0].mxu0
        %3333 = vmatprep.mubr.bf16.mxu0 0
        %3334 = vmatmul.mubr.bf16.gmra.mrb[0].mxu0 %v3231
        %v3335 = vpop.f32.mrb[0].mxu0
        %v3336 = vadd.f32 0.0, %v3335
        %v3337 = vpop.f32.mrb[0].mxu0
        %v3338 = vpop.f32.mrb[0].mxu0
        %v3339 = vadd.f32 0.0, %v3338
        %v3340 = vpop.f32.mrb[0].mxu0
        %3341 = vmatprep.mubr.bf16.mxu0 0
        %3342 = vmatmul.mubr.bf16.gmra.mrb[0].mxu0 %v3234
        %v3343 = vpop.f32.mrb[0].mxu0
        %v3344 = vadd.f32 0.0, %v3343
        %v3345 = vpop.f32.mrb[0].mxu0
        %v3346 = vpop.f32.mrb[0].mxu0
        %v3347 = vadd.f32 0.0, %v3346
        %v3348 = vpop.f32.mrb[0].mxu0
        %3349 = vmatprep.mubr.bf16.mxu0 0
        %3350 = vmatmul.mubr.bf16.gmra.mrb[0].mxu0 %v3237
        %v3351 = vpop.f32.mrb[0].mxu0
        %v3352 = vadd.f32 0.0, %v3351
        %v3353 = vpop.f32.mrb[0].mxu0
        %v3354 = vpop.f32.mrb[0].mxu0
        %v3355 = vadd.f32 0.0, %v3354
        %v3356 = vpop.f32.mrb[0].mxu0
        %3357 = vmatprep.mubr.bf16.mxu0 0
        %3358 = vmatmul.mubr.bf16.gmra.mrb[0].mxu0 %v3240
        %v3359 = vpop.f32.mrb[0].mxu0
        %v3360 = vadd.f32 0.0, %v3359
        %v3361 = vpop.f32.mrb[0].mxu0
        %v3362 = vpop.f32.mrb[0].mxu0
        %v3363 = vadd.f32 0.0, %v3362
        %v3364 = vpop.f32.mrb[0].mxu0
        %3365 = vmatprep.mubr.bf16.mxu0 0
        %3366 = vmatmul.mubr.bf16.gmra.mrb[0].mxu0 %v3243
        %v3367 = vpop.f32.mrb[0].mxu0
        %v3368 = vadd.f32 0.0, %v3367
        %v3369 = vpop.f32.mrb[0].mxu0
        %v3370 = vpop.f32.mrb[0].mxu0
        %v3371 = vadd.f32 0.0, %v3370
        %v3372 = vpop.f32.mrb[0].mxu0
        %3373 = vmatprep.mubr.bf16.mxu0 0
        %3374 = vmatmul.mubr.bf16.gmra.mrb[0].mxu0 %v3246
        %v3375 = vpop.f32.mrb[0].mxu0
        %v3376 = vadd.f32 0.0, %v3375
        %v3377 = vpop.f32.mrb[0].mxu0
        %v3378 = vpop.f32.mrb[0].mxu0
        %v3379 = vadd.f32 0.0, %v3378
        %v3380 = vpop.f32.mrb[0].mxu0
        %3381 = vmatprep.mubr.bf16.mxu0 0
        %3382 = vmatmul.mubr.bf16.gmra.mrb[0].mxu0 %v3249
        %v3383 = vpop.f32.mrb[0].mxu0
        %v3384 = vadd.f32 0.0, %v3383
        %v3385 = vpop.f32.mrb[0].mxu0
        %v3386 = vpop.f32.mrb[0].mxu0
        %v3387 = vadd.f32 0.0, %v3386
        %v3388 = vpop.f32.mrb[0].mxu0
        %3389 = vmatprep.mubr.bf16.mxu0 0
        %3390 = vmatmul.mubr.bf16.gmra.mrb[0].mxu0 %v3252
        %v3391 = vpop.f32.mrb[0].mxu0
        %v3392 = vadd.f32 0.0, %v3391
        %v3393 = vpop.f32.mrb[0].mxu0
        %v3394 = vpop.f32.mrb[0].mxu0
        %v3395 = vadd.f32 0.0, %v3394
        %v3396 = vpop.f32.mrb[0].mxu0
        %3397 = vmatprep.mubr.bf16.mxu0 0
        %3398 = vmatmul.mubr.bf16.gmra.mrb[0].mxu0 %v3255
        %v3399 = vpop.f32.mrb[0].mxu0
        %v3400 = vadd.f32 0.0, %v3399
        %v3401 = vpop.f32.mrb[0].mxu0
        %v3402 = vpop.f32.mrb[0].mxu0
        %v3403 = vadd.f32 0.0, %v3402
        %v3404 = vpop.f32.mrb[0].mxu0
        %3405 = vmatprep.mubr.bf16.mxu0 0
        %3406 = vmatmul.mubr.bf16.gmra.mrb[0].mxu0 %v3258
        %v3407 = vpop.f32.mrb[0].mxu0
        %v3408 = vadd.f32 0.0, %v3407
        %v3409 = vpop.f32.mrb[0].mxu0
        %v3410 = vpop.f32.mrb[0].mxu0
        %v3411 = vadd.f32 0.0, %v3410
        %v3412 = vpop.f32.mrb[0].mxu0
        %3413 = vmatprep.mubr.bf16.mxu0 0
        %3414 = vmatmul.mubr.bf16.gmra.mrb[0].mxu0 %v3261
        %v3415 = vpop.f32.mrb[0].mxu0
        %v3416 = vadd.f32 0.0, %v3415
        %v3417 = vpop.f32.mrb[0].mxu0
        %v3418 = vpop.f32.mrb[0].mxu0
        %v3419 = vadd.f32 0.0, %v3418
        %v3420 = vpop.f32.mrb[0].mxu0
        %3421 = vmatprep.mubr.bf16.mxu0 0
        %3422 = vmatmul.mubr.bf16.gmra.mrb[0].mxu0 %v3264
        %v3423 = vpop.f32.mrb[0].mxu0
        %v3424 = vadd.f32 0.0, %v3423
        %v3425 = vpop.f32.mrb[0].mxu0
        %v3426 = vpop.f32.mrb[0].mxu0
        %v3427 = vadd.f32 0.0, %v3426
        %v3428 = vpop.f32.mrb[0].mxu0
        %3429 = vdwg.mxu0
        %v3430 = vadd.f32 %v3052, %v3304
        %v3431 = vadd.f32 %v3053, %v3307
        %v3432 = vadd.f32 %v3054, %v3312
        %v3433 = vadd.f32 %v3055, %v3315
        %v3434 = vadd.f32 %v3056, %v3320
        %v3435 = vadd.f32 %v3057, %v3323
        %v3436 = vadd.f32 %v3058, %v3328
        %v3437 = vadd.f32 %v3059, %v3331
        %v3438 = vadd.f32 %v3060, %v3336
        %v3439 = vadd.f32 %v3061, %v3339
        %v3440 = vadd.f32 %v3062, %v3344
        %v3441 = vadd.f32 %v3063, %v3347
        %v3442 = vadd.f32 %v3064, %v3352
        %v3443 = vadd.f32 %v3065, %v3355
        %v3444 = vadd.f32 %v3066, %v3360
        %v3445 = vadd.f32 %v3067, %v3363
        %v3446 = vadd.f32 %v3068, %v3368
        %v3447 = vadd.f32 %v3069, %v3371
        %v3448 = vadd.f32 %v3070, %v3376
        %v3449 = vadd.f32 %v3071, %v3379
        %v3450 = vadd.f32 %v3072, %v3384
        %v3451 = vadd.f32 %v3073, %v3387
        %v3452 = vadd.f32 %v3074, %v3392
        %v3453 = vadd.f32 %v3075, %v3395
        %v3454 = vadd.f32 %v3076, %v3400
        %v3455 = vadd.f32 %v3077, %v3403
        %v3456 = vadd.f32 %v3078, %v3408
        %v3457 = vadd.f32 %v3079, %v3411
        %v3458 = vadd.f32 %v3080, %v3416
        %v3459 = vadd.f32 %v3081, %v3419
        %v3460 = vadd.f32 %v3082, %v3424
        %v3461 = vadd.f32 %v3083, %v3427
        %s3462 = scalar_lea.vmem %s1, 14
        %v3463 = vld [vmem:[%s3462] sm:$0x3]
        %v3465 = vshrl.u32 %v3088, 16
        %v3467 = vrot.slane %v3465, 4
        %v3468 = vshll.u32 %v3088, 16
        %v3470 = vrot.slane %v3468, 5
        %v3471 = vor.u32 %v3467, %v3470
        %v3472 = vrot.slane %v3471, 4
        %v3474 = vshll.u32 %v3089, 16
        %v3476 = vrot.slane %v3474, 5
        %v3477 = vsel %vm242, %v3472, %v3476
        %v3478 = vshrl.u32 %v3089, 16
        %v3480 = vrot.slane %v3478, 4
        %v3481 = vor.u32 %v3480, %v3476
        %v3482 = vrot.slane %v3481, 4
        %v3484 = vshll.u32 %v3090, 16
        %v3486 = vrot.slane %v3484, 5
        %v3487 = vsel %vm242, %v3482, %v3486
        %v3489 = vshrl.u32 %v3091, 16
        %v3491 = vrot.slane %v3489, 4
        %v3492 = vshll.u32 %v3091, 16
        %v3494 = vrot.slane %v3492, 5
        %v3495 = vor.u32 %v3491, %v3494
        %v3496 = vrot.slane %v3495, 4
        %v3498 = vshll.u32 %v3092, 16
        %v3500 = vrot.slane %v3498, 5
        %v3501 = vsel %vm242, %v3496, %v3500
        %v3502 = vshrl.u32 %v3092, 16
        %v3504 = vrot.slane %v3502, 4
        %v3505 = vor.u32 %v3504, %v3500
        %v3506 = vrot.slane %v3505, 4
        %v3508 = vshll.u32 %v3093, 16
        %v3510 = vrot.slane %v3508, 5
        %v3511 = vsel %vm242, %v3506, %v3510
        %v3513 = vshrl.u32 %v3094, 16
        %v3515 = vrot.slane %v3513, 4
        %v3516 = vshll.u32 %v3094, 16
        %v3518 = vrot.slane %v3516, 5
        %v3519 = vor.u32 %v3515, %v3518
        %v3520 = vrot.slane %v3519, 4
        %v3522 = vshll.u32 %v3095, 16
        %v3524 = vrot.slane %v3522, 5
        %v3525 = vsel %vm242, %v3520, %v3524
        %v3526 = vshrl.u32 %v3095, 16
        %v3528 = vrot.slane %v3526, 4
        %v3529 = vor.u32 %v3528, %v3524
        %v3530 = vrot.slane %v3529, 4
        %v3532 = vshll.u32 %v3096, 16
        %v3534 = vrot.slane %v3532, 5
        %v3535 = vsel %vm242, %v3530, %v3534
        %v3537 = vshrl.u32 %v3097, 16
        %v3539 = vrot.slane %v3537, 4
        %v3540 = vshll.u32 %v3097, 16
        %v3542 = vrot.slane %v3540, 5
        %v3543 = vor.u32 %v3539, %v3542
        %v3544 = vrot.slane %v3543, 4
        %v3546 = vshll.u32 %v3098, 16
        %v3548 = vrot.slane %v3546, 5
        %v3549 = vsel %vm242, %v3544, %v3548
        %v3550 = vshrl.u32 %v3098, 16
        %v3552 = vrot.slane %v3550, 4
        %v3553 = vor.u32 %v3552, %v3548
        %v3554 = vrot.slane %v3553, 4
        %v3556 = vshll.u32 %v3099, 16
        %v3558 = vrot.slane %v3556, 5
        %v3559 = vsel %vm242, %v3554, %v3558
        %v3561 = vshrl.u32 %v3100, 16
        %v3563 = vrot.slane %v3561, 4
        %v3564 = vshll.u32 %v3100, 16
        %v3566 = vrot.slane %v3564, 5
        %v3567 = vor.u32 %v3563, %v3566
        %v3568 = vrot.slane %v3567, 4
        %v3570 = vshll.u32 %v3101, 16
        %v3572 = vrot.slane %v3570, 5
        %v3573 = vsel %vm242, %v3568, %v3572
        %v3574 = vshrl.u32 %v3101, 16
        %v3576 = vrot.slane %v3574, 4
        %v3577 = vor.u32 %v3576, %v3572
        %v3578 = vrot.slane %v3577, 4
        %v3580 = vshll.u32 %v3102, 16
        %v3582 = vrot.slane %v3580, 5
        %v3583 = vsel %vm242, %v3578, %v3582
        %v3585 = vshrl.u32 %v3103, 16
        %v3587 = vrot.slane %v3585, 4
        %v3588 = vshll.u32 %v3103, 16
        %v3590 = vrot.slane %v3588, 5
        %v3591 = vor.u32 %v3587, %v3590
        %v3592 = vrot.slane %v3591, 4
        %v3594 = vshll.u32 %v3104, 16
        %v3596 = vrot.slane %v3594, 5
        %v3597 = vsel %vm242, %v3592, %v3596
        %v3598 = vshrl.u32 %v3104, 16
        %v3600 = vrot.slane %v3598, 4
        %v3601 = vor.u32 %v3600, %v3596
        %v3602 = vrot.slane %v3601, 4
        %v3604 = vshll.u32 %v3105, 16
        %v3606 = vrot.slane %v3604, 5
        %v3607 = vsel %vm242, %v3602, %v3606
        %v3609 = vshrl.u32 %v3106, 16
        %v3611 = vrot.slane %v3609, 4
        %v3612 = vshll.u32 %v3106, 16
        %v3614 = vrot.slane %v3612, 5
        %v3615 = vor.u32 %v3611, %v3614
        %v3616 = vrot.slane %v3615, 4
        %v3618 = vshll.u32 %v3107, 16
        %v3620 = vrot.slane %v3618, 5
        %v3621 = vsel %vm242, %v3616, %v3620
        %v3622 = vshrl.u32 %v3107, 16
        %v3624 = vrot.slane %v3622, 4
        %v3625 = vor.u32 %v3624, %v3620
        %v3626 = vrot.slane %v3625, 4
        %v3628 = vshll.u32 %v3108, 16
        %v3630 = vrot.slane %v3628, 5
        %v3631 = vsel %vm242, %v3626, %v3630
        %v3633 = vshrl.u32 %v3109, 16
        %v3635 = vrot.slane %v3633, 4
        %v3636 = vshll.u32 %v3109, 16
        %v3638 = vrot.slane %v3636, 5
        %v3639 = vor.u32 %v3635, %v3638
        %v3640 = vrot.slane %v3639, 4
        %v3642 = vshll.u32 %v3110, 16
        %v3644 = vrot.slane %v3642, 5
        %v3645 = vsel %vm242, %v3640, %v3644
        %v3646 = vshrl.u32 %v3110, 16
        %v3648 = vrot.slane %v3646, 4
        %v3649 = vor.u32 %v3648, %v3644
        %v3650 = vrot.slane %v3649, 4
        %v3652 = vshll.u32 %v3111, 16
        %v3654 = vrot.slane %v3652, 5
        %v3655 = vsel %vm242, %v3650, %v3654
        %v3657 = vshrl.u32 %v3112, 16
        %v3659 = vrot.slane %v3657, 4
        %v3660 = vshll.u32 %v3112, 16
        %v3662 = vrot.slane %v3660, 5
        %v3663 = vor.u32 %v3659, %v3662
        %v3664 = vrot.slane %v3663, 4
        %v3666 = vshll.u32 %v3113, 16
        %v3668 = vrot.slane %v3666, 5
        %v3669 = vsel %vm242, %v3664, %v3668
        %v3670 = vshrl.u32 %v3113, 16
        %v3672 = vrot.slane %v3670, 4
        %v3673 = vor.u32 %v3672, %v3668
        %v3674 = vrot.slane %v3673, 4
        %v3676 = vshll.u32 %v3114, 16
        %v3678 = vrot.slane %v3676, 5
        %v3679 = vsel %vm242, %v3674, %v3678
        %v3681 = vshrl.u32 %v3115, 16
        %v3683 = vrot.slane %v3681, 4
        %v3684 = vshll.u32 %v3115, 16
        %v3686 = vrot.slane %v3684, 5
        %v3687 = vor.u32 %v3683, %v3686
        %v3688 = vrot.slane %v3687, 4
        %v3690 = vshll.u32 %v3116, 16
        %v3692 = vrot.slane %v3690, 5
        %v3693 = vsel %vm242, %v3688, %v3692
        %v3694 = vshrl.u32 %v3116, 16
        %v3696 = vrot.slane %v3694, 4
        %v3697 = vor.u32 %v3696, %v3692
        %v3698 = vrot.slane %v3697, 4
        %v3700 = vshll.u32 %v3117, 16
        %v3702 = vrot.slane %v3700, 5
        %v3703 = vsel %vm242, %v3698, %v3702
        %v3705 = vshrl.u32 %v3118, 16
        %v3707 = vrot.slane %v3705, 4
        %v3708 = vshll.u32 %v3118, 16
        %v3710 = vrot.slane %v3708, 5
        %v3711 = vor.u32 %v3707, %v3710
        %v3712 = vrot.slane %v3711, 4
        %v3714 = vshll.u32 %v3119, 16
        %v3716 = vrot.slane %v3714, 5
        %v3717 = vsel %vm242, %v3712, %v3716
        %v3718 = vshrl.u32 %v3119, 16
        %v3720 = vrot.slane %v3718, 4
        %v3721 = vor.u32 %v3720, %v3716
        %v3722 = vrot.slane %v3721, 4
        %v3724 = vshll.u32 %v3120, 16
        %v3726 = vrot.slane %v3724, 5
        %v3727 = vsel %vm242, %v3722, %v3726
        %v3729 = vshrl.u32 %v3121, 16
        %v3731 = vrot.slane %v3729, 4
        %v3732 = vshll.u32 %v3121, 16
        %v3734 = vrot.slane %v3732, 5
        %v3735 = vor.u32 %v3731, %v3734
        %v3736 = vrot.slane %v3735, 4
        %v3738 = vshll.u32 %v3122, 16
        %v3740 = vrot.slane %v3738, 5
        %v3741 = vsel %vm242, %v3736, %v3740
        %v3742 = vshrl.u32 %v3122, 16
        %v3744 = vrot.slane %v3742, 4
        %v3745 = vor.u32 %v3744, %v3740
        %v3746 = vrot.slane %v3745, 4
        %v3748 = vshll.u32 %v3123, 16
        %v3750 = vrot.slane %v3748, 5
        %v3751 = vsel %vm242, %v3746, %v3750
        %v3753 = vshrl.u32 %v3124, 16
        %v3755 = vrot.slane %v3753, 4
        %v3756 = vshll.u32 %v3124, 16
        %v3758 = vrot.slane %v3756, 5
        %v3759 = vor.u32 %v3755, %v3758
        %v3760 = vrot.slane %v3759, 4
        %v3762 = vshll.u32 %v3125, 16
        %v3764 = vrot.slane %v3762, 5
        %v3765 = vsel %vm242, %v3760, %v3764
        %v3766 = vshrl.u32 %v3125, 16
        %v3768 = vrot.slane %v3766, 4
        %v3769 = vor.u32 %v3768, %v3764
        %v3770 = vrot.slane %v3769, 4
        %v3772 = vshll.u32 %v3126, 16
        %v3774 = vrot.slane %v3772, 5
        %v3775 = vsel %vm242, %v3770, %v3774
        %v3777 = vshrl.u32 %v3127, 16
        %v3779 = vrot.slane %v3777, 4
        %v3780 = vshll.u32 %v3127, 16
        %v3782 = vrot.slane %v3780, 5
        %v3783 = vor.u32 %v3779, %v3782
        %v3784 = vrot.slane %v3783, 4
        %v3786 = vshll.u32 %v3128, 16
        %v3788 = vrot.slane %v3786, 5
        %v3789 = vsel %vm242, %v3784, %v3788
        %v3790 = vshrl.u32 %v3128, 16
        %v3792 = vrot.slane %v3790, 4
        %v3793 = vor.u32 %v3792, %v3788
        %v3794 = vrot.slane %v3793, 4
        %v3796 = vshll.u32 %v3129, 16
        %v3798 = vrot.slane %v3796, 5
        %v3799 = vsel %vm242, %v3794, %v3798
        %v3801 = vshrl.u32 %v3130, 16
        %v3803 = vrot.slane %v3801, 4
        %v3804 = vshll.u32 %v3130, 16
        %v3806 = vrot.slane %v3804, 5
        %v3807 = vor.u32 %v3803, %v3806
        %v3808 = vrot.slane %v3807, 4
        %v3810 = vshll.u32 %v3131, 16
        %v3812 = vrot.slane %v3810, 5
        %v3813 = vsel %vm242, %v3808, %v3812
        %v3814 = vshrl.u32 %v3131, 16
        %v3816 = vrot.slane %v3814, 4
        %v3817 = vor.u32 %v3816, %v3812
        %v3818 = vrot.slane %v3817, 4
        %v3820 = vshll.u32 %v3132, 16
        %v3822 = vrot.slane %v3820, 5
        %v3823 = vsel %vm242, %v3818, %v3822
        %v3825 = vshrl.u32 %v3133, 16
        %v3827 = vrot.slane %v3825, 4
        %v3828 = vshll.u32 %v3133, 16
        %v3830 = vrot.slane %v3828, 5
        %v3831 = vor.u32 %v3827, %v3830
        %v3832 = vrot.slane %v3831, 4
        %v3834 = vshll.u32 %v3134, 16
        %v3836 = vrot.slane %v3834, 5
        %v3837 = vsel %vm242, %v3832, %v3836
        %v3838 = vshrl.u32 %v3134, 16
        %v3840 = vrot.slane %v3838, 4
        %v3841 = vor.u32 %v3840, %v3836
        %v3842 = vrot.slane %v3841, 4
        %v3844 = vshll.u32 %v3135, 16
        %v3846 = vrot.slane %v3844, 5
        %v3847 = vsel %vm242, %v3842, %v3846
        %v3848 = vunpack.c.l.b16 %v3477
        %v3849 = vunpack.c.l.b16 %v3487
        %v3850 = vunpack.c.l.b16 %v3501
        %v3851 = vunpack.c.l.b16 %v3511
        %v3852 = vunpack.c.l.b16 %v3525
        %v3853 = vunpack.c.l.b16 %v3535
        %v3854 = vunpack.c.l.b16 %v3549
        %v3855 = vunpack.c.l.b16 %v3559
        %v3856 = vunpack.c.l.b16 %v3573
        %v3857 = vunpack.c.l.b16 %v3583
        %v3858 = vunpack.c.l.b16 %v3597
        %v3859 = vunpack.c.l.b16 %v3607
        %v3860 = vunpack.c.l.b16 %v3621
        %v3861 = vunpack.c.l.b16 %v3631
        %v3862 = vunpack.c.l.b16 %v3645
        %v3863 = vunpack.c.l.b16 %v3655
        %v3864 = vunpack.c.l.b16 %v3669
        %v3865 = vunpack.c.l.b16 %v3679
        %v3866 = vunpack.c.l.b16 %v3693
        %v3867 = vunpack.c.l.b16 %v3703
        %v3868 = vunpack.c.l.b16 %v3717
        %v3869 = vunpack.c.l.b16 %v3727
        %v3870 = vunpack.c.l.b16 %v3741
        %v3871 = vunpack.c.l.b16 %v3751
        %v3872 = vunpack.c.l.b16 %v3765
        %v3873 = vunpack.c.l.b16 %v3775
        %v3874 = vunpack.c.l.b16 %v3789
        %v3875 = vunpack.c.l.b16 %v3799
        %v3876 = vunpack.c.l.b16 %v3813
        %v3877 = vunpack.c.l.b16 %v3823
        %v3878 = vunpack.c.l.b16 %v3837
        %v3879 = vunpack.c.l.b16 %v3847
        %v3880 = vpack.c.b16 %v3849, %v3848
        %v3881 = vpack.c.b16 %v3851, %v3850
        %v3882 = vpack.c.b16 %v3853, %v3852
        %v3883 = vpack.c.b16 %v3855, %v3854
        %v3884 = vpack.c.b16 %v3857, %v3856
        %v3885 = vpack.c.b16 %v3859, %v3858
        %v3886 = vpack.c.b16 %v3861, %v3860
        %v3887 = vpack.c.b16 %v3863, %v3862
        %v3888 = vpack.c.b16 %v3865, %v3864
        %v3889 = vpack.c.b16 %v3867, %v3866
        %v3890 = vpack.c.b16 %v3869, %v3868
        %v3891 = vpack.c.b16 %v3871, %v3870
        %v3892 = vpack.c.b16 %v3873, %v3872
        %v3893 = vpack.c.b16 %v3875, %v3874
        %v3894 = vpack.c.b16 %v3877, %v3876
        %v3895 = vpack.c.b16 %v3879, %v3878
        %v3897 = vsel %vm675, %v3880, 0
        %v3900 = vsel %vm675, %v3881, 0
        %v3903 = vsel %vm675, %v3882, 0
        %v3906 = vsel %vm675, %v3883, 0
        %v3909 = vsel %vm675, %v3884, 0
        %v3912 = vsel %vm675, %v3885, 0
        %v3915 = vsel %vm675, %v3886, 0
        %v3918 = vsel %vm675, %v3887, 0
        %v3921 = vsel %vm675, %v3888, 0
        %v3924 = vsel %vm675, %v3889, 0
        %v3927 = vsel %vm675, %v3890, 0
        %v3930 = vsel %vm675, %v3891, 0
        %v3933 = vsel %vm675, %v3892, 0
        %v3936 = vsel %vm675, %v3893, 0
        %v3939 = vsel %vm675, %v3894, 0
        %v3942 = vsel %vm675, %v3895, 0
        %v3945 = vsel %vm724, %v3463, 0
        %3947 = vmatprep.subr.bf16.mxu0 0
        %3948 = vmatpush1.bf16.msra.mxu0 %v3945
        %3949 = vmatprep.subr.bf16.mxu0 0
        %3950 = vmatpush1.bf16.msra.mxu0 0
        %3951 = vmatprep.subr.bf16.mxu0 0
        %3952 = vmatpush1.bf16.msra.mxu0 0
        %3953 = vmatprep.subr.bf16.mxu0 0
        %3954 = vmatpush1.bf16.msra.mxu0 0
        %3955 = vmatprep.subr.bf16.mxu0 0
        %3956 = vmatpush1.bf16.msra.mxu0 0
        %3957 = vmatprep.subr.bf16.mxu0 0
        %3958 = vmatpush1.bf16.msra.mxu0 0
        %3959 = vmatprep.subr.bf16.mxu0 0
        %3960 = vmatpush1.bf16.msra.mxu0 0
        %3961 = vmatprep.subr.bf16.mxu0 0
        %3962 = vmatpush1.bf16.msra.mxu0 0
        %3963 = vmatprep.subr.bf16.mxu0 0
        %3964 = vmatpush1.bf16.msra.mxu0 0
        %3965 = vmatprep.subr.bf16.mxu0 0
        %3966 = vmatpush1.bf16.msra.mxu0 0
        %3967 = vmatprep.subr.bf16.mxu0 0
        %3968 = vmatpush1.bf16.msra.mxu0 0
        %3969 = vmatprep.subr.bf16.mxu0 0
        %3970 = vmatpush1.bf16.msra.mxu0 0
        %3971 = vmatprep.subr.bf16.mxu0 0
        %3972 = vmatpush1.bf16.msra.mxu0 0
        %3973 = vmatprep.subr.bf16.mxu0 0
        %3974 = vmatpush1.bf16.msra.mxu0 0
        %3975 = vmatprep.subr.bf16.mxu0 0
        %3976 = vmatpush1.bf16.msra.mxu0 0
        %3977 = vmatprep.subr.bf16.mxu0 0
        %3978 = vmatpush1.bf16.msra.mxu0 0
        %3979 = vmatprep.mubr.bf16.mxu0 0
        %3980 = vmatmul.mubr.bf16.gmra.mrb[0].mxu0 %v3897
        %v3981 = vpop.f32.mrb[0].mxu0
        %v3982 = vadd.f32 0.0, %v3981
        %v3983 = vpop.f32.mrb[0].mxu0
        %v3984 = vpop.f32.mrb[0].mxu0
        %v3985 = vadd.f32 0.0, %v3984
        %v3986 = vpop.f32.mrb[0].mxu0
        %3987 = vmatprep.mubr.bf16.mxu0 0
        %3988 = vmatmul.mubr.bf16.gmra.mrb[0].mxu0 %v3900
        %v3989 = vpop.f32.mrb[0].mxu0
        %v3990 = vadd.f32 0.0, %v3989
        %v3991 = vpop.f32.mrb[0].mxu0
        %v3992 = vpop.f32.mrb[0].mxu0
        %v3993 = vadd.f32 0.0, %v3992
        %v3994 = vpop.f32.mrb[0].mxu0
        %3995 = vmatprep.mubr.bf16.mxu0 0
        %3996 = vmatmul.mubr.bf16.gmra.mrb[0].mxu0 %v3903
        %v3997 = vpop.f32.mrb[0].mxu0
        %v3998 = vadd.f32 0.0, %v3997
        %v3999 = vpop.f32.mrb[0].mxu0
        %v4000 = vpop.f32.mrb[0].mxu0
        %v4001 = vadd.f32 0.0, %v4000
        %v4002 = vpop.f32.mrb[0].mxu0
        %4003 = vmatprep.mubr.bf16.mxu0 0
        %4004 = vmatmul.mubr.bf16.gmra.mrb[0].mxu0 %v3906
        %v4005 = vpop.f32.mrb[0].mxu0
        %v4006 = vadd.f32 0.0, %v4005
        %v4007 = vpop.f32.mrb[0].mxu0
        %v4008 = vpop.f32.mrb[0].mxu0
        %v4009 = vadd.f32 0.0, %v4008
        %v4010 = vpop.f32.mrb[0].mxu0
        %4011 = vmatprep.mubr.bf16.mxu0 0
        %4012 = vmatmul.mubr.bf16.gmra.mrb[0].mxu0 %v3909
        %v4013 = vpop.f32.mrb[0].mxu0
        %v4014 = vadd.f32 0.0, %v4013
        %v4015 = vpop.f32.mrb[0].mxu0
        %v4016 = vpop.f32.mrb[0].mxu0
        %v4017 = vadd.f32 0.0, %v4016
        %v4018 = vpop.f32.mrb[0].mxu0
        %4019 = vmatprep.mubr.bf16.mxu0 0
        %4020 = vmatmul.mubr.bf16.gmra.mrb[0].mxu0 %v3912
        %v4021 = vpop.f32.mrb[0].mxu0
        %v4022 = vadd.f32 0.0, %v4021
        %v4023 = vpop.f32.mrb[0].mxu0
        %v4024 = vpop.f32.mrb[0].mxu0
        %v4025 = vadd.f32 0.0, %v4024
        %v4026 = vpop.f32.mrb[0].mxu0
        %4027 = vmatprep.mubr.bf16.mxu0 0
        %4028 = vmatmul.mubr.bf16.gmra.mrb[0].mxu0 %v3915
        %v4029 = vpop.f32.mrb[0].mxu0
        %v4030 = vadd.f32 0.0, %v4029
        %v4031 = vpop.f32.mrb[0].mxu0
        %v4032 = vpop.f32.mrb[0].mxu0
        %v4033 = vadd.f32 0.0, %v4032
        %v4034 = vpop.f32.mrb[0].mxu0
        %4035 = vmatprep.mubr.bf16.mxu0 0
        %4036 = vmatmul.mubr.bf16.gmra.mrb[0].mxu0 %v3918
        %v4037 = vpop.f32.mrb[0].mxu0
        %v4038 = vadd.f32 0.0, %v4037
        %v4039 = vpop.f32.mrb[0].mxu0
        %v4040 = vpop.f32.mrb[0].mxu0
        %v4041 = vadd.f32 0.0, %v4040
        %v4042 = vpop.f32.mrb[0].mxu0
        %4043 = vmatprep.mubr.bf16.mxu0 0
        %4044 = vmatmul.mubr.bf16.gmra.mrb[0].mxu0 %v3921
        %v4045 = vpop.f32.mrb[0].mxu0
        %v4046 = vadd.f32 0.0, %v4045
        %v4047 = vpop.f32.mrb[0].mxu0
        %v4048 = vpop.f32.mrb[0].mxu0
        %v4049 = vadd.f32 0.0, %v4048
        %v4050 = vpop.f32.mrb[0].mxu0
        %4051 = vmatprep.mubr.bf16.mxu0 0
        %4052 = vmatmul.mubr.bf16.gmra.mrb[0].mxu0 %v3924
        %v4053 = vpop.f32.mrb[0].mxu0
        %v4054 = vadd.f32 0.0, %v4053
        %v4055 = vpop.f32.mrb[0].mxu0
        %v4056 = vpop.f32.mrb[0].mxu0
        %v4057 = vadd.f32 0.0, %v4056
        %v4058 = vpop.f32.mrb[0].mxu0
        %4059 = vmatprep.mubr.bf16.mxu0 0
        %4060 = vmatmul.mubr.bf16.gmra.mrb[0].mxu0 %v3927
        %v4061 = vpop.f32.mrb[0].mxu0
        %v4062 = vadd.f32 0.0, %v4061
        %v4063 = vpop.f32.mrb[0].mxu0
        %v4064 = vpop.f32.mrb[0].mxu0
        %v4065 = vadd.f32 0.0, %v4064
        %v4066 = vpop.f32.mrb[0].mxu0
        %4067 = vmatprep.mubr.bf16.mxu0 0
        %4068 = vmatmul.mubr.bf16.gmra.mrb[0].mxu0 %v3930
        %v4069 = vpop.f32.mrb[0].mxu0
        %v4070 = vadd.f32 0.0, %v4069
        %v4071 = vpop.f32.mrb[0].mxu0
        %v4072 = vpop.f32.mrb[0].mxu0
        %v4073 = vadd.f32 0.0, %v4072
        %v4074 = vpop.f32.mrb[0].mxu0
        %4075 = vmatprep.mubr.bf16.mxu0 0
        %4076 = vmatmul.mubr.bf16.gmra.mrb[0].mxu0 %v3933
        %v4077 = vpop.f32.mrb[0].mxu0
        %v4078 = vadd.f32 0.0, %v4077
        %v4079 = vpop.f32.mrb[0].mxu0
        %v4080 = vpop.f32.mrb[0].mxu0
        %v4081 = vadd.f32 0.0, %v4080
        %v4082 = vpop.f32.mrb[0].mxu0
        %4083 = vmatprep.mubr.bf16.mxu0 0
        %4084 = vmatmul.mubr.bf16.gmra.mrb[0].mxu0 %v3936
        %v4085 = vpop.f32.mrb[0].mxu0
        %v4086 = vadd.f32 0.0, %v4085
        %v4087 = vpop.f32.mrb[0].mxu0
        %v4088 = vpop.f32.mrb[0].mxu0
        %v4089 = vadd.f32 0.0, %v4088
        %v4090 = vpop.f32.mrb[0].mxu0
        %4091 = vmatprep.mubr.bf16.mxu0 0
        %4092 = vmatmul.mubr.bf16.gmra.mrb[0].mxu0 %v3939
        %v4093 = vpop.f32.mrb[0].mxu0
        %v4094 = vadd.f32 0.0, %v4093
        %v4095 = vpop.f32.mrb[0].mxu0
        %v4096 = vpop.f32.mrb[0].mxu0
        %v4097 = vadd.f32 0.0, %v4096
        %v4098 = vpop.f32.mrb[0].mxu0
        %4099 = vmatprep.mubr.bf16.mxu0 0
        %4100 = vmatmul.mubr.bf16.gmra.mrb[0].mxu0 %v3942
        %v4101 = vpop.f32.mrb[0].mxu0
        %v4102 = vadd.f32 0.0, %v4101
        %v4103 = vpop.f32.mrb[0].mxu0
        %v4104 = vpop.f32.mrb[0].mxu0
        %v4105 = vadd.f32 0.0, %v4104
        %v4106 = vpop.f32.mrb[0].mxu0
        %4107 = vdwg.mxu0
        %v4108 = vadd.f32 %v3430, %v3982
        %v4109 = vadd.f32 %v3431, %v3985
        %v4110 = vadd.f32 %v3432, %v3990
        %v4111 = vadd.f32 %v3433, %v3993
        %v4112 = vadd.f32 %v3434, %v3998
        %v4113 = vadd.f32 %v3435, %v4001
        %v4114 = vadd.f32 %v3436, %v4006
        %v4115 = vadd.f32 %v3437, %v4009
        %v4116 = vadd.f32 %v3438, %v4014
        %v4117 = vadd.f32 %v3439, %v4017
        %v4118 = vadd.f32 %v3440, %v4022
        %v4119 = vadd.f32 %v3441, %v4025
        %v4120 = vadd.f32 %v3442, %v4030
        %v4121 = vadd.f32 %v3443, %v4033
        %v4122 = vadd.f32 %v3444, %v4038
        %v4123 = vadd.f32 %v3445, %v4041
        %v4124 = vadd.f32 %v3446, %v4046
        %v4125 = vadd.f32 %v3447, %v4049
        %v4126 = vadd.f32 %v3448, %v4054
        %v4127 = vadd.f32 %v3449, %v4057
        %v4128 = vadd.f32 %v3450, %v4062
        %v4129 = vadd.f32 %v3451, %v4065
        %v4130 = vadd.f32 %v3452, %v4070
        %v4131 = vadd.f32 %v3453, %v4073
        %v4132 = vadd.f32 %v3454, %v4078
        %v4133 = vadd.f32 %v3455, %v4081
        %v4134 = vadd.f32 %v3456, %v4086
        %v4135 = vadd.f32 %v3457, %v4089
        %v4136 = vadd.f32 %v3458, %v4094
        %v4137 = vadd.f32 %v3459, %v4097
        %v4138 = vadd.f32 %v3460, %v4102
        %v4139 = vadd.f32 %v3461, %v4105
        %s4140 = scalar_lea.vmem %s1, 16
        %v4141 = vld [vmem:[%s4140] sm:$0x3]
        %v4158 = vrot.slane %v3088, 5
        %v4159 = vrot.slane %v4158, 4
        %v4160 = vrot.slane %v3089, 5
        %v4161 = vsel %vm1201, %v4159, %v4160
        %v4162 = vrot.slane %v4160, 4
        %v4163 = vrot.slane %v3090, 5
        %v4164 = vsel %vm1201, %v4162, %v4163
        %v4165 = vrot.slane %v3091, 5
        %v4166 = vrot.slane %v4165, 4
        %v4167 = vrot.slane %v3092, 5
        %v4168 = vsel %vm1201, %v4166, %v4167
        %v4169 = vrot.slane %v4167, 4
        %v4170 = vrot.slane %v3093, 5
        %v4171 = vsel %vm1201, %v4169, %v4170
        %v4172 = vrot.slane %v3094, 5
        %v4173 = vrot.slane %v4172, 4
        %v4174 = vrot.slane %v3095, 5
        %v4175 = vsel %vm1201, %v4173, %v4174
        %v4176 = vrot.slane %v4174, 4
        %v4177 = vrot.slane %v3096, 5
        %v4178 = vsel %vm1201, %v4176, %v4177
        %v4179 = vrot.slane %v3097, 5
        %v4180 = vrot.slane %v4179, 4
        %v4181 = vrot.slane %v3098, 5
        %v4182 = vsel %vm1201, %v4180, %v4181
        %v4183 = vrot.slane %v4181, 4
        %v4184 = vrot.slane %v3099, 5
        %v4185 = vsel %vm1201, %v4183, %v4184
        %v4186 = vrot.slane %v3100, 5
        %v4187 = vrot.slane %v4186, 4
        %v4188 = vrot.slane %v3101, 5
        %v4189 = vsel %vm1201, %v4187, %v4188
        %v4190 = vrot.slane %v4188, 4
        %v4191 = vrot.slane %v3102, 5
        %v4192 = vsel %vm1201, %v4190, %v4191
        %v4193 = vrot.slane %v3103, 5
        %v4194 = vrot.slane %v4193, 4
        %v4195 = vrot.slane %v3104, 5
        %v4196 = vsel %vm1201, %v4194, %v4195
        %v4197 = vrot.slane %v4195, 4
        %v4198 = vrot.slane %v3105, 5
        %v4199 = vsel %vm1201, %v4197, %v4198
        %v4200 = vrot.slane %v3106, 5
        %v4201 = vrot.slane %v4200, 4
        %v4202 = vrot.slane %v3107, 5
        %v4203 = vsel %vm1201, %v4201, %v4202
        %v4204 = vrot.slane %v4202, 4
        %v4205 = vrot.slane %v3108, 5
        %v4206 = vsel %vm1201, %v4204, %v4205
        %v4207 = vrot.slane %v3109, 5
        %v4208 = vrot.slane %v4207, 4
        %v4209 = vrot.slane %v3110, 5
        %v4210 = vsel %vm1201, %v4208, %v4209
        %v4211 = vrot.slane %v4209, 4
        %v4212 = vrot.slane %v3111, 5
        %v4213 = vsel %vm1201, %v4211, %v4212
        %v4214 = vrot.slane %v3112, 5
        %v4215 = vrot.slane %v4214, 4
        %v4216 = vrot.slane %v3113, 5
        %v4217 = vsel %vm1201, %v4215, %v4216
        %v4218 = vrot.slane %v4216, 4
        %v4219 = vrot.slane %v3114, 5
        %v4220 = vsel %vm1201, %v4218, %v4219
        %v4221 = vrot.slane %v3115, 5
        %v4222 = vrot.slane %v4221, 4
        %v4223 = vrot.slane %v3116, 5
        %v4224 = vsel %vm1201, %v4222, %v4223
        %v4225 = vrot.slane %v4223, 4
        %v4226 = vrot.slane %v3117, 5
        %v4227 = vsel %vm1201, %v4225, %v4226
        %v4228 = vrot.slane %v3118, 5
        %v4229 = vrot.slane %v4228, 4
        %v4230 = vrot.slane %v3119, 5
        %v4231 = vsel %vm1201, %v4229, %v4230
        %v4232 = vrot.slane %v4230, 4
        %v4233 = vrot.slane %v3120, 5
        %v4234 = vsel %vm1201, %v4232, %v4233
        %v4235 = vrot.slane %v3121, 5
        %v4236 = vrot.slane %v4235, 4
        %v4237 = vrot.slane %v3122, 5
        %v4238 = vsel %vm1201, %v4236, %v4237
        %v4239 = vrot.slane %v4237, 4
        %v4240 = vrot.slane %v3123, 5
        %v4241 = vsel %vm1201, %v4239, %v4240
        %v4242 = vrot.slane %v3124, 5
        %v4243 = vrot.slane %v4242, 4
        %v4244 = vrot.slane %v3125, 5
        %v4245 = vsel %vm1201, %v4243, %v4244
        %v4246 = vrot.slane %v4244, 4
        %v4247 = vrot.slane %v3126, 5
        %v4248 = vsel %vm1201, %v4246, %v4247
        %v4249 = vrot.slane %v3127, 5
        %v4250 = vrot.slane %v4249, 4
        %v4251 = vrot.slane %v3128, 5
        %v4252 = vsel %vm1201, %v4250, %v4251
        %v4253 = vrot.slane %v4251, 4
        %v4254 = vrot.slane %v3129, 5
        %v4255 = vsel %vm1201, %v4253, %v4254
        %v4256 = vrot.slane %v3130, 5
        %v4257 = vrot.slane %v4256, 4
        %v4258 = vrot.slane %v3131, 5
        %v4259 = vsel %vm1201, %v4257, %v4258
        %v4260 = vrot.slane %v4258, 4
        %v4261 = vrot.slane %v3132, 5
        %v4262 = vsel %vm1201, %v4260, %v4261
        %v4263 = vrot.slane %v3133, 5
        %v4264 = vrot.slane %v4263, 4
        %v4265 = vrot.slane %v3134, 5
        %v4266 = vsel %vm1201, %v4264, %v4265
        %v4267 = vrot.slane %v4265, 4
        %v4268 = vrot.slane %v3135, 5
        %v4269 = vsel %vm1201, %v4267, %v4268
        %v4270 = vunpack.c.l.b16 %v4161
        %v4271 = vunpack.c.l.b16 %v4164
        %v4272 = vunpack.c.l.b16 %v4168
        %v4273 = vunpack.c.l.b16 %v4171
        %v4274 = vunpack.c.l.b16 %v4175
        %v4275 = vunpack.c.l.b16 %v4178
        %v4276 = vunpack.c.l.b16 %v4182
        %v4277 = vunpack.c.l.b16 %v4185
        %v4278 = vunpack.c.l.b16 %v4189
        %v4279 = vunpack.c.l.b16 %v4192
        %v4280 = vunpack.c.l.b16 %v4196
        %v4281 = vunpack.c.l.b16 %v4199
        %v4282 = vunpack.c.l.b16 %v4203
        %v4283 = vunpack.c.l.b16 %v4206
        %v4284 = vunpack.c.l.b16 %v4210
        %v4285 = vunpack.c.l.b16 %v4213
        %v4286 = vunpack.c.l.b16 %v4217
        %v4287 = vunpack.c.l.b16 %v4220
        %v4288 = vunpack.c.l.b16 %v4224
        %v4289 = vunpack.c.l.b16 %v4227
        %v4290 = vunpack.c.l.b16 %v4231
        %v4291 = vunpack.c.l.b16 %v4234
        %v4292 = vunpack.c.l.b16 %v4238
        %v4293 = vunpack.c.l.b16 %v4241
        %v4294 = vunpack.c.l.b16 %v4245
        %v4295 = vunpack.c.l.b16 %v4248
        %v4296 = vunpack.c.l.b16 %v4252
        %v4297 = vunpack.c.l.b16 %v4255
        %v4298 = vunpack.c.l.b16 %v4259
        %v4299 = vunpack.c.l.b16 %v4262
        %v4300 = vunpack.c.l.b16 %v4266
        %v4301 = vunpack.c.l.b16 %v4269
        %v4302 = vpack.c.b16 %v4271, %v4270
        %v4303 = vpack.c.b16 %v4273, %v4272
        %v4304 = vpack.c.b16 %v4275, %v4274
        %v4305 = vpack.c.b16 %v4277, %v4276
        %v4306 = vpack.c.b16 %v4279, %v4278
        %v4307 = vpack.c.b16 %v4281, %v4280
        %v4308 = vpack.c.b16 %v4283, %v4282
        %v4309 = vpack.c.b16 %v4285, %v4284
        %v4310 = vpack.c.b16 %v4287, %v4286
        %v4311 = vpack.c.b16 %v4289, %v4288
        %v4312 = vpack.c.b16 %v4291, %v4290
        %v4313 = vpack.c.b16 %v4293, %v4292
        %v4314 = vpack.c.b16 %v4295, %v4294
        %v4315 = vpack.c.b16 %v4297, %v4296
        %v4316 = vpack.c.b16 %v4299, %v4298
        %v4317 = vpack.c.b16 %v4301, %v4300
        %v4319 = vsel %vm675, %v4302, 0
        %v4322 = vsel %vm675, %v4303, 0
        %v4325 = vsel %vm675, %v4304, 0
        %v4328 = vsel %vm675, %v4305, 0
        %v4331 = vsel %vm675, %v4306, 0
        %v4334 = vsel %vm675, %v4307, 0
        %v4337 = vsel %vm675, %v4308, 0
        %v4340 = vsel %vm675, %v4309, 0
        %v4343 = vsel %vm675, %v4310, 0
        %v4346 = vsel %vm675, %v4311, 0
        %v4349 = vsel %vm675, %v4312, 0
        %v4352 = vsel %vm675, %v4313, 0
        %v4355 = vsel %vm675, %v4314, 0
        %v4358 = vsel %vm675, %v4315, 0
        %v4361 = vsel %vm675, %v4316, 0
        %v4364 = vsel %vm675, %v4317, 0
        %v4367 = vsel %vm724, %v4141, 0
        %4369 = vmatprep.subr.bf16.mxu0 0
        %4370 = vmatpush1.bf16.msra.mxu0 %v4367
        %4371 = vmatprep.subr.bf16.mxu0 0
        %4372 = vmatpush1.bf16.msra.mxu0 0
        %4373 = vmatprep.subr.bf16.mxu0 0
        %4374 = vmatpush1.bf16.msra.mxu0 0
        %4375 = vmatprep.subr.bf16.mxu0 0
        %4376 = vmatpush1.bf16.msra.mxu0 0
        %4377 = vmatprep.subr.bf16.mxu0 0
        %4378 = vmatpush1.bf16.msra.mxu0 0
        %4379 = vmatprep.subr.bf16.mxu0 0
        %4380 = vmatpush1.bf16.msra.mxu0 0
        %4381 = vmatprep.subr.bf16.mxu0 0
        %4382 = vmatpush1.bf16.msra.mxu0 0
        %4383 = vmatprep.subr.bf16.mxu0 0
        %4384 = vmatpush1.bf16.msra.mxu0 0
        %4385 = vmatprep.subr.bf16.mxu0 0
        %4386 = vmatpush1.bf16.msra.mxu0 0
        %4387 = vmatprep.subr.bf16.mxu0 0
        %4388 = vmatpush1.bf16.msra.mxu0 0
        %4389 = vmatprep.subr.bf16.mxu0 0
        %4390 = vmatpush1.bf16.msra.mxu0 0
        %4391 = vmatprep.subr.bf16.mxu0 0
        %4392 = vmatpush1.bf16.msra.mxu0 0
        %4393 = vmatprep.subr.bf16.mxu0 0
        %4394 = vmatpush1.bf16.msra.mxu0 0
        %4395 = vmatprep.subr.bf16.mxu0 0
        %4396 = vmatpush1.bf16.msra.mxu0 0
        %4397 = vmatprep.subr.bf16.mxu0 0
        %4398 = vmatpush1.bf16.msra.mxu0 0
        %4399 = vmatprep.subr.bf16.mxu0 0
        %4400 = vmatpush1.bf16.msra.mxu0 0
        %4401 = vmatprep.mubr.bf16.mxu0 0
        %4402 = vmatmul.mubr.bf16.gmra.mrb[0].mxu0 %v4319
        %v4403 = vpop.f32.mrb[0].mxu0
        %v4404 = vadd.f32 0.0, %v4403
        %v4405 = vpop.f32.mrb[0].mxu0
        %v4406 = vpop.f32.mrb[0].mxu0
        %v4407 = vadd.f32 0.0, %v4406
        %v4408 = vpop.f32.mrb[0].mxu0
        %4409 = vmatprep.mubr.bf16.mxu0 0
        %4410 = vmatmul.mubr.bf16.gmra.mrb[0].mxu0 %v4322
        %v4411 = vpop.f32.mrb[0].mxu0
        %v4412 = vadd.f32 0.0, %v4411
        %v4413 = vpop.f32.mrb[0].mxu0
        %v4414 = vpop.f32.mrb[0].mxu0
        %v4415 = vadd.f32 0.0, %v4414
        %v4416 = vpop.f32.mrb[0].mxu0
        %4417 = vmatprep.mubr.bf16.mxu0 0
        %4418 = vmatmul.mubr.bf16.gmra.mrb[0].mxu0 %v4325
        %v4419 = vpop.f32.mrb[0].mxu0
        %v4420 = vadd.f32 0.0, %v4419
        %v4421 = vpop.f32.mrb[0].mxu0
        %v4422 = vpop.f32.mrb[0].mxu0
        %v4423 = vadd.f32 0.0, %v4422
        %v4424 = vpop.f32.mrb[0].mxu0
        %4425 = vmatprep.mubr.bf16.mxu0 0
        %4426 = vmatmul.mubr.bf16.gmra.mrb[0].mxu0 %v4328
        %v4427 = vpop.f32.mrb[0].mxu0
        %v4428 = vadd.f32 0.0, %v4427
        %v4429 = vpop.f32.mrb[0].mxu0
        %v4430 = vpop.f32.mrb[0].mxu0
        %v4431 = vadd.f32 0.0, %v4430
        %v4432 = vpop.f32.mrb[0].mxu0
        %4433 = vmatprep.mubr.bf16.mxu0 0
        %4434 = vmatmul.mubr.bf16.gmra.mrb[0].mxu0 %v4331
        %v4435 = vpop.f32.mrb[0].mxu0
        %v4436 = vadd.f32 0.0, %v4435
        %v4437 = vpop.f32.mrb[0].mxu0
        %v4438 = vpop.f32.mrb[0].mxu0
        %v4439 = vadd.f32 0.0, %v4438
        %v4440 = vpop.f32.mrb[0].mxu0
        %4441 = vmatprep.mubr.bf16.mxu0 0
        %4442 = vmatmul.mubr.bf16.gmra.mrb[0].mxu0 %v4334
        %v4443 = vpop.f32.mrb[0].mxu0
        %v4444 = vadd.f32 0.0, %v4443
        %v4445 = vpop.f32.mrb[0].mxu0
        %v4446 = vpop.f32.mrb[0].mxu0
        %v4447 = vadd.f32 0.0, %v4446
        %v4448 = vpop.f32.mrb[0].mxu0
        %4449 = vmatprep.mubr.bf16.mxu0 0
        %4450 = vmatmul.mubr.bf16.gmra.mrb[0].mxu0 %v4337
        %v4451 = vpop.f32.mrb[0].mxu0
        %v4452 = vadd.f32 0.0, %v4451
        %v4453 = vpop.f32.mrb[0].mxu0
        %v4454 = vpop.f32.mrb[0].mxu0
        %v4455 = vadd.f32 0.0, %v4454
        %v4456 = vpop.f32.mrb[0].mxu0
        %4457 = vmatprep.mubr.bf16.mxu0 0
        %4458 = vmatmul.mubr.bf16.gmra.mrb[0].mxu0 %v4340
        %v4459 = vpop.f32.mrb[0].mxu0
        %v4460 = vadd.f32 0.0, %v4459
        %v4461 = vpop.f32.mrb[0].mxu0
        %v4462 = vpop.f32.mrb[0].mxu0
        %v4463 = vadd.f32 0.0, %v4462
        %v4464 = vpop.f32.mrb[0].mxu0
        %4465 = vmatprep.mubr.bf16.mxu0 0
        %4466 = vmatmul.mubr.bf16.gmra.mrb[0].mxu0 %v4343
        %v4467 = vpop.f32.mrb[0].mxu0
        %v4468 = vadd.f32 0.0, %v4467
        %v4469 = vpop.f32.mrb[0].mxu0
        %v4470 = vpop.f32.mrb[0].mxu0
        %v4471 = vadd.f32 0.0, %v4470
        %v4472 = vpop.f32.mrb[0].mxu0
        %4473 = vmatprep.mubr.bf16.mxu0 0
        %4474 = vmatmul.mubr.bf16.gmra.mrb[0].mxu0 %v4346
        %v4475 = vpop.f32.mrb[0].mxu0
        %v4476 = vadd.f32 0.0, %v4475
        %v4477 = vpop.f32.mrb[0].mxu0
        %v4478 = vpop.f32.mrb[0].mxu0
        %v4479 = vadd.f32 0.0, %v4478
        %v4480 = vpop.f32.mrb[0].mxu0
        %4481 = vmatprep.mubr.bf16.mxu0 0
        %4482 = vmatmul.mubr.bf16.gmra.mrb[0].mxu0 %v4349
        %v4483 = vpop.f32.mrb[0].mxu0
        %v4484 = vadd.f32 0.0, %v4483
        %v4485 = vpop.f32.mrb[0].mxu0
        %v4486 = vpop.f32.mrb[0].mxu0
        %v4487 = vadd.f32 0.0, %v4486
        %v4488 = vpop.f32.mrb[0].mxu0
        %4489 = vmatprep.mubr.bf16.mxu0 0
        %4490 = vmatmul.mubr.bf16.gmra.mrb[0].mxu0 %v4352
        %v4491 = vpop.f32.mrb[0].mxu0
        %v4492 = vadd.f32 0.0, %v4491
        %v4493 = vpop.f32.mrb[0].mxu0
        %v4494 = vpop.f32.mrb[0].mxu0
        %v4495 = vadd.f32 0.0, %v4494
        %v4496 = vpop.f32.mrb[0].mxu0
        %4497 = vmatprep.mubr.bf16.mxu0 0
        %4498 = vmatmul.mubr.bf16.gmra.mrb[0].mxu0 %v4355
        %v4499 = vpop.f32.mrb[0].mxu0
        %v4500 = vadd.f32 0.0, %v4499
        %v4501 = vpop.f32.mrb[0].mxu0
        %v4502 = vpop.f32.mrb[0].mxu0
        %v4503 = vadd.f32 0.0, %v4502
        %v4504 = vpop.f32.mrb[0].mxu0
        %4505 = vmatprep.mubr.bf16.mxu0 0
        %4506 = vmatmul.mubr.bf16.gmra.mrb[0].mxu0 %v4358
        %v4507 = vpop.f32.mrb[0].mxu0
        %v4508 = vadd.f32 0.0, %v4507
        %v4509 = vpop.f32.mrb[0].mxu0
        %v4510 = vpop.f32.mrb[0].mxu0
        %v4511 = vadd.f32 0.0, %v4510
        %v4512 = vpop.f32.mrb[0].mxu0
        %4513 = vmatprep.mubr.bf16.mxu0 0
        %4514 = vmatmul.mubr.bf16.gmra.mrb[0].mxu0 %v4361
        %v4515 = vpop.f32.mrb[0].mxu0
        %v4516 = vadd.f32 0.0, %v4515
        %v4517 = vpop.f32.mrb[0].mxu0
        %v4518 = vpop.f32.mrb[0].mxu0
        %v4519 = vadd.f32 0.0, %v4518
        %v4520 = vpop.f32.mrb[0].mxu0
        %4521 = vmatprep.mubr.bf16.mxu0 0
        %4522 = vmatmul.mubr.bf16.gmra.mrb[0].mxu0 %v4364
        %v4523 = vpop.f32.mrb[0].mxu0
        %v4524 = vadd.f32 0.0, %v4523
        %v4525 = vpop.f32.mrb[0].mxu0
        %v4526 = vpop.f32.mrb[0].mxu0
        %v4527 = vadd.f32 0.0, %v4526
        %v4528 = vpop.f32.mrb[0].mxu0
        %4529 = vdwg.mxu0
        %v4530 = vadd.f32 %v4108, %v4404
        %v4531 = vadd.f32 %v4109, %v4407
        %v4532 = vadd.f32 %v4110, %v4412
        %v4533 = vadd.f32 %v4111, %v4415
        %v4534 = vadd.f32 %v4112, %v4420
        %v4535 = vadd.f32 %v4113, %v4423
        %v4536 = vadd.f32 %v4114, %v4428
        %v4537 = vadd.f32 %v4115, %v4431
        %v4538 = vadd.f32 %v4116, %v4436
        %v4539 = vadd.f32 %v4117, %v4439
        %v4540 = vadd.f32 %v4118, %v4444
        %v4541 = vadd.f32 %v4119, %v4447
        %v4542 = vadd.f32 %v4120, %v4452
        %v4543 = vadd.f32 %v4121, %v4455
        %v4544 = vadd.f32 %v4122, %v4460
        %v4545 = vadd.f32 %v4123, %v4463
        %v4546 = vadd.f32 %v4124, %v4468
        %v4547 = vadd.f32 %v4125, %v4471
        %v4548 = vadd.f32 %v4126, %v4476
        %v4549 = vadd.f32 %v4127, %v4479
        %v4550 = vadd.f32 %v4128, %v4484
        %v4551 = vadd.f32 %v4129, %v4487
        %v4552 = vadd.f32 %v4130, %v4492
        %v4553 = vadd.f32 %v4131, %v4495
        %v4554 = vadd.f32 %v4132, %v4500
        %v4555 = vadd.f32 %v4133, %v4503
        %v4556 = vadd.f32 %v4134, %v4508
        %v4557 = vadd.f32 %v4135, %v4511
        %v4558 = vadd.f32 %v4136, %v4516
        %v4559 = vadd.f32 %v4137, %v4519
        %v4560 = vadd.f32 %v4138, %v4524
        %v4561 = vadd.f32 %v4139, %v4527
        %v4562 = vld [vmem:[%s2] sm:$0x1]
        %v4564 = vlaneseq
        %v4565 = vshrl.u32 %v4564, 7
        %v4566 = vsub.s32 0, %v4565
        %v4567 = vrot.slane %v4562, %v4566
        %v4569 = vadd.f32 %v4530, %v4567
        %v4570 = vadd.f32 %v4531, %v4567
        %v4571 = vadd.f32 %v4532, %v4567
        %v4572 = vadd.f32 %v4533, %v4567
        %v4573 = vadd.f32 %v4534, %v4567
        %v4574 = vadd.f32 %v4535, %v4567
        %v4575 = vadd.f32 %v4536, %v4567
        %v4576 = vadd.f32 %v4537, %v4567
        %v4577 = vadd.f32 %v4538, %v4567
        %v4578 = vadd.f32 %v4539, %v4567
        %v4579 = vadd.f32 %v4540, %v4567
        %v4580 = vadd.f32 %v4541, %v4567
        %v4581 = vadd.f32 %v4542, %v4567
        %v4582 = vadd.f32 %v4543, %v4567
        %v4583 = vadd.f32 %v4544, %v4567
        %v4584 = vadd.f32 %v4545, %v4567
        %v4585 = vadd.f32 %v4546, %v4567
        %v4586 = vadd.f32 %v4547, %v4567
        %v4587 = vadd.f32 %v4548, %v4567
        %v4588 = vadd.f32 %v4549, %v4567
        %v4589 = vadd.f32 %v4550, %v4567
        %v4590 = vadd.f32 %v4551, %v4567
        %v4591 = vadd.f32 %v4552, %v4567
        %v4592 = vadd.f32 %v4553, %v4567
        %v4593 = vadd.f32 %v4554, %v4567
        %v4594 = vadd.f32 %v4555, %v4567
        %v4595 = vadd.f32 %v4556, %v4567
        %v4596 = vadd.f32 %v4557, %v4567
        %v4597 = vadd.f32 %v4558, %v4567
        %v4598 = vadd.f32 %v4559, %v4567
        %v4599 = vadd.f32 %v4560, %v4567
        %v4600 = vadd.f32 %v4561, %v4567
        %4601 = vst [vmem:[%s177] sm:$0xff] %v4569
        %4602 = vst [vmem:[%s177 + $0x8] sm:$0xff] %v4570
        %4603 = vst [vmem:[%s177 + $0x10] sm:$0xff] %v4571
        %4604 = vst [vmem:[%s177 + $0x18] sm:$0xff] %v4572
        %4605 = vst [vmem:[%s177 + $0x20] sm:$0xff] %v4573
        %4606 = vst [vmem:[%s177 + $0x28] sm:$0xff] %v4574
        %4607 = vst [vmem:[%s177 + $0x30] sm:$0xff] %v4575
        %4608 = vst [vmem:[%s177 + $0x38] sm:$0xff] %v4576
        %4609 = vst [vmem:[%s177 + $0x40] sm:$0xff] %v4577
        %4610 = vst [vmem:[%s177 + $0x48] sm:$0xff] %v4578
        %4611 = vst [vmem:[%s177 + $0x50] sm:$0xff] %v4579
        %4612 = vst [vmem:[%s177 + $0x58] sm:$0xff] %v4580
        %4613 = vst [vmem:[%s177 + $0x60] sm:$0xff] %v4581
        %4614 = vst [vmem:[%s177 + $0x68] sm:$0xff] %v4582
        %4615 = vst [vmem:[%s177 + $0x70] sm:$0xff] %v4583
        %4616 = vst [vmem:[%s177 + $0x78] sm:$0xff] %v4584
        %4617 = vst [vmem:[%s177 + $0x80] sm:$0xff] %v4585
        %4618 = vst [vmem:[%s177 + $0x88] sm:$0xff] %v4586
        %4619 = vst [vmem:[%s177 + $0x90] sm:$0xff] %v4587
        %4620 = vst [vmem:[%s177 + $0x98] sm:$0xff] %v4588
        %4621 = vst [vmem:[%s177 + $0xa0] sm:$0xff] %v4589
        %4622 = vst [vmem:[%s177 + $0xa8] sm:$0xff] %v4590
        %4623 = vst [vmem:[%s177 + $0xb0] sm:$0xff] %v4591
        %4624 = vst [vmem:[%s177 + $0xb8] sm:$0xff] %v4592
        %4625 = vst [vmem:[%s177 + $0xc0] sm:$0xff] %v4593
        %4626 = vst [vmem:[%s177 + $0xc8] sm:$0xff] %v4594
        %4627 = vst [vmem:[%s177 + $0xd0] sm:$0xff] %v4595
        %4628 = vst [vmem:[%s177 + $0xd8] sm:$0xff] %v4596
        %4629 = vst [vmem:[%s177 + $0xe0] sm:$0xff] %v4597
        %4630 = vst [vmem:[%s177 + $0xe8] sm:$0xff] %v4598
        %4631 = vst [vmem:[%s177 + $0xf0] sm:$0xff] %v4599
        %4632 = vst [vmem:[%s177 + $0xf8] sm:$0xff] %v4600
        %s4633 = sand.u32 %s107, 1
        %s4634 = scalar_lea.sflag [#allocation3], %s4633
        %s4635 = sand.u32 %s107, 1
        %s4636 = smul.addr %s4635, 256
        %s4637 = scalar_lea.vmem [#allocation2], %s4636
        // Predicated region
        $region33: #{tpu_custom_call.1} parent=31 // pred_check
          %p4638 = pneg %p117
        $region34: #{tpu_custom_call.1} parent=31 // pred_check_branch
          %4640 = sbr.rel (%p4638) target = $region36
        $region35: #{tpu_custom_call.1} parent=31 // pred_region
          %s4641 = smul.u32 16, %s22
          %s4643 = ssub.s32 4096, 4096
          %4644 = vsyncadd %s4634, %s4643
          %s4645 = smul.addr %s4641, 2
          %s4646 = smul.addr %s21, 32
          %s4647 = sadd.s32 %s4645, %s4646
          %s4648 = smul.addr %s4647, 128
          %s4649 = scalar_lea.hbm %s3, %s4648
          %s4650 = sshll.u32 %s4637, 4
          %s4651 = int_to_ptr.vmem [resolvable:$true] %s4650
          %4656 = dma.vmem_to_hbm [thread:$0]  %s4651, 4096, %s4649, %s4634, 128, 128, 8
        $region36: #{tpu_custom_call.1} parent=31 // pred_fallthru
          _
      $region32: #{tpu_custom_call.1} parent=5 // pred_fallthru
        _
      %p4657 = scmp.le.s32.totalorder 2, %s12
      // Predicated region
      $region37: #{tpu_custom_call.1} parent=5 // pred_check
        %p4658 = pneg %p4657
      $region38: #{tpu_custom_call.1} parent=5 // pred_check_branch
        %4660 = sbr.rel (%p4658) target = $region40
      $region39: #{tpu_custom_call.1} parent=5 // pred_region
        %s4661 = ssub.s32 %s12, 2
        // Predicated region
        $region41: #{tpu_custom_call.1} parent=39 // pred_check
          %p4662 = pneg %p123
        $region42: #{tpu_custom_call.1} parent=39 // pred_check_branch
          %4664 = sbr.rel (%p4662) target = $region44
        $region43: #{tpu_custom_call.1} parent=39 // pred_region
          %s4665 = sand.u32 %s108, 1
          %s4666 = scalar_lea.sflag [#allocation3], %s4665
          %s4667 = sand.u32 %s108, 1
          %s4668 = smul.addr %s4667, 256
          %s4669 = scalar_lea.vmem [#allocation2], %s4668
          %4670 = dma.done %s4666, 4096
        $region44: #{tpu_custom_call.1} parent=39 // pred_fallthru
          _
      $region40: #{tpu_custom_call.1} parent=5 // pred_fallthru
        _
    $region6: #{tpu_custom_call.1} parent=1 // loop_footer
      %s16 = sadd.s32 1, %s12
    $region7: #{tpu_custom_call.1} parent=1 // loop_footer_branch
      %11 = sbr.rel target = $region3
    $region8: #{tpu_custom_call.1} parent=1 // loop_exit
      _
    %4671 = vsyncpa [#allocation3], 1
    %s4672 = scalar_lea.sflag [#allocation3], 1
    %4673 = vsyncpa %s4672, 1

</llo_original>
